<compile_context>
chip_gen: v5e
topology: v5e:2x2
jax: 0.10.0
libtpu: 0.0.40
codegen_flags: <defaults>
</compile_context>

<pallas_src>
import functools

import numpy as np
import jax
import jax.numpy as jnp
from jax import lax
from jax.experimental import pallas as pl
from jax.experimental.pallas import tpu as pltpu


LANE_PAD = 128               # pad matmul output columns to full lane width (dense vst).
                             # TODO(synk): a 256-wide pad would fill the v6e/v7x MXU width.
VMEM_LIMIT = 32 * 1024 * 1024


def _round_up(x, m):
    return ((x + m - 1) // m) * m


# ----------------------------------------------------------------------------
# Pallas kernels
# ----------------------------------------------------------------------------
def _matmul_bias_act_kernel(x_ref, w_ref, b_ref, o_ref, *, apply_relu):
    # x: (tm, K) f32, w: (K, Npad) bf16, b: (1, Npad) f32 -> o: (tm, Npad) f32
    x = x_ref[...].astype(jnp.bfloat16)          # bf16 MXU operands, f32 accumulate
    acc = jnp.dot(x, w_ref[...], preferred_element_type=jnp.float32)
    acc = acc + b_ref[...]                        # bias add stays in f32
    if apply_relu:
        acc = jnp.maximum(acc, 0.0)
    o_ref[...] = acc.astype(o_ref.dtype)


def _grouped_matmul_bias_act_kernel(x_ref, w_ref, b_ref, o_ref, *, apply_relu):
    # x: (1, tm, K) f32, w: (1, K, Npad) bf16, b: (1, Npad) f32 -> o: (1, tm, Npad)
    x = x_ref[0].astype(jnp.bfloat16)
    acc = jnp.dot(x, w_ref[0], preferred_element_type=jnp.float32)
    acc = acc + b_ref[...]
    if apply_relu:
        acc = jnp.maximum(acc, 0.0)
    o_ref[0] = acc.astype(o_ref.dtype)


def _bottleneck_kernel(x_ref, av_ref, fce_w_ref, fce_b_ref, wenc_ref,
                       ftr_w_ref, ftr_b_ref, fdec_w_ref, fdec_b_ref, o_ref):
    # Fused: relu(fc_enc(x)) -> (w_enc(.) * gathered w_action row) -> fc_trans
    #        -> relu(fc_dec(.)).  All operands stay resident; no HBM round trips
    #        of the (B, hidden) activations between the four matmuls.
    x = x_ref[...].astype(jnp.bfloat16)
    z = jnp.dot(x, fce_w_ref[...], preferred_element_type=jnp.float32) + fce_b_ref[...]
    z = jnp.maximum(z, 0.0)
    e = jnp.dot(z.astype(jnp.bfloat16), wenc_ref[...], preferred_element_type=jnp.float32)
    m = e * av_ref[...]                              # action gate (row-gathered w_action)
    t = jnp.dot(m.astype(jnp.bfloat16), ftr_w_ref[...], preferred_element_type=jnp.float32)
    t = t + ftr_b_ref[...]
    d = jnp.dot(t.astype(jnp.bfloat16), fdec_w_ref[...], preferred_element_type=jnp.float32)
    d = d + fdec_b_ref[...]
    o_ref[...] = jnp.maximum(d, 0.0)


# ----------------------------------------------------------------------------
# Pallas wrappers
# ----------------------------------------------------------------------------
def _pick_tile_m(M, K):
    """Row tile: whole M if it comfortably fits VMEM, else near-equal multiple-of-8
    tiles (a ragged last tile is masked by Pallas block padding)."""
    bytes_per_row = 4 * K
    cap = max(8, min(1024, (2 * 1024 * 1024 // max(1, bytes_per_row)) // 8 * 8))
    if M <= cap:
        return M
    nb = pl.cdiv(M, cap)
    return _round_up(pl.cdiv(M, nb), 8)


def linear_pallas(x, w, b, relu=True):
    """y = [relu](x @ w + b).  x:(M,K) f32, w:(K,Npad) bf16, b:(1,Npad) f32 -> (M,Npad)."""
    M, K = x.shape
    Kw, Np = w.shape
    assert K == Kw and Np % LANE_PAD == 0
    tm = _pick_tile_m(M, K)
    grid_m = pl.cdiv(M, tm)
    return pl.pallas_call(
        functools.partial(_matmul_bias_act_kernel, apply_relu=relu),
        out_shape=jax.ShapeDtypeStruct((M, Np), jnp.float32),
        grid=(grid_m,),
        in_specs=[
            pl.BlockSpec((tm, K), lambda i: (i, 0)),
            pl.BlockSpec((K, Np), lambda i: (0, 0)),
            pl.BlockSpec((1, Np), lambda i: (0, 0)),
        ],
        out_specs=pl.BlockSpec((tm, Np), lambda i: (i, 0)),
        compiler_params=pltpu.CompilerParams(
            dimension_semantics=("parallel",),
            vmem_limit_bytes=VMEM_LIMIT),
    )(x, w, b)


def grouped_linear_pallas(x, w, b, relu=True):
    """y[g] = [relu](x[g] @ w[g] + b).  x:(G,M,K) f32, w:(G,K,Npad) bf16, b:(1,Npad)."""
    G, M, K = x.shape
    Gw, Kw, Np = w.shape
    assert G == Gw and K == Kw and Np % LANE_PAD == 0
    tm = _pick_tile_m(M, K)
    grid = (G, pl.cdiv(M, tm))
    return pl.pallas_call(
        functools.partial(_grouped_matmul_bias_act_kernel, apply_relu=relu),
        out_shape=jax.ShapeDtypeStruct((G, M, Np), jnp.float32),
        grid=grid,
        in_specs=[
            pl.BlockSpec((1, tm, K), lambda g, i: (g, i, 0)),
            pl.BlockSpec((1, K, Np), lambda g, i: (g, 0, 0)),
            pl.BlockSpec((1, Np), lambda g, i: (0, 0)),
        ],
        out_specs=pl.BlockSpec((1, tm, Np), lambda g, i: (g, i, 0)),
        compiler_params=pltpu.CompilerParams(
            dimension_semantics=("parallel", "parallel"),
            vmem_limit_bytes=VMEM_LIMIT),
    )(x, w, b)


# ----------------------------------------------------------------------------
# im2col (layout glue; the matmul hot path is the Pallas kernel above)
# ----------------------------------------------------------------------------
def _im2col(x, kh, kw, stride):
    # x: (B, H, W, C) already padded -> (B*Ho*Wo, kh*kw*C), Ho, Wo
    B, H, W, C = x.shape
    Ho = (H - kh) // stride + 1
    Wo = (W - kw) // stride + 1
    patches = []
    for i in range(kh):
        for j in range(kw):
            p = lax.slice(
                x,
                (0, i, j, 0),
                (B, i + (Ho - 1) * stride + 1, j + (Wo - 1) * stride + 1, C),
                (1, stride, stride, 1),
            )
            patches.append(p.reshape(B, Ho, Wo, 1, C))
    cols = jnp.concatenate(patches, axis=3)           # (B, Ho, Wo, kh*kw, C)
    return cols.reshape(B * Ho * Wo, kh * kw * C), Ho, Wo


def _norm_conv_args(args):
    k = args[0]
    s = args[1]
    p = args[2] if len(args) > 2 else 0
    if isinstance(p, int):
        p = (p, p)
    return k, s, (int(p[0]), int(p[1]))


def _conv_out(size, k, s, p):
    return (size + 2 * p - k) // s + 1


# ----------------------------------------------------------------------------
# Model
# ----------------------------------------------------------------------------
class FFAcvpNetPallas:
    def __init__(self, input_dim, action_dim, hidden_dim=32,
                 conv_channels=(8, 16, 16, 16),
                 encoder_args=((8, 2, (0, 1)), (6, 2, 1), (6, 2, 1), (4, 2)),
                 decoder_args=((4, 2), (6, 2, 1), (6, 2, 1), (8, 2, (0, 1))),
                 key=None):
        if key is None:
            key = jax.random.PRNGKey(0)
        in_ch, H, W = input_dim
        channels = [in_ch] + list(conv_channels)
        self.encoder_args = [_norm_conv_args(a) for a in encoder_args]
        self.decoder_args = [_norm_conv_args(a) for a in decoder_args]
        self.action_dim = action_dim
        self.hidden_dim = hidden_dim

        keys = iter(jax.random.split(key, 64))

        # TODO(synk): original uses an orthogonal Initializer + Device wrapper;
        # replaced with deterministic scaled-normal init (synthetic weights).
        def w_init(shape, fan_in):
            return jnp.sqrt(2.0 / fan_in) * jax.random.normal(next(keys), shape, jnp.float32)

        def b_init(shape):
            return 0.01 * jax.random.normal(next(keys), shape, jnp.float32)

        # ---------- master (PyTorch-layout, f32) parameters ----------
        self.conv_master = []
        h, w = H, W
        for i, (k, s, (ph, pw)) in enumerate(self.encoder_args):
            cin, cout = channels[i], channels[i + 1]
            self.conv_master.append(
                (w_init((cout, cin, k, k), cin * k * k), b_init((cout,))))
            h = _conv_out(h, k, s, ph)
            w = _conv_out(w, k, s, pw)
        self.Hc, self.Wc, self.C_last = h, w, channels[-1]
        conved = h * w * channels[-1]
        self.conved_dim = conved

        self.fc_enc_w_m = w_init((conved, hidden_dim), conved)
        self.fc_enc_b_m = b_init((hidden_dim,))
        self.w_enc_m = w_init((hidden_dim, hidden_dim), hidden_dim)       # bias=False
        self.w_action_m = w_init((action_dim, hidden_dim), action_dim)    # bias=False
        self.fc_trans_w_m = w_init((hidden_dim, hidden_dim), hidden_dim)
        self.fc_trans_b_m = b_init((hidden_dim,))
        self.fc_dec_w_m = w_init((hidden_dim, conved), hidden_dim)
        self.fc_dec_b_m = b_init((conved,))

        rchannels = list(reversed(channels))
        self.deconv_master = []
        for i, (k, s, (ph, pw)) in enumerate(self.decoder_args):
            cin, cout = rchannels[i], rchannels[i + 1]
            self.deconv_master.append(
                (w_init((cin, cout, k, k), cin * k * k), b_init((cout,))))

        # ---------- precomputed Pallas layouts (done once, not per forward) ----------
        # Encoder convs: (KH*KW*Cin, Cout) weights, zero-padded to 128 lanes, bf16.
        self.enc_layers = []
        for (wt, bt), (k, s, (ph, pw)) in zip(self.conv_master, self.encoder_args):
            cout, cin = wt.shape[0], wt.shape[1]
            npad = _round_up(cout, LANE_PAD)
            w2 = jnp.transpose(wt, (2, 3, 1, 0)).reshape(k * k * cin, cout)
            w2 = jnp.pad(w2, ((0, 0), (0, npad - cout))).astype(jnp.bfloat16)
            b2 = jnp.pad(bt, (0, npad - cout)).reshape(1, npad).astype(jnp.float32)
            self.enc_layers.append(dict(k=k, s=s, ph=ph, pw=pw, cout=cout,
                                        npad=npad, w2=w2, b=b2))

        # Decoder deconvs: sub-pixel (stride^2 phase) decomposition -> stride-1 convs
        # on the undilated input (no zero-multiply waste; ~s^2 fewer MACs and bytes).
        self.dec_layers = []
        for (wt, bt), (k, s, (ph, pw)) in zip(self.deconv_master, self.decoder_args):
            cin, cout = wt.shape[0], wt.shape[1]
            npad = _round_up(cout, LANE_PAD)
            phases = []
            for r_h in range(s):
                for r_w in range(s):
                    kh0 = (k - 1 - ph - r_h) % s
                    kw0 = (k - 1 - pw - r_w) % s
                    Lh = len(range(kh0, k, s))
                    Lw = len(range(kw0, k, s))
                    d0h = (r_h + kh0 - (k - 1 - ph)) // s
                    d0w = (r_w + kw0 - (k - 1 - pw)) // s
                    w2 = None
                    if Lh > 0 and Lw > 0:
                        kh_idx = (k - 1) - (kh0 + s * np.arange(Lh))
                        kw_idx = (k - 1) - (kw0 + s * np.arange(Lw))
                        wp = wt[:, :, kh_idx, :][:, :, :, kw_idx]   # (Cin, Cout, Lh, Lw)
                        w2 = jnp.transpose(wp, (2, 3, 0, 1)).reshape(Lh * Lw * cin, cout)
                        w2 = jnp.pad(w2, ((0, 0), (0, npad - cout))).astype(jnp.bfloat16)
                    phases.append(dict(r_h=r_h, r_w=r_w, Lh=Lh, Lw=Lw,
                                       d0h=d0h, d0w=d0w, w2=w2))
            same_taps = all(p["w2"] is not None and p["Lh"] == phases[0]["Lh"]
                            and p["Lw"] == phases[0]["Lw"] for p in phases)
            w_stack = jnp.stack([p["w2"] for p in phases], axis=0) if same_taps else None
            b2 = jnp.pad(bt, (0, npad - cout)).reshape(1, npad).astype(jnp.float32)
            self.dec_layers.append(dict(k=k, s=s, ph=ph, pw=pw, cout=cout, npad=npad,
                                        phases=phases, w_stack=w_stack, b=b2))

        # Bottleneck: fold the PyTorch NCHW-flatten permutation into fc_enc / fc_dec so
        # NHWC activations feed the fused kernel with zero transposes; bf16 matmul
        # operands, f32 biases.  (Assumes the bottleneck weights fit in VMEM.)
        Hc, Wc, C = self.Hc, self.Wc, self.C_last
        fce_w = jnp.transpose(self.fc_enc_w_m.reshape(C, Hc, Wc, hidden_dim),
                              (1, 2, 0, 3)).reshape(conved, hidden_dim)
        fdec_w = jnp.transpose(self.fc_dec_w_m.reshape(hidden_dim, C, Hc, Wc),
                               (0, 2, 3, 1)).reshape(hidden_dim, conved)
        fdec_b = jnp.transpose(self.fc_dec_b_m.reshape(C, Hc, Wc), (1, 2, 0)).reshape(conved)
        self.bt = dict(
            fce_w=fce_w.astype(jnp.bfloat16),
            fce_b=self.fc_enc_b_m.reshape(1, hidden_dim).astype(jnp.float32),
            wenc=self.w_enc_m.astype(jnp.bfloat16),
            wact=self.w_action_m.astype(jnp.float32),   # gathered rows, elementwise gate
            ftr_w=self.fc_trans_w_m.astype(jnp.bfloat16),
            ftr_b=self.fc_trans_b_m.reshape(1, hidden_dim).astype(jnp.float32),
            fdec_w=fdec_w.astype(jnp.bfloat16),
            fdec_b=fdec_b.reshape(1, conved).astype(jnp.float32),
        )

    # ------------------------- Pallas forward -------------------------
    def _conv_forward(self, x, layer):
        k, s, ph, pw = layer["k"], layer["s"], layer["ph"], layer["pw"]
        xp = jnp.pad(x, ((0, 0), (ph, ph), (pw, pw), (0, 0)))
        cols, Ho, Wo = _im2col(xp, k, k, s)
        y = linear_pallas(cols, layer["w2"], layer["b"], relu=True)
        return y[:, :layer["cout"]].reshape(x.shape[0], Ho, Wo, layer["cout"])

    @staticmethod
    def _phase_input(x, p, Qh, Qw):
        B, H, W, C = x.shape
        Lh, Lw, d0h, d0w = p["Lh"], p["Lw"], p["d0h"], p["d0w"]
        pad_t = max(0, -d0h)
        pad_b = max(0, (Qh - 1) + d0h + Lh - 1 - (H - 1))
        pad_l = max(0, -d0w)
        pad_r = max(0, (Qw - 1) + d0w + Lw - 1 - (W - 1))
        xp = jnp.pad(x, ((0, 0), (pad_t, pad_b), (pad_l, pad_r), (0, 0)))
        sh, sw = d0h + pad_t, d0w + pad_l
        return xp[:, sh:sh + Qh + Lh - 1, sw:sw + Qw + Lw - 1, :]

    def _deconv_forward(self, x, layer):
        B, H, W, _ = x.shape
        k, s, ph, pw = layer["k"], layer["s"], layer["ph"], layer["pw"]
        cout = layer["cout"]
        H_out = (H - 1) * s + k - 2 * ph
        W_out = (W - 1) * s + k - 2 * pw
        phases = layer["phases"]
        qs = [(len(range(p["r_h"], H_out, s)), len(range(p["r_w"], W_out, s)))
              for p in phases]

        if layer["w_stack"] is not None and H_out % s == 0 and W_out % s == 0:
            # One pallas_call for all s*s phases: grid = (s*s, M-tiles) parallel blocks.
            Qh, Qw = qs[0]
            cols = jnp.stack(
                [_im2col(self._phase_input(x, p, Qh, Qw), p["Lh"], p["Lw"], 1)[0]
                 for p in phases], axis=0)                    # (s*s, B*Qh*Qw, Keff)
            y = grouped_linear_pallas(cols, layer["w_stack"], layer["b"], relu=True)
            y = y[..., :cout].reshape(s, s, B, Qh, Qw, cout)
            # pixel shuffle: (r_h, r_w, b, qh, qw, c) -> (b, qh*s + r_h, qw*s + r_w, c)
            return jnp.transpose(y, (2, 3, 0, 4, 1, 5)).reshape(B, H_out, W_out, cout)

        # Fallback (ragged output size / degenerate taps): per-phase calls + scatter.
        out = jnp.zeros((B, H_out, W_out, cout), jnp.float32)
        for p, (Qh, Qw) in zip(phases, qs):
            if Qh <= 0 or Qw <= 0:
                continue
            if p["w2"] is None:
                yph = jnp.broadcast_to(jnp.maximum(layer["b"][0, :cout], 0.0),
                                       (B, Qh, Qw, cout))
            else:
                cols, _, _ = _im2col(self._phase_input(x, p, Qh, Qw), p["Lh"], p["Lw"], 1)
                yph = linear_pallas(cols, p["w2"], layer["b"], relu=True)
                yph = yph[:, :cout].reshape(B, Qh, Qw, cout)
            out = out.at[:, p["r_h"]::s, p["r_w"]::s, :].set(yph)
        return out

    def _bottleneck_forward(self, flat, actions):
        B, conved = flat.shape
        hid = self.hidden_dim
        bt = self.bt
        # Row gather of w_action by action index (replaces the one-hot @ w_action
        # MXU matmul); the (B, hidden) gate feeds the fused kernel directly.
        av = jnp.take(bt["wact"], actions.astype(jnp.int32), axis=0)

        def fs(shape):
            return pl.BlockSpec(shape, lambda i, n=len(shape): (0,) * n)

        return pl.pallas_call(
            _bottleneck_kernel,
            out_shape=jax.ShapeDtypeStruct((B, conved), jnp.float32),
            grid=(1,),
            in_specs=[fs((B, conved)), fs((B, hid)),
                      fs((conved, hid)), fs((1, hid)),
                      fs((hid, hid)),
                      fs((hid, hid)), fs((1, hid)),
                      fs((hid, conved)), fs((1, conved))],
            out_specs=fs((B, conved)),
            compiler_params=pltpu.CompilerParams(
                dimension_semantics=("arbitrary",),
                vmem_limit_bytes=VMEM_LIMIT),
        )(flat, av, bt["fce_w"], bt["fce_b"], bt["wenc"],
          bt["ftr_w"], bt["ftr_b"], bt["fdec_w"], bt["fdec_b"])

    def __call__(self, x_nchw, actions):
        B = x_nchw.shape[0]
        h = jnp.transpose(x_nchw, (0, 2, 3, 1)).astype(jnp.float32)   # NCHW -> NHWC
        for layer in self.enc_layers:
            h = self._conv_forward(h, layer)
        flat = h.reshape(B, -1)          # NHWC flatten; fc weights pre-permuted to match
        d = self._bottleneck_forward(flat, actions)
        h = d.reshape(B, self.Hc, self.Wc, self.C_last)
        for layer in self.dec_layers:
            h = self._deconv_forward(h, layer)
        return jnp.transpose(h, (0, 3, 1, 2))                          # NHWC -> NCHW

    # ----------------- pure-XLA f32 reference (for validation) -----------------
    def reference_forward(self, x_nchw, actions):
        x = jnp.transpose(x_nchw, (0, 2, 3, 1)).astype(jnp.float32)
        for (wt, bt), (k, s, (ph, pw)) in zip(self.conv_master, self.encoder_args):
            w_hwio = jnp.transpose(wt, (2, 3, 1, 0))
            x = lax.conv_general_dilated(x, w_hwio, (s, s), [(ph, ph), (pw, pw)],
                                         dimension_numbers=("NHWC", "HWIO", "NHWC"))
            x = jax.nn.relu(x + bt)
        B = x.shape[0]
        flat = jnp.transpose(x, (0, 3, 1, 2)).reshape(B, -1)   # NCHW flatten like PyTorch
        z = jax.nn.relu(flat @ self.fc_enc_w_m + self.fc_enc_b_m)
        onehot = jax.nn.one_hot(actions, self.action_dim, dtype=z.dtype)
        m = (z @ self.w_enc_m) * (onehot @ self.w_action_m)
        t = m @ self.fc_trans_w_m + self.fc_trans_b_m
        d = jax.nn.relu(t @ self.fc_dec_w_m + self.fc_dec_b_m)
        x = jnp.transpose(d.reshape(B, self.C_last, self.Hc, self.Wc), (0, 2, 3, 1))
        for (wt, bt), (k, s, (ph, pw)) in zip(self.deconv_master, self.decoder_args):
            cin = wt.shape[0]
            B_, Hh, Ww, _ = x.shape
            xd = jnp.zeros((B_, (Hh - 1) * s + 1, (Ww - 1) * s + 1, cin), x.dtype)
            xd = xd.at[:, ::s, ::s, :].set(x)
            xp = jnp.pad(xd, ((0, 0), (k - 1 - ph, k - 1 - ph),
                              (k - 1 - pw, k - 1 - pw), (0, 0)))
            w_hwio = jnp.transpose(wt[:, :, ::-1, ::-1], (2, 3, 0, 1))
            y = lax.conv_general_dilated(xp, w_hwio, (1, 1), "VALID",
                                         dimension_numbers=("NHWC", "HWIO", "NHWC"))
            x = jax.nn.relu(y + bt)
        return jnp.transpose(x, (0, 3, 1, 2))


if __name__ == "__main__":
    key = jax.random.PRNGKey(0)
    kx, ka, kp = jax.random.split(key, 3)

    # Small shapes consistent with the default encoder/decoder args:
    # 50x48 -> encoder spatial 22 -> 10 -> 4 -> 1; decoder inverts back to 50x48.
    B, C, H, W = 2, 4, 50, 48
    action_dim = 6

    x = jax.random.normal(kx, (B, C, H, W), jnp.float32)
    actions = jax.random.randint(ka, (B,), 0, action_dim)

    net = FFAcvpNetPallas((C, H, W), action_dim, hidden_dim=32,
                          conv_channels=(8, 16, 16, 16), key=kp)

    fwd = jax.jit(lambda xx, aa: net(xx, aa))
    out = fwd(x, actions)
    jax.block_until_ready(out)

    assert out.shape == (B, C, H, W), out.shape
    assert out.dtype == jnp.float32
    assert bool(jnp.isfinite(out).all())

    # Validate against the pure-XLA f32 reference (Pallas path uses bf16 MXU operands,
    # so allow a loose tolerance; structural bugs would show up as O(1) error).
    ref = net.reference_forward(x, actions)
    rel = float(jnp.linalg.norm(out - ref) / (jnp.linalg.norm(ref) + 1e-6))
    assert rel < 0.2, f"relative L2 error too large: {rel}"

    print("KERNEL_OK")
</pallas_src>

<mosaic_0001>
module attributes {stable_mosaic.version = 11 : i64} {
  func.func @_matmul_bias_act_kernel(%arg0: i32, %arg1: memref<968x256xf32, #tpu.memory_space<vmem>>, %arg2: memref<256x128xbf16, #tpu.memory_space<vmem>>, %arg3: memref<1x128xf32, #tpu.memory_space<vmem>>, %arg4: memref<968x128xf32, #tpu.memory_space<vmem>>) attributes {dimension_semantics = [#tpu.dimension_semantics<parallel>], iteration_bounds = array<i64: 1>, scalar_prefetch = 0 : i64, scratch_operands = 0 : i64, tpu.core_type = #tpu.core_type<tc>, window_params = [{transform_indices = @transform_0, window_bounds = array<i64: 968, 256>}, {pipeline_mode = #tpu.pipeline_mode<synchronous>, transform_indices = @transform_1, window_bounds = array<i64: 256, 128>}, {pipeline_mode = #tpu.pipeline_mode<synchronous>, transform_indices = @transform_2, window_bounds = array<i64: 1, 128>}, {transform_indices = @transform_3, window_bounds = array<i64: 968, 128>}]} {
    %c0 = arith.constant 0 : index
    %c0_0 = arith.constant 0 : index
    %0 = vector.load %arg1[%c0, %c0_0] : memref<968x256xf32, #tpu.memory_space<vmem>>, vector<968x256xf32>
    %1 = arith.truncf %0 : vector<968x256xf32> to vector<968x256xbf16>
    %c0_1 = arith.constant 0 : index
    %c0_2 = arith.constant 0 : index
    %2 = vector.load %arg2[%c0_1, %c0_2] : memref<256x128xbf16, #tpu.memory_space<vmem>>, vector<256x128xbf16>
    %cst = arith.constant dense<0.000000e+00> : vector<968x128xf32>
    %3 = tpu.matmul %1, %2, %cst {dimension_numbers = #tpu.dot_dimension_numbers<[1], [0], [0], [1], [0, 0, 1, 1], [], []>} : vector<968x256xbf16>, vector<256x128xbf16>, vector<968x128xf32> -> vector<968x128xf32>
    %c0_3 = arith.constant 0 : index
    %c0_4 = arith.constant 0 : index
    %4 = vector.load %arg3[%c0_3, %c0_4] : memref<1x128xf32, #tpu.memory_space<vmem>>, vector<1x128xf32>
    %5 = vector.broadcast %4 : vector<1x128xf32> to vector<968x128xf32>
    %6 = arith.addf %3, %5 : vector<968x128xf32>
    %cst_5 = arith.constant 0.000000e+00 : f32
    %7 = vector.broadcast %cst_5 : f32 to vector<968x128xf32>
    %8 = arith.maximumf %6, %7 : vector<968x128xf32>
    %c0_6 = arith.constant 0 : index
    %c0_7 = arith.constant 0 : index
    %9 = vector.load %arg4[%c0_6, %c0_7] : memref<968x128xf32, #tpu.memory_space<vmem>>, vector<968x128xf32>
    tpu.vector_store %arg4[%c0_6, %c0_7], %8 {strides = array<i32>} : memref<968x128xf32, #tpu.memory_space<vmem>>, vector<968x128xf32>,
    return
  }
  func.func @transform_0(%arg0: i32) -> (i32, i32) {
    %c0_i32 = arith.constant 0 : i32
    %c0_i32_0 = arith.constant 0 : i32
    return %arg0, %c0_i32 : i32, i32
  }
  func.func @transform_1(%arg0: i32) -> (i32, i32) {
    %c0_i32 = arith.constant 0 : i32
    %c0_i32_0 = arith.constant 0 : i32
    %c0_i32_1 = arith.constant 0 : i32
    return %c0_i32, %c0_i32_0 : i32, i32
  }
  func.func @transform_2(%arg0: i32) -> (i32, i32) {
    %c0_i32 = arith.constant 0 : i32
    %c0_i32_0 = arith.constant 0 : i32
    %c0_i32_1 = arith.constant 0 : i32
    return %c0_i32, %c0_i32_0 : i32, i32
  }
  func.func @transform_3(%arg0: i32) -> (i32, i32) {
    %c0_i32 = arith.constant 0 : i32
    %c0_i32_0 = arith.constant 0 : i32
    return %arg0, %c0_i32 : i32, i32
  }
}

module attributes {stable_mosaic.version = 11 : i64} {
  func.func @_matmul_bias_act_kernel(%arg0: i32, %arg1: memref<200x288xf32, #tpu.memory_space<vmem>>, %arg2: memref<288x128xbf16, #tpu.memory_space<vmem>>, %arg3: memref<1x128xf32, #tpu.memory_space<vmem>>, %arg4: memref<200x128xf32, #tpu.memory_space<vmem>>) attributes {dimension_semantics = [#tpu.dimension_semantics<parallel>], iteration_bounds = array<i64: 1>, scalar_prefetch = 0 : i64, scratch_operands = 0 : i64, tpu.core_type = #tpu.core_type<tc>, window_params = [{transform_indices = @transform_0, window_bounds = array<i64: 200, 288>}, {pipeline_mode = #tpu.pipeline_mode<synchronous>, transform_indices = @transform_1, window_bounds = array<i64: 288, 128>}, {pipeline_mode = #tpu.pipeline_mode<synchronous>, transform_indices = @transform_2, window_bounds = array<i64: 1, 128>}, {transform_indices = @transform_3, window_bounds = array<i64: 200, 128>}]} {
    %c0 = arith.constant 0 : index
    %c0_0 = arith.constant 0 : index
    %0 = vector.load %arg1[%c0, %c0_0] : memref<200x288xf32, #tpu.memory_space<vmem>>, vector<200x288xf32>
    %1 = arith.truncf %0 : vector<200x288xf32> to vector<200x288xbf16>
    %c0_1 = arith.constant 0 : index
    %c0_2 = arith.constant 0 : index
    %2 = vector.load %arg2[%c0_1, %c0_2] : memref<288x128xbf16, #tpu.memory_space<vmem>>, vector<288x128xbf16>
    %cst = arith.constant dense<0.000000e+00> : vector<200x128xf32>
    %3 = tpu.matmul %1, %2, %cst {dimension_numbers = #tpu.dot_dimension_numbers<[1], [0], [0], [1], [0, 0, 1, 1], [], []>} : vector<200x288xbf16>, vector<288x128xbf16>, vector<200x128xf32> -> vector<200x128xf32>
    %c0_3 = arith.constant 0 : index
    %c0_4 = arith.constant 0 : index
    %4 = vector.load %arg3[%c0_3, %c0_4] : memref<1x128xf32, #tpu.memory_space<vmem>>, vector<1x128xf32>
    %5 = vector.broadcast %4 : vector<1x128xf32> to vector<200x128xf32>
    %6 = arith.addf %3, %5 : vector<200x128xf32>
    %cst_5 = arith.constant 0.000000e+00 : f32
    %7 = vector.broadcast %cst_5 : f32 to vector<200x128xf32>
    %8 = arith.maximumf %6, %7 : vector<200x128xf32>
    %c0_6 = arith.constant 0 : index
    %c0_7 = arith.constant 0 : index
    %9 = vector.load %arg4[%c0_6, %c0_7] : memref<200x128xf32, #tpu.memory_space<vmem>>, vector<200x128xf32>
    tpu.vector_store %arg4[%c0_6, %c0_7], %8 {strides = array<i32>} : memref<200x128xf32, #tpu.memory_space<vmem>>, vector<200x128xf32>,
    return
  }
  func.func @transform_0(%arg0: i32) -> (i32, i32) {
    %c0_i32 = arith.constant 0 : i32
    %c0_i32_0 = arith.constant 0 : i32
    return %arg0, %c0_i32 : i32, i32
  }
  func.func @transform_1(%arg0: i32) -> (i32, i32) {
    %c0_i32 = arith.constant 0 : i32
    %c0_i32_0 = arith.constant 0 : i32
    %c0_i32_1 = arith.constant 0 : i32
    return %c0_i32, %c0_i32_0 : i32, i32
  }
  func.func @transform_2(%arg0: i32) -> (i32, i32) {
    %c0_i32 = arith.constant 0 : i32
    %c0_i32_0 = arith.constant 0 : i32
    %c0_i32_1 = arith.constant 0 : i32
    return %c0_i32, %c0_i32_0 : i32, i32
  }
  func.func @transform_3(%arg0: i32) -> (i32, i32) {
    %c0_i32 = arith.constant 0 : i32
    %c0_i32_0 = arith.constant 0 : i32
    return %arg0, %c0_i32 : i32, i32
  }
}

module attributes {stable_mosaic.version = 11 : i64} {
  func.func @_matmul_bias_act_kernel(%arg0: i32, %arg1: memref<32x576xf32, #tpu.memory_space<vmem>>, %arg2: memref<576x128xbf16, #tpu.memory_space<vmem>>, %arg3: memref<1x128xf32, #tpu.memory_space<vmem>>, %arg4: memref<32x128xf32, #tpu.memory_space<vmem>>) attributes {dimension_semantics = [#tpu.dimension_semantics<parallel>], iteration_bounds = array<i64: 1>, scalar_prefetch = 0 : i64, scratch_operands = 0 : i64, tpu.core_type = #tpu.core_type<tc>, window_params = [{transform_indices = @transform_0, window_bounds = array<i64: 32, 576>}, {pipeline_mode = #tpu.pipeline_mode<synchronous>, transform_indices = @transform_1, window_bounds = array<i64: 576, 128>}, {pipeline_mode = #tpu.pipeline_mode<synchronous>, transform_indices = @transform_2, window_bounds = array<i64: 1, 128>}, {transform_indices = @transform_3, window_bounds = array<i64: 32, 128>}]} {
    %c0 = arith.constant 0 : index
    %c0_0 = arith.constant 0 : index
    %0 = vector.load %arg1[%c0, %c0_0] : memref<32x576xf32, #tpu.memory_space<vmem>>, vector<32x576xf32>
    %1 = arith.truncf %0 : vector<32x576xf32> to vector<32x576xbf16>
    %c0_1 = arith.constant 0 : index
    %c0_2 = arith.constant 0 : index
    %2 = vector.load %arg2[%c0_1, %c0_2] : memref<576x128xbf16, #tpu.memory_space<vmem>>, vector<576x128xbf16>
    %cst = arith.constant dense<0.000000e+00> : vector<32x128xf32>
    %3 = tpu.matmul %1, %2, %cst {dimension_numbers = #tpu.dot_dimension_numbers<[1], [0], [0], [1], [0, 0, 1, 1], [], []>} : vector<32x576xbf16>, vector<576x128xbf16>, vector<32x128xf32> -> vector<32x128xf32>
    %c0_3 = arith.constant 0 : index
    %c0_4 = arith.constant 0 : index
    %4 = vector.load %arg3[%c0_3, %c0_4] : memref<1x128xf32, #tpu.memory_space<vmem>>, vector<1x128xf32>
    %5 = vector.broadcast %4 : vector<1x128xf32> to vector<32x128xf32>
    %6 = arith.addf %3, %5 : vector<32x128xf32>
    %cst_5 = arith.constant 0.000000e+00 : f32
    %7 = vector.broadcast %cst_5 : f32 to vector<32x128xf32>
    %8 = arith.maximumf %6, %7 : vector<32x128xf32>
    %c0_6 = arith.constant 0 : index
    %c0_7 = arith.constant 0 : index
    %9 = vector.load %arg4[%c0_6, %c0_7] : memref<32x128xf32, #tpu.memory_space<vmem>>, vector<32x128xf32>
    tpu.vector_store %arg4[%c0_6, %c0_7], %8 {strides = array<i32>} : memref<32x128xf32, #tpu.memory_space<vmem>>, vector<32x128xf32>,
    return
  }
  func.func @transform_0(%arg0: i32) -> (i32, i32) {
    %c0_i32 = arith.constant 0 : i32
    %c0_i32_0 = arith.constant 0 : i32
    return %arg0, %c0_i32 : i32, i32
  }
  func.func @transform_1(%arg0: i32) -> (i32, i32) {
    %c0_i32 = arith.constant 0 : i32
    %c0_i32_0 = arith.constant 0 : i32
    %c0_i32_1 = arith.constant 0 : i32
    return %c0_i32, %c0_i32_0 : i32, i32
  }
  func.func @transform_2(%arg0: i32) -> (i32, i32) {
    %c0_i32 = arith.constant 0 : i32
    %c0_i32_0 = arith.constant 0 : i32
    %c0_i32_1 = arith.constant 0 : i32
    return %c0_i32, %c0_i32_0 : i32, i32
  }
  func.func @transform_3(%arg0: i32) -> (i32, i32) {
    %c0_i32 = arith.constant 0 : i32
    %c0_i32_0 = arith.constant 0 : i32
    return %arg0, %c0_i32 : i32, i32
  }
}

module attributes {stable_mosaic.version = 11 : i64} {
  func.func @_bottleneck_kernel(%arg0: i32, %arg1: memref<2x16xf32, #tpu.memory_space<vmem>>, %arg2: memref<2x32xf32, #tpu.memory_space<vmem>>, %arg3: memref<16x32xbf16, #tpu.memory_space<vmem>>, %arg4: memref<1x32xf32, #tpu.memory_space<vmem>>, %arg5: memref<32x32xbf16, #tpu.memory_space<vmem>>, %arg6: memref<32x32xbf16, #tpu.memory_space<vmem>>, %arg7: memref<1x32xf32, #tpu.memory_space<vmem>>, %arg8: memref<32x16xbf16, #tpu.memory_space<vmem>>, %arg9: memref<1x16xf32, #tpu.memory_space<vmem>>, %arg10: memref<2x16xf32, #tpu.memory_space<vmem>>) attributes {dimension_semantics = [#tpu.dimension_semantics<arbitrary>], iteration_bounds = array<i64: 1>, scalar_prefetch = 0 : i64, scratch_operands = 0 : i64, tpu.core_type = #tpu.core_type<tc>, window_params = [{pipeline_mode = #tpu.pipeline_mode<synchronous>, transform_indices = @transform_0, window_bounds = array<i64: 2, 16>}, {pipeline_mode = #tpu.pipeline_mode<synchronous>, transform_indices = @transform_1, window_bounds = array<i64: 2, 32>}, {pipeline_mode = #tpu.pipeline_mode<synchronous>, transform_indices = @transform_2, window_bounds = array<i64: 16, 32>}, {pipeline_mode = #tpu.pipeline_mode<synchronous>, transform_indices = @transform_3, window_bounds = array<i64: 1, 32>}, {pipeline_mode = #tpu.pipeline_mode<synchronous>, transform_indices = @transform_4, window_bounds = array<i64: 32, 32>}, {pipeline_mode = #tpu.pipeline_mode<synchronous>, transform_indices = @transform_5, window_bounds = array<i64: 32, 32>}, {pipeline_mode = #tpu.pipeline_mode<synchronous>, transform_indices = @transform_6, window_bounds = array<i64: 1, 32>}, {pipeline_mode = #tpu.pipeline_mode<synchronous>, transform_indices = @transform_7, window_bounds = array<i64: 32, 16>}, {pipeline_mode = #tpu.pipeline_mode<synchronous>, transform_indices = @transform_8, window_bounds = array<i64: 1, 16>}, {pipeline_mode = #tpu.pipeline_mode<synchronous>, transform_indices = @transform_9, window_bounds = array<i64: 2, 16>}]} {
    %c0 = arith.constant 0 : index
    %c0_0 = arith.constant 0 : index
    %0 = vector.load %arg1[%c0, %c0_0] : memref<2x16xf32, #tpu.memory_space<vmem>>, vector<2x16xf32>
    %1 = arith.truncf %0 : vector<2x16xf32> to vector<2x16xbf16>
    %c0_1 = arith.constant 0 : index
    %c0_2 = arith.constant 0 : index
    %2 = vector.load %arg3[%c0_1, %c0_2] : memref<16x32xbf16, #tpu.memory_space<vmem>>, vector<16x32xbf16>
    %cst = arith.constant dense<0.000000e+00> : vector<2x32xf32>
    %3 = tpu.matmul %1, %2, %cst {dimension_numbers = #tpu.dot_dimension_numbers<[1], [0], [0], [1], [0, 0, 1, 1], [], []>} : vector<2x16xbf16>, vector<16x32xbf16>, vector<2x32xf32> -> vector<2x32xf32>
    %c0_3 = arith.constant 0 : index
    %c0_4 = arith.constant 0 : index
    %4 = vector.load %arg4[%c0_3, %c0_4] : memref<1x32xf32, #tpu.memory_space<vmem>>, vector<1x32xf32>
    %5 = vector.broadcast %4 : vector<1x32xf32> to vector<2x32xf32>
    %6 = arith.addf %3, %5 : vector<2x32xf32>
    %cst_5 = arith.constant 0.000000e+00 : f32
    %7 = vector.broadcast %cst_5 : f32 to vector<2x32xf32>
    %8 = arith.maximumf %6, %7 : vector<2x32xf32>
    %9 = arith.truncf %8 : vector<2x32xf32> to vector<2x32xbf16>
    %c0_6 = arith.constant 0 : index
    %c0_7 = arith.constant 0 : index
    %10 = vector.load %arg5[%c0_6, %c0_7] : memref<32x32xbf16, #tpu.memory_space<vmem>>, vector<32x32xbf16>
    %cst_8 = arith.constant dense<0.000000e+00> : vector<2x32xf32>
    %11 = tpu.matmul %9, %10, %cst_8 {dimension_numbers = #tpu.dot_dimension_numbers<[1], [0], [0], [1], [0, 0, 1, 1], [], []>} : vector<2x32xbf16>, vector<32x32xbf16>, vector<2x32xf32> -> vector<2x32xf32>
    %c0_9 = arith.constant 0 : index
    %c0_10 = arith.constant 0 : index
    %12 = vector.load %arg2[%c0_9, %c0_10] : memref<2x32xf32, #tpu.memory_space<vmem>>, vector<2x32xf32>
    %13 = arith.mulf %11, %12 : vector<2x32xf32>
    %14 = arith.truncf %13 : vector<2x32xf32> to vector<2x32xbf16>
    %c0_11 = arith.constant 0 : index
    %c0_12 = arith.constant 0 : index
    %15 = vector.load %arg6[%c0_11, %c0_12] : memref<32x32xbf16, #tpu.memory_space<vmem>>, vector<32x32xbf16>
    %cst_13 = arith.constant dense<0.000000e+00> : vector<2x32xf32>
    %16 = tpu.matmul %14, %15, %cst_13 {dimension_numbers = #tpu.dot_dimension_numbers<[1], [0], [0], [1], [0, 0, 1, 1], [], []>} : vector<2x32xbf16>, vector<32x32xbf16>, vector<2x32xf32> -> vector<2x32xf32>
    %c0_14 = arith.constant 0 : index
    %c0_15 = arith.constant 0 : index
    %17 = vector.load %arg7[%c0_14, %c0_15] : memref<1x32xf32, #tpu.memory_space<vmem>>, vector<1x32xf32>
    %18 = vector.broadcast %17 : vector<1x32xf32> to vector<2x32xf32>
    %19 = arith.addf %16, %18 : vector<2x32xf32>
    %20 = arith.truncf %19 : vector<2x32xf32> to vector<2x32xbf16>
    %c0_16 = arith.constant 0 : index
    %c0_17 = arith.constant 0 : index
    %21 = vector.load %arg8[%c0_16, %c0_17] : memref<32x16xbf16, #tpu.memory_space<vmem>>, vector<32x16xbf16>
    %cst_18 = arith.constant dense<0.000000e+00> : vector<2x16xf32>
    %22 = tpu.matmul %20, %21, %cst_18 {dimension_numbers = #tpu.dot_dimension_numbers<[1], [0], [0], [1], [0, 0, 1, 1], [], []>} : vector<2x32xbf16>, vector<32x16xbf16>, vector<2x16xf32> -> vector<2x16xf32>
    %c0_19 = arith.constant 0 : index
    %c0_20 = arith.constant 0 : index
    %23 = vector.load %arg9[%c0_19, %c0_20] : memref<1x16xf32, #tpu.memory_space<vmem>>, vector<1x16xf32>
    %24 = vector.broadcast %23 : vector<1x16xf32> to vector<2x16xf32>
    %25 = arith.addf %22, %24 : vector<2x16xf32>
    %cst_21 = arith.constant 0.000000e+00 : f32
    %26 = vector.broadcast %cst_21 : f32 to vector<2x16xf32>
    %27 = arith.maximumf %25, %26 : vector<2x16xf32>
    %c0_22 = arith.constant 0 : index
    %c0_23 = arith.constant 0 : index
    %28 = vector.load %arg10[%c0_22, %c0_23] : memref<2x16xf32, #tpu.memory_space<vmem>>, vector<2x16xf32>
    tpu.vector_store %arg10[%c0_22, %c0_23], %27 {strides = array<i32>} : memref<2x16xf32, #tpu.memory_space<vmem>>, vector<2x16xf32>,
    return
  }
  func.func @transform_0(%arg0: i32) -> (i32, i32) {
    %c0_i32 = arith.constant 0 : i32
    %c0_i32_0 = arith.constant 0 : i32
    %c0_i32_1 = arith.constant 0 : i32
    return %c0_i32, %c0_i32_0 : i32, i32
  }
  func.func @transform_1(%arg0: i32) -> (i32, i32) {
    %c0_i32 = arith.constant 0 : i32
    %c0_i32_0 = arith.constant 0 : i32
    %c0_i32_1 = arith.constant 0 : i32
    return %c0_i32, %c0_i32_0 : i32, i32
  }
  func.func @transform_2(%arg0: i32) -> (i32, i32) {
    %c0_i32 = arith.constant 0 : i32
    %c0_i32_0 = arith.constant 0 : i32
    %c0_i32_1 = arith.constant 0 : i32
    return %c0_i32, %c0_i32_0 : i32, i32
  }
  func.func @transform_3(%arg0: i32) -> (i32, i32) {
    %c0_i32 = arith.constant 0 : i32
    %c0_i32_0 = arith.constant 0 : i32
    %c0_i32_1 = arith.constant 0 : i32
    return %c0_i32, %c0_i32_0 : i32, i32
  }
  func.func @transform_4(%arg0: i32) -> (i32, i32) {
    %c0_i32 = arith.constant 0 : i32
    %c0_i32_0 = arith.constant 0 : i32
    %c0_i32_1 = arith.constant 0 : i32
    return %c0_i32, %c0_i32_0 : i32, i32
  }
  func.func @transform_5(%arg0: i32) -> (i32, i32) {
    %c0_i32 = arith.constant 0 : i32
    %c0_i32_0 = arith.constant 0 : i32
    %c0_i32_1 = arith.constant 0 : i32
    return %c0_i32, %c0_i32_0 : i32, i32
  }
  func.func @transform_6(%arg0: i32) -> (i32, i32) {
    %c0_i32 = arith.constant 0 : i32
    %c0_i32_0 = arith.constant 0 : i32
    %c0_i32_1 = arith.constant 0 : i32
    return %c0_i32, %c0_i32_0 : i32, i32
  }
  func.func @transform_7(%arg0: i32) -> (i32, i32) {
    %c0_i32 = arith.constant 0 : i32
    %c0_i32_0 = arith.constant 0 : i32
    %c0_i32_1 = arith.constant 0 : i32
    return %c0_i32, %c0_i32_0 : i32, i32
  }
  func.func @transform_8(%arg0: i32) -> (i32, i32) {
    %c0_i32 = arith.constant 0 : i32
    %c0_i32_0 = arith.constant 0 : i32
    %c0_i32_1 = arith.constant 0 : i32
    return %c0_i32, %c0_i32_0 : i32, i32
  }
  func.func @transform_9(%arg0: i32) -> (i32, i32) {
    %c0_i32 = arith.constant 0 : i32
    %c0_i32_0 = arith.constant 0 : i32
    %c0_i32_1 = arith.constant 0 : i32
    return %c0_i32, %c0_i32_0 : i32, i32
  }
}

module attributes {stable_mosaic.version = 11 : i64} {
  func.func @_matmul_bias_act_kernel(%arg0: i32, %arg1: memref<2x256xf32, #tpu.memory_space<vmem>>, %arg2: memref<256x128xbf16, #tpu.memory_space<vmem>>, %arg3: memref<1x128xf32, #tpu.memory_space<vmem>>, %arg4: memref<2x128xf32, #tpu.memory_space<vmem>>) attributes {dimension_semantics = [#tpu.dimension_semantics<parallel>], iteration_bounds = array<i64: 1>, scalar_prefetch = 0 : i64, scratch_operands = 0 : i64, tpu.core_type = #tpu.core_type<tc>, window_params = [{transform_indices = @transform_0, window_bounds = array<i64: 2, 256>}, {pipeline_mode = #tpu.pipeline_mode<synchronous>, transform_indices = @transform_1, window_bounds = array<i64: 256, 128>}, {pipeline_mode = #tpu.pipeline_mode<synchronous>, transform_indices = @transform_2, window_bounds = array<i64: 1, 128>}, {transform_indices = @transform_3, window_bounds = array<i64: 2, 128>}]} {
    %c0 = arith.constant 0 : index
    %c0_0 = arith.constant 0 : index
    %0 = vector.load %arg1[%c0, %c0_0] : memref<2x256xf32, #tpu.memory_space<vmem>>, vector<2x256xf32>
    %1 = arith.truncf %0 : vector<2x256xf32> to vector<2x256xbf16>
    %c0_1 = arith.constant 0 : index
    %c0_2 = arith.constant 0 : index
    %2 = vector.load %arg2[%c0_1, %c0_2] : memref<256x128xbf16, #tpu.memory_space<vmem>>, vector<256x128xbf16>
    %cst = arith.constant dense<0.000000e+00> : vector<2x128xf32>
    %3 = tpu.matmul %1, %2, %cst {dimension_numbers = #tpu.dot_dimension_numbers<[1], [0], [0], [1], [0, 0, 1, 1], [], []>} : vector<2x256xbf16>, vector<256x128xbf16>, vector<2x128xf32> -> vector<2x128xf32>
    %c0_3 = arith.constant 0 : index
    %c0_4 = arith.constant 0 : index
    %4 = vector.load %arg3[%c0_3, %c0_4] : memref<1x128xf32, #tpu.memory_space<vmem>>, vector<1x128xf32>
    %5 = vector.broadcast %4 : vector<1x128xf32> to vector<2x128xf32>
    %6 = arith.addf %3, %5 : vector<2x128xf32>
    %cst_5 = arith.constant 0.000000e+00 : f32
    %7 = vector.broadcast %cst_5 : f32 to vector<2x128xf32>
    %8 = arith.maximumf %6, %7 : vector<2x128xf32>
    %c0_6 = arith.constant 0 : index
    %c0_7 = arith.constant 0 : index
    %9 = vector.load %arg4[%c0_6, %c0_7] : memref<2x128xf32, #tpu.memory_space<vmem>>, vector<2x128xf32>
    tpu.vector_store %arg4[%c0_6, %c0_7], %8 {strides = array<i32>} : memref<2x128xf32, #tpu.memory_space<vmem>>, vector<2x128xf32>,
    return
  }
  func.func @transform_0(%arg0: i32) -> (i32, i32) {
    %c0_i32 = arith.constant 0 : i32
    %c0_i32_0 = arith.constant 0 : i32
    return %arg0, %c0_i32 : i32, i32
  }
  func.func @transform_1(%arg0: i32) -> (i32, i32) {
    %c0_i32 = arith.constant 0 : i32
    %c0_i32_0 = arith.constant 0 : i32
    %c0_i32_1 = arith.constant 0 : i32
    return %c0_i32, %c0_i32_0 : i32, i32
  }
  func.func @transform_2(%arg0: i32) -> (i32, i32) {
    %c0_i32 = arith.constant 0 : i32
    %c0_i32_0 = arith.constant 0 : i32
    %c0_i32_1 = arith.constant 0 : i32
    return %c0_i32, %c0_i32_0 : i32, i32
  }
  func.func @transform_3(%arg0: i32) -> (i32, i32) {
    %c0_i32 = arith.constant 0 : i32
    %c0_i32_0 = arith.constant 0 : i32
    return %arg0, %c0_i32 : i32, i32
  }
}

module attributes {stable_mosaic.version = 11 : i64} {
  func.func @_grouped_matmul_bias_act_kernel(%arg0: i32, %arg1: i32, %arg2: memref<1x8x64xf32, #tpu.memory_space<vmem>>, %arg3: memref<1x64x128xbf16, #tpu.memory_space<vmem>>, %arg4: memref<1x128xf32, #tpu.memory_space<vmem>>, %arg5: memref<1x8x128xf32, #tpu.memory_space<vmem>>) attributes {dimension_semantics = [#tpu.dimension_semantics<parallel>, #tpu.dimension_semantics<parallel>], iteration_bounds = array<i64: 4, 1>, scalar_prefetch = 0 : i64, scratch_operands = 0 : i64, tpu.core_type = #tpu.core_type<tc>, window_params = [{transform_indices = @transform_0, window_bounds = array<i64: 1, 8, 64>}, {transform_indices = @transform_1, window_bounds = array<i64: 1, 64, 128>}, {pipeline_mode = #tpu.pipeline_mode<synchronous>, transform_indices = @transform_2, window_bounds = array<i64: 1, 128>}, {transform_indices = @transform_3, window_bounds = array<i64: 1, 8, 128>}]} {
    %c0 = arith.constant 0 : index
    %c0_0 = arith.constant 0 : index
    %c0_1 = arith.constant 0 : index
    %0 = vector.load %arg2[%c0, %c0_0, %c0_1] : memref<1x8x64xf32, #tpu.memory_space<vmem>>, vector<1x8x64xf32>
    %1 = vector.shape_cast %0 : vector<1x8x64xf32> to vector<8x64xf32>
    %2 = arith.truncf %1 : vector<8x64xf32> to vector<8x64xbf16>
    %c0_2 = arith.constant 0 : index
    %c0_3 = arith.constant 0 : index
    %c0_4 = arith.constant 0 : index
    %3 = vector.load %arg3[%c0_2, %c0_3, %c0_4] : memref<1x64x128xbf16, #tpu.memory_space<vmem>>, vector<1x64x128xbf16>
    %4 = vector.shape_cast %3 : vector<1x64x128xbf16> to vector<64x128xbf16>
    %cst = arith.constant dense<0.000000e+00> : vector<8x128xf32>
    %5 = tpu.matmul %2, %4, %cst {dimension_numbers = #tpu.dot_dimension_numbers<[1], [0], [0], [1], [0, 0, 1, 1], [], []>} : vector<8x64xbf16>, vector<64x128xbf16>, vector<8x128xf32> -> vector<8x128xf32>
    %c0_5 = arith.constant 0 : index
    %c0_6 = arith.constant 0 : index
    %6 = vector.load %arg4[%c0_5, %c0_6] : memref<1x128xf32, #tpu.memory_space<vmem>>, vector<1x128xf32>
    %7 = vector.broadcast %6 : vector<1x128xf32> to vector<8x128xf32>
    %8 = arith.addf %5, %7 : vector<8x128xf32>
    %cst_7 = arith.constant 0.000000e+00 : f32
    %9 = vector.broadcast %cst_7 : f32 to vector<8x128xf32>
    %10 = arith.maximumf %8, %9 : vector<8x128xf32>
    %c0_8 = arith.constant 0 : index
    %c0_9 = arith.constant 0 : index
    %c0_10 = arith.constant 0 : index
    %11 = vector.load %arg5[%c0_8, %c0_9, %c0_10] : memref<1x8x128xf32, #tpu.memory_space<vmem>>, vector<1x8x128xf32>
    %12 = vector.shape_cast %11 : vector<1x8x128xf32> to vector<8x128xf32>
    %13 = vector.shape_cast %10 : vector<8x128xf32> to vector<1x8x128xf32>
    tpu.vector_store %arg5[%c0_8, %c0_9, %c0_10], %13 {strides = array<i32>} : memref<1x8x128xf32, #tpu.memory_space<vmem>>, vector<1x8x128xf32>,
    return
  }
  func.func @transform_0(%arg0: i32, %arg1: i32) -> (i32, i32, i32) {
    %c0_i32 = arith.constant 0 : i32
    %c0_i32_0 = arith.constant 0 : i32
    return %arg0, %arg1, %c0_i32 : i32, i32, i32
  }
  func.func @transform_1(%arg0: i32, %arg1: i32) -> (i32, i32, i32) {
    %c0_i32 = arith.constant 0 : i32
    %c0_i32_0 = arith.constant 0 : i32
    %c0_i32_1 = arith.constant 0 : i32
    return %arg0, %c0_i32, %c0_i32_0 : i32, i32, i32
  }
  func.func @transform_2(%arg0: i32, %arg1: i32) -> (i32, i32) {
    %c0_i32 = arith.constant 0 : i32
    %c0_i32_0 = arith.constant 0 : i32
    %c0_i32_1 = arith.constant 0 : i32
    return %c0_i32, %c0_i32_0 : i32, i32
  }
  func.func @transform_3(%arg0: i32, %arg1: i32) -> (i32, i32, i32) {
    %c0_i32 = arith.constant 0 : i32
    %c0_i32_0 = arith.constant 0 : i32
    return %arg0, %arg1, %c0_i32 : i32, i32, i32
  }
}

module attributes {stable_mosaic.version = 11 : i64} {
  func.func @_grouped_matmul_bias_act_kernel(%arg0: i32, %arg1: i32, %arg2: memref<1x50x144xf32, #tpu.memory_space<vmem>>, %arg3: memref<1x144x128xbf16, #tpu.memory_space<vmem>>, %arg4: memref<1x128xf32, #tpu.memory_space<vmem>>, %arg5: memref<1x50x128xf32, #tpu.memory_space<vmem>>) attributes {dimension_semantics = [#tpu.dimension_semantics<parallel>, #tpu.dimension_semantics<parallel>], iteration_bounds = array<i64: 4, 1>, scalar_prefetch = 0 : i64, scratch_operands = 0 : i64, tpu.core_type = #tpu.core_type<tc>, window_params = [{transform_indices = @transform_0, window_bounds = array<i64: 1, 50, 144>}, {transform_indices = @transform_1, window_bounds = array<i64: 1, 144, 128>}, {pipeline_mode = #tpu.pipeline_mode<synchronous>, transform_indices = @transform_2, window_bounds = array<i64: 1, 128>}, {transform_indices = @transform_3, window_bounds = array<i64: 1, 50, 128>}]} {
    %c0 = arith.constant 0 : index
    %c0_0 = arith.constant 0 : index
    %c0_1 = arith.constant 0 : index
    %0 = vector.load %arg2[%c0, %c0_0, %c0_1] : memref<1x50x144xf32, #tpu.memory_space<vmem>>, vector<1x50x144xf32>
    %1 = vector.shape_cast %0 : vector<1x50x144xf32> to vector<50x144xf32>
    %2 = arith.truncf %1 : vector<50x144xf32> to vector<50x144xbf16>
    %c0_2 = arith.constant 0 : index
    %c0_3 = arith.constant 0 : index
    %c0_4 = arith.constant 0 : index
    %3 = vector.load %arg3[%c0_2, %c0_3, %c0_4] : memref<1x144x128xbf16, #tpu.memory_space<vmem>>, vector<1x144x128xbf16>
    %4 = vector.shape_cast %3 : vector<1x144x128xbf16> to vector<144x128xbf16>
    %cst = arith.constant dense<0.000000e+00> : vector<50x128xf32>
    %5 = tpu.matmul %2, %4, %cst {dimension_numbers = #tpu.dot_dimension_numbers<[1], [0], [0], [1], [0, 0, 1, 1], [], []>} : vector<50x144xbf16>, vector<144x128xbf16>, vector<50x128xf32> -> vector<50x128xf32>
    %c0_5 = arith.constant 0 : index
    %c0_6 = arith.constant 0 : index
    %6 = vector.load %arg4[%c0_5, %c0_6] : memref<1x128xf32, #tpu.memory_space<vmem>>, vector<1x128xf32>
    %7 = vector.broadcast %6 : vector<1x128xf32> to vector<50x128xf32>
    %8 = arith.addf %5, %7 : vector<50x128xf32>
    %cst_7 = arith.constant 0.000000e+00 : f32
    %9 = vector.broadcast %cst_7 : f32 to vector<50x128xf32>
    %10 = arith.maximumf %8, %9 : vector<50x128xf32>
    %c0_8 = arith.constant 0 : index
    %c0_9 = arith.constant 0 : index
    %c0_10 = arith.constant 0 : index
    %11 = vector.load %arg5[%c0_8, %c0_9, %c0_10] : memref<1x50x128xf32, #tpu.memory_space<vmem>>, vector<1x50x128xf32>
    %12 = vector.shape_cast %11 : vector<1x50x128xf32> to vector<50x128xf32>
    %13 = vector.shape_cast %10 : vector<50x128xf32> to vector<1x50x128xf32>
    tpu.vector_store %arg5[%c0_8, %c0_9, %c0_10], %13 {strides = array<i32>} : memref<1x50x128xf32, #tpu.memory_space<vmem>>, vector<1x50x128xf32>,
    return
  }
  func.func @transform_0(%arg0: i32, %arg1: i32) -> (i32, i32, i32) {
    %c0_i32 = arith.constant 0 : i32
    %c0_i32_0 = arith.constant 0 : i32
    return %arg0, %arg1, %c0_i32 : i32, i32, i32
  }
  func.func @transform_1(%arg0: i32, %arg1: i32) -> (i32, i32, i32) {
    %c0_i32 = arith.constant 0 : i32
    %c0_i32_0 = arith.constant 0 : i32
    %c0_i32_1 = arith.constant 0 : i32
    return %arg0, %c0_i32, %c0_i32_0 : i32, i32, i32
  }
  func.func @transform_2(%arg0: i32, %arg1: i32) -> (i32, i32) {
    %c0_i32 = arith.constant 0 : i32
    %c0_i32_0 = arith.constant 0 : i32
    %c0_i32_1 = arith.constant 0 : i32
    return %c0_i32, %c0_i32_0 : i32, i32
  }
  func.func @transform_3(%arg0: i32, %arg1: i32) -> (i32, i32, i32) {
    %c0_i32 = arith.constant 0 : i32
    %c0_i32_0 = arith.constant 0 : i32
    return %arg0, %arg1, %c0_i32 : i32, i32, i32
  }
}

module attributes {stable_mosaic.version = 11 : i64} {
  func.func @_grouped_matmul_bias_act_kernel(%arg0: i32, %arg1: i32, %arg2: memref<1x242x144xf32, #tpu.memory_space<vmem>>, %arg3: memref<1x144x128xbf16, #tpu.memory_space<vmem>>, %arg4: memref<1x128xf32, #tpu.memory_space<vmem>>, %arg5: memref<1x242x128xf32, #tpu.memory_space<vmem>>) attributes {dimension_semantics = [#tpu.dimension_semantics<parallel>, #tpu.dimension_semantics<parallel>], iteration_bounds = array<i64: 4, 1>, scalar_prefetch = 0 : i64, scratch_operands = 0 : i64, tpu.core_type = #tpu.core_type<tc>, window_params = [{transform_indices = @transform_0, window_bounds = array<i64: 1, 242, 144>}, {transform_indices = @transform_1, window_bounds = array<i64: 1, 144, 128>}, {pipeline_mode = #tpu.pipeline_mode<synchronous>, transform_indices = @transform_2, window_bounds = array<i64: 1, 128>}, {transform_indices = @transform_3, window_bounds = array<i64: 1, 242, 128>}]} {
    %c0 = arith.constant 0 : index
    %c0_0 = arith.constant 0 : index
    %c0_1 = arith.constant 0 : index
    %0 = vector.load %arg2[%c0, %c0_0, %c0_1] : memref<1x242x144xf32, #tpu.memory_space<vmem>>, vector<1x242x144xf32>
    %1 = vector.shape_cast %0 : vector<1x242x144xf32> to vector<242x144xf32>
    %2 = arith.truncf %1 : vector<242x144xf32> to vector<242x144xbf16>
    %c0_2 = arith.constant 0 : index
    %c0_3 = arith.constant 0 : index
    %c0_4 = arith.constant 0 : index
    %3 = vector.load %arg3[%c0_2, %c0_3, %c0_4] : memref<1x144x128xbf16, #tpu.memory_space<vmem>>, vector<1x144x128xbf16>
    %4 = vector.shape_cast %3 : vector<1x144x128xbf16> to vector<144x128xbf16>
    %cst = arith.constant dense<0.000000e+00> : vector<242x128xf32>
    %5 = tpu.matmul %2, %4, %cst {dimension_numbers = #tpu.dot_dimension_numbers<[1], [0], [0], [1], [0, 0, 1, 1], [], []>} : vector<242x144xbf16>, vector<144x128xbf16>, vector<242x128xf32> -> vector<242x128xf32>
    %c0_5 = arith.constant 0 : index
    %c0_6 = arith.constant 0 : index
    %6 = vector.load %arg4[%c0_5, %c0_6] : memref<1x128xf32, #tpu.memory_space<vmem>>, vector<1x128xf32>
    %7 = vector.broadcast %6 : vector<1x128xf32> to vector<242x128xf32>
    %8 = arith.addf %5, %7 : vector<242x128xf32>
    %cst_7 = arith.constant 0.000000e+00 : f32
    %9 = vector.broadcast %cst_7 : f32 to vector<242x128xf32>
    %10 = arith.maximumf %8, %9 : vector<242x128xf32>
    %c0_8 = arith.constant 0 : index
    %c0_9 = arith.constant 0 : index
    %c0_10 = arith.constant 0 : index
    %11 = vector.load %arg5[%c0_8, %c0_9, %c0_10] : memref<1x242x128xf32, #tpu.memory_space<vmem>>, vector<1x242x128xf32>
    %12 = vector.shape_cast %11 : vector<1x242x128xf32> to vector<242x128xf32>
    %13 = vector.shape_cast %10 : vector<242x128xf32> to vector<1x242x128xf32>
    tpu.vector_store %arg5[%c0_8, %c0_9, %c0_10], %13 {strides = array<i32>} : memref<1x242x128xf32, #tpu.memory_space<vmem>>, vector<1x242x128xf32>,
    return
  }
  func.func @transform_0(%arg0: i32, %arg1: i32) -> (i32, i32, i32) {
    %c0_i32 = arith.constant 0 : i32
    %c0_i32_0 = arith.constant 0 : i32
    return %arg0, %arg1, %c0_i32 : i32, i32, i32
  }
  func.func @transform_1(%arg0: i32, %arg1: i32) -> (i32, i32, i32) {
    %c0_i32 = arith.constant 0 : i32
    %c0_i32_0 = arith.constant 0 : i32
    %c0_i32_1 = arith.constant 0 : i32
    return %arg0, %c0_i32, %c0_i32_0 : i32, i32, i32
  }
  func.func @transform_2(%arg0: i32, %arg1: i32) -> (i32, i32) {
    %c0_i32 = arith.constant 0 : i32
    %c0_i32_0 = arith.constant 0 : i32
    %c0_i32_1 = arith.constant 0 : i32
    return %c0_i32, %c0_i32_0 : i32, i32
  }
  func.func @transform_3(%arg0: i32, %arg1: i32) -> (i32, i32, i32) {
    %c0_i32 = arith.constant 0 : i32
    %c0_i32_0 = arith.constant 0 : i32
    return %arg0, %arg1, %c0_i32 : i32, i32, i32
  }
}

module attributes {stable_mosaic.version = 11 : i64} {
  func.func @_grouped_matmul_bias_act_kernel(%arg0: i32, %arg1: i32, %arg2: memref<1x600x128xf32, #tpu.memory_space<vmem>>, %arg3: memref<1x128x128xbf16, #tpu.memory_space<vmem>>, %arg4: memref<1x128xf32, #tpu.memory_space<vmem>>, %arg5: memref<1x600x128xf32, #tpu.memory_space<vmem>>) attributes {dimension_semantics = [#tpu.dimension_semantics<parallel>, #tpu.dimension_semantics<parallel>], iteration_bounds = array<i64: 4, 2>, scalar_prefetch = 0 : i64, scratch_operands = 0 : i64, tpu.core_type = #tpu.core_type<tc>, window_params = [{transform_indices = @transform_0, window_bounds = array<i64: 1, 600, 128>}, {transform_indices = @transform_1, window_bounds = array<i64: 1, 128, 128>}, {pipeline_mode = #tpu.pipeline_mode<synchronous>, transform_indices = @transform_2, window_bounds = array<i64: 1, 128>}, {transform_indices = @transform_3, window_bounds = array<i64: 1, 600, 128>}]} {
    %c0 = arith.constant 0 : index
    %c0_0 = arith.constant 0 : index
    %c0_1 = arith.constant 0 : index
    %0 = vector.load %arg2[%c0, %c0_0, %c0_1] : memref<1x600x128xf32, #tpu.memory_space<vmem>>, vector<1x600x128xf32>
    %1 = vector.shape_cast %0 : vector<1x600x128xf32> to vector<600x128xf32>
    %2 = arith.truncf %1 : vector<600x128xf32> to vector<600x128xbf16>
    %c0_2 = arith.constant 0 : index
    %c0_3 = arith.constant 0 : index
    %c0_4 = arith.constant 0 : index
    %3 = vector.load %arg3[%c0_2, %c0_3, %c0_4] : memref<1x128x128xbf16, #tpu.memory_space<vmem>>, vector<1x128x128xbf16>
    %4 = vector.shape_cast %3 : vector<1x128x128xbf16> to vector<128x128xbf16>
    %cst = arith.constant dense<0.000000e+00> : vector<600x128xf32>
    %5 = tpu.matmul %2, %4, %cst {dimension_numbers = #tpu.dot_dimension_numbers<[1], [0], [0], [1], [0, 0, 1, 1], [], []>} : vector<600x128xbf16>, vector<128x128xbf16>, vector<600x128xf32> -> vector<600x128xf32>
    %c0_5 = arith.constant 0 : index
    %c0_6 = arith.constant 0 : index
    %6 = vector.load %arg4[%c0_5, %c0_6] : memref<1x128xf32, #tpu.memory_space<vmem>>, vector<1x128xf32>
    %7 = vector.broadcast %6 : vector<1x128xf32> to vector<600x128xf32>
    %8 = arith.addf %5, %7 : vector<600x128xf32>
    %cst_7 = arith.constant 0.000000e+00 : f32
    %9 = vector.broadcast %cst_7 : f32 to vector<600x128xf32>
    %10 = arith.maximumf %8, %9 : vector<600x128xf32>
    %c0_8 = arith.constant 0 : index
    %c0_9 = arith.constant 0 : index
    %c0_10 = arith.constant 0 : index
    %11 = vector.load %arg5[%c0_8, %c0_9, %c0_10] : memref<1x600x128xf32, #tpu.memory_space<vmem>>, vector<1x600x128xf32>
    %12 = vector.shape_cast %11 : vector<1x600x128xf32> to vector<600x128xf32>
    %13 = vector.shape_cast %10 : vector<600x128xf32> to vector<1x600x128xf32>
    tpu.vector_store %arg5[%c0_8, %c0_9, %c0_10], %13 {strides = array<i32>} : memref<1x600x128xf32, #tpu.memory_space<vmem>>, vector<1x600x128xf32>,
    return
  }
  func.func @transform_0(%arg0: i32, %arg1: i32) -> (i32, i32, i32) {
    %c0_i32 = arith.constant 0 : i32
    %c0_i32_0 = arith.constant 0 : i32
    return %arg0, %arg1, %c0_i32 : i32, i32, i32
  }
  func.func @transform_1(%arg0: i32, %arg1: i32) -> (i32, i32, i32) {
    %c0_i32 = arith.constant 0 : i32
    %c0_i32_0 = arith.constant 0 : i32
    %c0_i32_1 = arith.constant 0 : i32
    return %arg0, %c0_i32, %c0_i32_0 : i32, i32, i32
  }
  func.func @transform_2(%arg0: i32, %arg1: i32) -> (i32, i32) {
    %c0_i32 = arith.constant 0 : i32
    %c0_i32_0 = arith.constant 0 : i32
    %c0_i32_1 = arith.constant 0 : i32
    return %c0_i32, %c0_i32_0 : i32, i32
  }
  func.func @transform_3(%arg0: i32, %arg1: i32) -> (i32, i32, i32) {
    %c0_i32 = arith.constant 0 : i32
    %c0_i32_0 = arith.constant 0 : i32
    return %arg0, %arg1, %c0_i32 : i32, i32, i32
  }
}

</mosaic_0001>

<llo_original>
// kernel: _lambda_.9
$region0: #{_lambda_.9}
  #allocation0 [shape = 'u32[]', space=smem, size = 0x4, offset = 0x4, fixed_abs, tag = 'smem constant byte address 0x4 - core index']
  #allocation1 [shape = 'u32[72,128]{1,0:T(1,128)}', space=vmem, size = 0x9000, scoped, tag = 'internal scratch']
  %s0 = inlined_call_operand.vmem [shape: f32[968,256], index: 0, kind: input, shape index: {}]
  %s1 = inlined_call_operand.vmem [shape: bf16[256,128], index: 1, kind: input, shape index: {}]
  %s2 = inlined_call_operand.vmem [shape: f32[1,128], index: 2, kind: input, shape index: {}]
  %s3 = inlined_call_operand.vmem [shape: f32[968,128], index: 3, kind: output, shape index: {}]
  %s4 = sld [smem:[#allocation0]]
  $region22: #{_lambda_.9} parent=0
    _
  %s6 = ssub.s32 1, %s4
  %s7 = scalar_select 0, %s6, %s4
  // Predicated region
  $region2: #{_lambda_.9} parent=0 // pred_check
    _
  $region3: #{_lambda_.9} parent=0 // pred_check_branch
    %9 = sbr.rel (0) target = $region5
  $region4: #{_lambda_.9} parent=0 // pred_region
    _
  $region5: #{_lambda_.9} parent=0 // pred_fallthru
    _
  // Predicated region
  $region6: #{_lambda_.9} parent=0 // pred_check
    _
  $region7: #{_lambda_.9} parent=0 // pred_check_branch
    %11 = sbr.rel (0) target = $region9
  $region8: #{_lambda_.9} parent=0 // pred_region
    _
  $region9: #{_lambda_.9} parent=0 // pred_fallthru
    _
  // Predicated region
  $region10: #{_lambda_.9} parent=0 // pred_check
    _
  $region11: #{_lambda_.9} parent=0 // pred_check_branch
    %13 = sbr.rel (0) target = $region13
  $region12: #{_lambda_.9} parent=0 // pred_region
    _
  $region13: #{_lambda_.9} parent=0 // pred_fallthru
    _
  %v14 = vld [vmem:[%s0] sm:$0xff]
  %v15 = vld [vmem:[%s0 + $0x8] sm:$0xff]
  %v16 = vld [vmem:[%s0 + $0x10] sm:$0xff]
  %v17 = vld [vmem:[%s0 + $0x18] sm:$0xff]
  %v18 = vld [vmem:[%s0 + $0x20] sm:$0xff]
  %v19 = vld [vmem:[%s0 + $0x28] sm:$0xff]
  %v20 = vld [vmem:[%s0 + $0x30] sm:$0xff]
  %v21 = vld [vmem:[%s0 + $0x38] sm:$0xff]
  %v22 = vld [vmem:[%s0 + $0x40] sm:$0xff]
  %v23 = vld [vmem:[%s0 + $0x48] sm:$0xff]
  %v24 = vld [vmem:[%s0 + $0x50] sm:$0xff]
  %v25 = vld [vmem:[%s0 + $0x58] sm:$0xff]
  %v26 = vld [vmem:[%s0 + $0x60] sm:$0xff]
  %v27 = vld [vmem:[%s0 + $0x68] sm:$0xff]
  %v28 = vld [vmem:[%s0 + $0x70] sm:$0xff]
  %v29 = vld [vmem:[%s0 + $0x78] sm:$0xff]
  %v30 = vld [vmem:[%s0 + $0x80] sm:$0xff]
  %v31 = vld [vmem:[%s0 + $0x88] sm:$0xff]
  %v32 = vld [vmem:[%s0 + $0x90] sm:$0xff]
  %v33 = vld [vmem:[%s0 + $0x98] sm:$0xff]
  %v34 = vld [vmem:[%s0 + $0xa0] sm:$0xff]
  %v35 = vld [vmem:[%s0 + $0xa8] sm:$0xff]
  %v36 = vld [vmem:[%s0 + $0xb0] sm:$0xff]
  %v37 = vld [vmem:[%s0 + $0xb8] sm:$0xff]
  %v38 = vld [vmem:[%s0 + $0xc0] sm:$0xff]
  %v39 = vld [vmem:[%s0 + $0xc8] sm:$0xff]
  %v40 = vld [vmem:[%s0 + $0xd0] sm:$0xff]
  %v41 = vld [vmem:[%s0 + $0xd8] sm:$0xff]
  %v42 = vld [vmem:[%s0 + $0xe0] sm:$0xff]
  %v43 = vld [vmem:[%s0 + $0xe8] sm:$0xff]
  %v44 = vld [vmem:[%s0 + $0xf0] sm:$0xff]
  %v45 = vld [vmem:[%s0 + $0xf8] sm:$0xff]
  %v46 = vld [vmem:[%s0 + $0x100] sm:$0xff]
  %v47 = vld [vmem:[%s0 + $0x108] sm:$0xff]
  %v48 = vld [vmem:[%s0 + $0x110] sm:$0xff]
  %v49 = vld [vmem:[%s0 + $0x118] sm:$0xff]
  %v50 = vld [vmem:[%s0 + $0x120] sm:$0xff]
  %v51 = vld [vmem:[%s0 + $0x128] sm:$0xff]
  %v52 = vld [vmem:[%s0 + $0x130] sm:$0xff]
  %v53 = vld [vmem:[%s0 + $0x138] sm:$0xff]
  %v54 = vld [vmem:[%s0 + $0x140] sm:$0xff]
  %v55 = vld [vmem:[%s0 + $0x148] sm:$0xff]
  %v56 = vld [vmem:[%s0 + $0x150] sm:$0xff]
  %v57 = vld [vmem:[%s0 + $0x158] sm:$0xff]
  %v58 = vld [vmem:[%s0 + $0x160] sm:$0xff]
  %v59 = vld [vmem:[%s0 + $0x168] sm:$0xff]
  %v60 = vld [vmem:[%s0 + $0x170] sm:$0xff]
  %v61 = vld [vmem:[%s0 + $0x178] sm:$0xff]
  %v62 = vld [vmem:[%s0 + $0x180] sm:$0xff]
  %v63 = vld [vmem:[%s0 + $0x188] sm:$0xff]
  %v64 = vld [vmem:[%s0 + $0x190] sm:$0xff]
  %v65 = vld [vmem:[%s0 + $0x198] sm:$0xff]
  %v66 = vld [vmem:[%s0 + $0x1a0] sm:$0xff]
  %v67 = vld [vmem:[%s0 + $0x1a8] sm:$0xff]
  %v68 = vld [vmem:[%s0 + $0x1b0] sm:$0xff]
  %v69 = vld [vmem:[%s0 + $0x1b8] sm:$0xff]
  %v70 = vld [vmem:[%s0 + $0x1c0] sm:$0xff]
  %v71 = vld [vmem:[%s0 + $0x1c8] sm:$0xff]
  %v72 = vld [vmem:[%s0 + $0x1d0] sm:$0xff]
  %v73 = vld [vmem:[%s0 + $0x1d8] sm:$0xff]
  %v74 = vld [vmem:[%s0 + $0x1e0] sm:$0xff]
  %v75 = vld [vmem:[%s0 + $0x1e8] sm:$0xff]
  %v76 = vld [vmem:[%s0 + $0x1f0] sm:$0xff]
  %v77 = vld [vmem:[%s0 + $0x1f8] sm:$0xff]
  %v78 = vld [vmem:[%s0 + $0x200] sm:$0xff]
  %v79 = vld [vmem:[%s0 + $0x208] sm:$0xff]
  %v80 = vld [vmem:[%s0 + $0x210] sm:$0xff]
  %v81 = vld [vmem:[%s0 + $0x218] sm:$0xff]
  %v82 = vld [vmem:[%s0 + $0x220] sm:$0xff]
  %v83 = vld [vmem:[%s0 + $0x228] sm:$0xff]
  %v84 = vld [vmem:[%s0 + $0x230] sm:$0xff]
  %v85 = vld [vmem:[%s0 + $0x238] sm:$0xff]
  %v86 = vld [vmem:[%s0 + $0x240] sm:$0xff]
  %v87 = vld [vmem:[%s0 + $0x248] sm:$0xff]
  %v88 = vld [vmem:[%s0 + $0x250] sm:$0xff]
  %v89 = vld [vmem:[%s0 + $0x258] sm:$0xff]
  %v90 = vld [vmem:[%s0 + $0x260] sm:$0xff]
  %v91 = vld [vmem:[%s0 + $0x268] sm:$0xff]
  %v92 = vld [vmem:[%s0 + $0x270] sm:$0xff]
  %v93 = vld [vmem:[%s0 + $0x278] sm:$0xff]
  %v94 = vld [vmem:[%s0 + $0x280] sm:$0xff]
  %v95 = vld [vmem:[%s0 + $0x288] sm:$0xff]
  %v96 = vld [vmem:[%s0 + $0x290] sm:$0xff]
  %v97 = vld [vmem:[%s0 + $0x298] sm:$0xff]
  %v98 = vld [vmem:[%s0 + $0x2a0] sm:$0xff]
  %v99 = vld [vmem:[%s0 + $0x2a8] sm:$0xff]
  %v100 = vld [vmem:[%s0 + $0x2b0] sm:$0xff]
  %v101 = vld [vmem:[%s0 + $0x2b8] sm:$0xff]
  %v102 = vld [vmem:[%s0 + $0x2c0] sm:$0xff]
  %v103 = vld [vmem:[%s0 + $0x2c8] sm:$0xff]
  %v104 = vld [vmem:[%s0 + $0x2d0] sm:$0xff]
  %v105 = vld [vmem:[%s0 + $0x2d8] sm:$0xff]
  %v106 = vld [vmem:[%s0 + $0x2e0] sm:$0xff]
  %v107 = vld [vmem:[%s0 + $0x2e8] sm:$0xff]
  %v108 = vld [vmem:[%s0 + $0x2f0] sm:$0xff]
  %v109 = vld [vmem:[%s0 + $0x2f8] sm:$0xff]
  %v110 = vld [vmem:[%s0 + $0x300] sm:$0xff]
  %v111 = vld [vmem:[%s0 + $0x308] sm:$0xff]
  %v112 = vld [vmem:[%s0 + $0x310] sm:$0xff]
  %v113 = vld [vmem:[%s0 + $0x318] sm:$0xff]
  %v114 = vld [vmem:[%s0 + $0x320] sm:$0xff]
  %v115 = vld [vmem:[%s0 + $0x328] sm:$0xff]
  %v116 = vld [vmem:[%s0 + $0x330] sm:$0xff]
  %v117 = vld [vmem:[%s0 + $0x338] sm:$0xff]
  %v118 = vld [vmem:[%s0 + $0x340] sm:$0xff]
  %v119 = vld [vmem:[%s0 + $0x348] sm:$0xff]
  %v120 = vld [vmem:[%s0 + $0x350] sm:$0xff]
  %v121 = vld [vmem:[%s0 + $0x358] sm:$0xff]
  %v122 = vld [vmem:[%s0 + $0x360] sm:$0xff]
  %v123 = vld [vmem:[%s0 + $0x368] sm:$0xff]
  %v124 = vld [vmem:[%s0 + $0x370] sm:$0xff]
  %v125 = vld [vmem:[%s0 + $0x378] sm:$0xff]
  %v126 = vld [vmem:[%s0 + $0x380] sm:$0xff]
  %v127 = vld [vmem:[%s0 + $0x388] sm:$0xff]
  %v128 = vld [vmem:[%s0 + $0x390] sm:$0xff]
  %v129 = vld [vmem:[%s0 + $0x398] sm:$0xff]
  %v130 = vld [vmem:[%s0 + $0x3a0] sm:$0xff]
  %v131 = vld [vmem:[%s0 + $0x3a8] sm:$0xff]
  %v132 = vld [vmem:[%s0 + $0x3b0] sm:$0xff]
  %v133 = vld [vmem:[%s0 + $0x3b8] sm:$0xff]
  %v134 = vld [vmem:[%s0 + $0x3c0] sm:$0xff]
  %v135 = vld [vmem:[%s0 + $0x3c8] sm:$0xff]
  %v136 = vld [vmem:[%s0 + $0x3d0] sm:$0xff]
  %v137 = vld [vmem:[%s0 + $0x3d8] sm:$0xff]
  %v138 = vld [vmem:[%s0 + $0x3e0] sm:$0xff]
  %v139 = vld [vmem:[%s0 + $0x3e8] sm:$0xff]
  %v140 = vld [vmem:[%s0 + $0x3f0] sm:$0xff]
  %v141 = vld [vmem:[%s0 + $0x3f8] sm:$0xff]
  %v142 = vld [vmem:[%s0 + $0x400] sm:$0xff]
  %v143 = vld [vmem:[%s0 + $0x408] sm:$0xff]
  %v144 = vld [vmem:[%s0 + $0x410] sm:$0xff]
  %v145 = vld [vmem:[%s0 + $0x418] sm:$0xff]
  %v146 = vld [vmem:[%s0 + $0x420] sm:$0xff]
  %v147 = vld [vmem:[%s0 + $0x428] sm:$0xff]
  %v148 = vld [vmem:[%s0 + $0x430] sm:$0xff]
  %v149 = vld [vmem:[%s0 + $0x438] sm:$0xff]
  %v150 = vld [vmem:[%s0 + $0x440] sm:$0xff]
  %v151 = vld [vmem:[%s0 + $0x448] sm:$0xff]
  %v152 = vld [vmem:[%s0 + $0x450] sm:$0xff]
  %v153 = vld [vmem:[%s0 + $0x458] sm:$0xff]
  %v154 = vld [vmem:[%s0 + $0x460] sm:$0xff]
  %v155 = vld [vmem:[%s0 + $0x468] sm:$0xff]
  %v156 = vld [vmem:[%s0 + $0x470] sm:$0xff]
  %v157 = vld [vmem:[%s0 + $0x478] sm:$0xff]
  %v158 = vld [vmem:[%s0 + $0x480] sm:$0xff]
  %v159 = vld [vmem:[%s0 + $0x488] sm:$0xff]
  %v160 = vld [vmem:[%s0 + $0x490] sm:$0xff]
  %v161 = vld [vmem:[%s0 + $0x498] sm:$0xff]
  %v162 = vld [vmem:[%s0 + $0x4a0] sm:$0xff]
  %v163 = vld [vmem:[%s0 + $0x4a8] sm:$0xff]
  %v164 = vld [vmem:[%s0 + $0x4b0] sm:$0xff]
  %v165 = vld [vmem:[%s0 + $0x4b8] sm:$0xff]
  %v166 = vld [vmem:[%s0 + $0x4c0] sm:$0xff]
  %v167 = vld [vmem:[%s0 + $0x4c8] sm:$0xff]
  %v168 = vld [vmem:[%s0 + $0x4d0] sm:$0xff]
  %v169 = vld [vmem:[%s0 + $0x4d8] sm:$0xff]
  %v170 = vld [vmem:[%s0 + $0x4e0] sm:$0xff]
  %v171 = vld [vmem:[%s0 + $0x4e8] sm:$0xff]
  %v172 = vld [vmem:[%s0 + $0x4f0] sm:$0xff]
  %v173 = vld [vmem:[%s0 + $0x4f8] sm:$0xff]
  %v174 = vld [vmem:[%s0 + $0x500] sm:$0xff]
  %v175 = vld [vmem:[%s0 + $0x508] sm:$0xff]
  %v176 = vld [vmem:[%s0 + $0x510] sm:$0xff]
  %v177 = vld [vmem:[%s0 + $0x518] sm:$0xff]
  %v178 = vld [vmem:[%s0 + $0x520] sm:$0xff]
  %v179 = vld [vmem:[%s0 + $0x528] sm:$0xff]
  %v180 = vld [vmem:[%s0 + $0x530] sm:$0xff]
  %v181 = vld [vmem:[%s0 + $0x538] sm:$0xff]
  %v182 = vld [vmem:[%s0 + $0x540] sm:$0xff]
  %v183 = vld [vmem:[%s0 + $0x548] sm:$0xff]
  %v184 = vld [vmem:[%s0 + $0x550] sm:$0xff]
  %v185 = vld [vmem:[%s0 + $0x558] sm:$0xff]
  %v186 = vld [vmem:[%s0 + $0x560] sm:$0xff]
  %v187 = vld [vmem:[%s0 + $0x568] sm:$0xff]
  %v188 = vld [vmem:[%s0 + $0x570] sm:$0xff]
  %v189 = vld [vmem:[%s0 + $0x578] sm:$0xff]
  %v190 = vld [vmem:[%s0 + $0x580] sm:$0xff]
  %v191 = vld [vmem:[%s0 + $0x588] sm:$0xff]
  %v192 = vld [vmem:[%s0 + $0x590] sm:$0xff]
  %v193 = vld [vmem:[%s0 + $0x598] sm:$0xff]
  %v194 = vld [vmem:[%s0 + $0x5a0] sm:$0xff]
  %v195 = vld [vmem:[%s0 + $0x5a8] sm:$0xff]
  %v196 = vld [vmem:[%s0 + $0x5b0] sm:$0xff]
  %v197 = vld [vmem:[%s0 + $0x5b8] sm:$0xff]
  %v198 = vld [vmem:[%s0 + $0x5c0] sm:$0xff]
  %v199 = vld [vmem:[%s0 + $0x5c8] sm:$0xff]
  %v200 = vld [vmem:[%s0 + $0x5d0] sm:$0xff]
  %v201 = vld [vmem:[%s0 + $0x5d8] sm:$0xff]
  %v202 = vld [vmem:[%s0 + $0x5e0] sm:$0xff]
  %v203 = vld [vmem:[%s0 + $0x5e8] sm:$0xff]
  %v204 = vld [vmem:[%s0 + $0x5f0] sm:$0xff]
  %v205 = vld [vmem:[%s0 + $0x5f8] sm:$0xff]
  %v206 = vld [vmem:[%s0 + $0x600] sm:$0xff]
  %v207 = vld [vmem:[%s0 + $0x608] sm:$0xff]
  %v208 = vld [vmem:[%s0 + $0x610] sm:$0xff]
  %v209 = vld [vmem:[%s0 + $0x618] sm:$0xff]
  %v210 = vld [vmem:[%s0 + $0x620] sm:$0xff]
  %v211 = vld [vmem:[%s0 + $0x628] sm:$0xff]
  %v212 = vld [vmem:[%s0 + $0x630] sm:$0xff]
  %v213 = vld [vmem:[%s0 + $0x638] sm:$0xff]
  %v214 = vld [vmem:[%s0 + $0x640] sm:$0xff]
  %v215 = vld [vmem:[%s0 + $0x648] sm:$0xff]
  %v216 = vld [vmem:[%s0 + $0x650] sm:$0xff]
  %v217 = vld [vmem:[%s0 + $0x658] sm:$0xff]
  %v218 = vld [vmem:[%s0 + $0x660] sm:$0xff]
  %v219 = vld [vmem:[%s0 + $0x668] sm:$0xff]
  %v220 = vld [vmem:[%s0 + $0x670] sm:$0xff]
  %v221 = vld [vmem:[%s0 + $0x678] sm:$0xff]
  %v222 = vld [vmem:[%s0 + $0x680] sm:$0xff]
  %v223 = vld [vmem:[%s0 + $0x688] sm:$0xff]
  %v224 = vld [vmem:[%s0 + $0x690] sm:$0xff]
  %v225 = vld [vmem:[%s0 + $0x698] sm:$0xff]
  %v226 = vld [vmem:[%s0 + $0x6a0] sm:$0xff]
  %v227 = vld [vmem:[%s0 + $0x6a8] sm:$0xff]
  %v228 = vld [vmem:[%s0 + $0x6b0] sm:$0xff]
  %v229 = vld [vmem:[%s0 + $0x6b8] sm:$0xff]
  %v230 = vld [vmem:[%s0 + $0x6c0] sm:$0xff]
  %v231 = vld [vmem:[%s0 + $0x6c8] sm:$0xff]
  %v232 = vld [vmem:[%s0 + $0x6d0] sm:$0xff]
  %v233 = vld [vmem:[%s0 + $0x6d8] sm:$0xff]
  %v234 = vld [vmem:[%s0 + $0x6e0] sm:$0xff]
  %v235 = vld [vmem:[%s0 + $0x6e8] sm:$0xff]
  %v236 = vld [vmem:[%s0 + $0x6f0] sm:$0xff]
  %v237 = vld [vmem:[%s0 + $0x6f8] sm:$0xff]
  %v238 = vld [vmem:[%s0 + $0x700] sm:$0xff]
  %v239 = vld [vmem:[%s0 + $0x708] sm:$0xff]
  %v240 = vld [vmem:[%s0 + $0x710] sm:$0xff]
  %v241 = vld [vmem:[%s0 + $0x718] sm:$0xff]
  %v242 = vld [vmem:[%s0 + $0x720] sm:$0xff]
  %v243 = vld [vmem:[%s0 + $0x728] sm:$0xff]
  %v244 = vld [vmem:[%s0 + $0x730] sm:$0xff]
  %v245 = vld [vmem:[%s0 + $0x738] sm:$0xff]
  %v246 = vld [vmem:[%s0 + $0x740] sm:$0xff]
  %v247 = vld [vmem:[%s0 + $0x748] sm:$0xff]
  %v248 = vld [vmem:[%s0 + $0x750] sm:$0xff]
  %v249 = vld [vmem:[%s0 + $0x758] sm:$0xff]
  %v250 = vld [vmem:[%s0 + $0x760] sm:$0xff]
  %v251 = vld [vmem:[%s0 + $0x768] sm:$0xff]
  %v252 = vld [vmem:[%s0 + $0x770] sm:$0xff]
  %v253 = vld [vmem:[%s0 + $0x778] sm:$0xff]
  %v254 = vld [vmem:[%s0 + $0x780] sm:$0xff]
  %v255 = vld [vmem:[%s0 + $0x788] sm:$0xff]
  %v256 = vpack.c.bf16 %v16, %v14
  %v257 = vpack.c.bf16 %v17, %v15
  %v258 = vpack.c.bf16 %v20, %v18
  %v259 = vpack.c.bf16 %v21, %v19
  %v260 = vpack.c.bf16 %v24, %v22
  %v261 = vpack.c.bf16 %v25, %v23
  %v262 = vpack.c.bf16 %v28, %v26
  %v263 = vpack.c.bf16 %v29, %v27
  %v264 = vpack.c.bf16 %v32, %v30
  %v265 = vpack.c.bf16 %v33, %v31
  %v266 = vpack.c.bf16 %v36, %v34
  %v267 = vpack.c.bf16 %v37, %v35
  %v268 = vpack.c.bf16 %v40, %v38
  %v269 = vpack.c.bf16 %v41, %v39
  %v270 = vpack.c.bf16 %v44, %v42
  %v271 = vpack.c.bf16 %v45, %v43
  %v272 = vpack.c.bf16 %v48, %v46
  %v273 = vpack.c.bf16 %v49, %v47
  %v274 = vpack.c.bf16 %v52, %v50
  %v275 = vpack.c.bf16 %v53, %v51
  %v276 = vpack.c.bf16 %v56, %v54
  %v277 = vpack.c.bf16 %v57, %v55
  %v278 = vpack.c.bf16 %v60, %v58
  %v279 = vpack.c.bf16 %v61, %v59
  %v280 = vpack.c.bf16 %v64, %v62
  %v281 = vpack.c.bf16 %v65, %v63
  %v282 = vpack.c.bf16 %v68, %v66
  %v283 = vpack.c.bf16 %v69, %v67
  %v284 = vpack.c.bf16 %v72, %v70
  %v285 = vpack.c.bf16 %v73, %v71
  %v286 = vpack.c.bf16 %v76, %v74
  %v287 = vpack.c.bf16 %v77, %v75
  %v288 = vpack.c.bf16 %v80, %v78
  %v289 = vpack.c.bf16 %v81, %v79
  %v290 = vpack.c.bf16 %v84, %v82
  %v291 = vpack.c.bf16 %v85, %v83
  %v292 = vpack.c.bf16 %v88, %v86
  %v293 = vpack.c.bf16 %v89, %v87
  %v294 = vpack.c.bf16 %v92, %v90
  %v295 = vpack.c.bf16 %v93, %v91
  %v296 = vpack.c.bf16 %v96, %v94
  %v297 = vpack.c.bf16 %v97, %v95
  %v298 = vpack.c.bf16 %v100, %v98
  %v299 = vpack.c.bf16 %v101, %v99
  %v300 = vpack.c.bf16 %v104, %v102
  %v301 = vpack.c.bf16 %v105, %v103
  %v302 = vpack.c.bf16 %v108, %v106
  %v303 = vpack.c.bf16 %v109, %v107
  %v304 = vpack.c.bf16 %v112, %v110
  %v305 = vpack.c.bf16 %v113, %v111
  %v306 = vpack.c.bf16 %v116, %v114
  %v307 = vpack.c.bf16 %v117, %v115
  %v308 = vpack.c.bf16 %v120, %v118
  %v309 = vpack.c.bf16 %v121, %v119
  %v310 = vpack.c.bf16 %v124, %v122
  %v311 = vpack.c.bf16 %v125, %v123
  %v312 = vpack.c.bf16 %v128, %v126
  %v313 = vpack.c.bf16 %v129, %v127
  %v314 = vpack.c.bf16 %v132, %v130
  %v315 = vpack.c.bf16 %v133, %v131
  %v316 = vpack.c.bf16 %v136, %v134
  %v317 = vpack.c.bf16 %v137, %v135
  %v318 = vpack.c.bf16 %v140, %v138
  %v319 = vpack.c.bf16 %v141, %v139
  %v320 = vpack.c.bf16 %v144, %v142
  %v321 = vpack.c.bf16 %v145, %v143
  %v322 = vpack.c.bf16 %v148, %v146
  %v323 = vpack.c.bf16 %v149, %v147
  %v324 = vpack.c.bf16 %v152, %v150
  %v325 = vpack.c.bf16 %v153, %v151
  %v326 = vpack.c.bf16 %v156, %v154
  %v327 = vpack.c.bf16 %v157, %v155
  %v328 = vpack.c.bf16 %v160, %v158
  %v329 = vpack.c.bf16 %v161, %v159
  %v330 = vpack.c.bf16 %v164, %v162
  %v331 = vpack.c.bf16 %v165, %v163
  %v332 = vpack.c.bf16 %v168, %v166
  %v333 = vpack.c.bf16 %v169, %v167
  %v334 = vpack.c.bf16 %v172, %v170
  %v335 = vpack.c.bf16 %v173, %v171
  %v336 = vpack.c.bf16 %v176, %v174
  %v337 = vpack.c.bf16 %v177, %v175
  %v338 = vpack.c.bf16 %v180, %v178
  %v339 = vpack.c.bf16 %v181, %v179
  %v340 = vpack.c.bf16 %v184, %v182
  %v341 = vpack.c.bf16 %v185, %v183
  %v342 = vpack.c.bf16 %v188, %v186
  %v343 = vpack.c.bf16 %v189, %v187
  %v344 = vpack.c.bf16 %v192, %v190
  %v345 = vpack.c.bf16 %v193, %v191
  %v346 = vpack.c.bf16 %v196, %v194
  %v347 = vpack.c.bf16 %v197, %v195
  %v348 = vpack.c.bf16 %v200, %v198
  %v349 = vpack.c.bf16 %v201, %v199
  %v350 = vpack.c.bf16 %v204, %v202
  %v351 = vpack.c.bf16 %v205, %v203
  %v352 = vpack.c.bf16 %v208, %v206
  %v353 = vpack.c.bf16 %v209, %v207
  %v354 = vpack.c.bf16 %v212, %v210
  %v355 = vpack.c.bf16 %v213, %v211
  %v356 = vpack.c.bf16 %v216, %v214
  %v357 = vpack.c.bf16 %v217, %v215
  %v358 = vpack.c.bf16 %v220, %v218
  %v359 = vpack.c.bf16 %v221, %v219
  %v360 = vpack.c.bf16 %v224, %v222
  %v361 = vpack.c.bf16 %v225, %v223
  %v362 = vpack.c.bf16 %v228, %v226
  %v363 = vpack.c.bf16 %v229, %v227
  %v364 = vpack.c.bf16 %v232, %v230
  %v365 = vpack.c.bf16 %v233, %v231
  %v366 = vpack.c.bf16 %v236, %v234
  %v367 = vpack.c.bf16 %v237, %v235
  %v368 = vpack.c.bf16 %v240, %v238
  %v369 = vpack.c.bf16 %v241, %v239
  %v370 = vpack.c.bf16 %v244, %v242
  %v371 = vpack.c.bf16 %v245, %v243
  %v372 = vpack.c.bf16 %v248, %v246
  %v373 = vpack.c.bf16 %v249, %v247
  %v374 = vpack.c.bf16 %v252, %v250
  %v375 = vpack.c.bf16 %v253, %v251
  %v376 = vpack.c.bf16 %v254, %v254
  %v377 = vpack.c.bf16 %v255, %v255
  %v378 = vld [vmem:[%s1] sm:$0xf]
  %v379 = vld [vmem:[%s1 + $0x4] sm:$0xf]
  %v380 = vld [vmem:[%s1 + $0x8] sm:$0xf]
  %v381 = vld [vmem:[%s1 + $0xc] sm:$0xf]
  %v382 = vld [vmem:[%s1 + $0x10] sm:$0xf]
  %v383 = vld [vmem:[%s1 + $0x14] sm:$0xf]
  %v384 = vld [vmem:[%s1 + $0x18] sm:$0xf]
  %v385 = vld [vmem:[%s1 + $0x1c] sm:$0xf]
  %v386 = vld [vmem:[%s1 + $0x20] sm:$0xf]
  %v387 = vld [vmem:[%s1 + $0x24] sm:$0xf]
  %v388 = vld [vmem:[%s1 + $0x28] sm:$0xf]
  %v389 = vld [vmem:[%s1 + $0x2c] sm:$0xf]
  %v390 = vld [vmem:[%s1 + $0x30] sm:$0xf]
  %v391 = vld [vmem:[%s1 + $0x34] sm:$0xf]
  %v392 = vld [vmem:[%s1 + $0x38] sm:$0xf]
  %v393 = vld [vmem:[%s1 + $0x3c] sm:$0xf]
  %v394 = vld [vmem:[%s1 + $0x40] sm:$0xf]
  %v395 = vld [vmem:[%s1 + $0x44] sm:$0xf]
  %v396 = vld [vmem:[%s1 + $0x48] sm:$0xf]
  %v397 = vld [vmem:[%s1 + $0x4c] sm:$0xf]
  %v398 = vld [vmem:[%s1 + $0x50] sm:$0xf]
  %v399 = vld [vmem:[%s1 + $0x54] sm:$0xf]
  %v400 = vld [vmem:[%s1 + $0x58] sm:$0xf]
  %v401 = vld [vmem:[%s1 + $0x5c] sm:$0xf]
  %v402 = vld [vmem:[%s1 + $0x60] sm:$0xf]
  %v403 = vld [vmem:[%s1 + $0x64] sm:$0xf]
  %v404 = vld [vmem:[%s1 + $0x68] sm:$0xf]
  %v405 = vld [vmem:[%s1 + $0x6c] sm:$0xf]
  %v406 = vld [vmem:[%s1 + $0x70] sm:$0xf]
  %v407 = vld [vmem:[%s1 + $0x74] sm:$0xf]
  %v408 = vld [vmem:[%s1 + $0x78] sm:$0xf]
  %v409 = vld [vmem:[%s1 + $0x7c] sm:$0xf]
  %v410 = vld [vmem:[%s2] sm:$0x1]
  %v412 = vperm.slane %v410, 0
  %v446 = vunpack.c.l.b16 %v378
  %v447 = vunpack.c.l.b16 %v379
  %v448 = vunpack.c.l.b16 %v380
  %v449 = vunpack.c.l.b16 %v381
  %v450 = vunpack.c.l.b16 %v382
  %v451 = vunpack.c.l.b16 %v383
  %v452 = vunpack.c.l.b16 %v384
  %v453 = vunpack.c.l.b16 %v385
  %v454 = vunpack.c.l.b16 %v386
  %v455 = vunpack.c.l.b16 %v387
  %v456 = vunpack.c.l.b16 %v388
  %v457 = vunpack.c.l.b16 %v389
  %v458 = vunpack.c.l.b16 %v390
  %v459 = vunpack.c.l.b16 %v391
  %v460 = vunpack.c.l.b16 %v392
  %v461 = vunpack.c.l.b16 %v393
  %v462 = vunpack.c.l.b16 %v394
  %v463 = vunpack.c.l.b16 %v395
  %v464 = vunpack.c.l.b16 %v396
  %v465 = vunpack.c.l.b16 %v397
  %v466 = vunpack.c.l.b16 %v398
  %v467 = vunpack.c.l.b16 %v399
  %v468 = vunpack.c.l.b16 %v400
  %v469 = vunpack.c.l.b16 %v401
  %v470 = vunpack.c.l.b16 %v402
  %v471 = vunpack.c.l.b16 %v403
  %v472 = vunpack.c.l.b16 %v404
  %v473 = vunpack.c.l.b16 %v405
  %v474 = vunpack.c.l.b16 %v406
  %v475 = vunpack.c.l.b16 %v407
  %v476 = vunpack.c.l.b16 %v408
  %v477 = vunpack.c.l.b16 %v409
  %v478 = vpack.c.b16 %v447, %v446
  %v479 = vpack.c.b16 %v449, %v448
  %v480 = vpack.c.b16 %v451, %v450
  %v481 = vpack.c.b16 %v453, %v452
  %v482 = vpack.c.b16 %v455, %v454
  %v483 = vpack.c.b16 %v457, %v456
  %v484 = vpack.c.b16 %v459, %v458
  %v485 = vpack.c.b16 %v461, %v460
  %v486 = vpack.c.b16 %v463, %v462
  %v487 = vpack.c.b16 %v465, %v464
  %v488 = vpack.c.b16 %v467, %v466
  %v489 = vpack.c.b16 %v469, %v468
  %v490 = vpack.c.b16 %v471, %v470
  %v491 = vpack.c.b16 %v473, %v472
  %v492 = vpack.c.b16 %v475, %v474
  %v493 = vpack.c.b16 %v477, %v476
  %510 = vmatpush.bf16.msra.mxu0 %v485
  %511 = vmatpush.bf16.msra.mxu0 %v484
  %512 = vmatpush.bf16.msra.mxu0 %v483
  %513 = vmatpush.bf16.msra.mxu0 %v482
  %514 = vmatpush.bf16.msra.mxu0 %v481
  %515 = vmatpush.bf16.msra.mxu0 %v480
  %516 = vmatpush.bf16.msra.mxu0 %v479
  %517 = vmatpush.bf16.msra.mxu0 %v478
  %518 = vmatmul.bf16.gmra.mxu0 %v256
  %v519 = vpop.f32.mrf.mxu0
  %v520 = vadd.f32 %v412, %v519
  %v521 = vpop.f32.mrf.mxu0
  %v522 = vadd.f32 %v412, %v521
  %523 = vmatmul.bf16.gmra.mxu0 %v258
  %v524 = vpop.f32.mrf.mxu0
  %v525 = vadd.f32 %v412, %v524
  %v526 = vpop.f32.mrf.mxu0
  %v527 = vadd.f32 %v412, %v526
  %528 = vmatmul.bf16.gmra.mxu0 %v260
  %v529 = vpop.f32.mrf.mxu0
  %v530 = vadd.f32 %v412, %v529
  %v531 = vpop.f32.mrf.mxu0
  %v532 = vadd.f32 %v412, %v531
  %533 = vmatmul.bf16.gmra.mxu0 %v262
  %v534 = vpop.f32.mrf.mxu0
  %v535 = vadd.f32 %v412, %v534
  %v536 = vpop.f32.mrf.mxu0
  %v537 = vadd.f32 %v412, %v536
  %538 = vmatmul.bf16.gmra.mxu0 %v264
  %v539 = vpop.f32.mrf.mxu0
  %v540 = vadd.f32 %v412, %v539
  %v541 = vpop.f32.mrf.mxu0
  %v542 = vadd.f32 %v412, %v541
  %543 = vmatmul.bf16.gmra.mxu0 %v266
  %v544 = vpop.f32.mrf.mxu0
  %v545 = vadd.f32 %v412, %v544
  %v546 = vpop.f32.mrf.mxu0
  %v547 = vadd.f32 %v412, %v546
  %548 = vmatmul.bf16.gmra.mxu0 %v268
  %v549 = vpop.f32.mrf.mxu0
  %v550 = vadd.f32 %v412, %v549
  %v551 = vpop.f32.mrf.mxu0
  %v552 = vadd.f32 %v412, %v551
  %553 = vmatmul.bf16.gmra.mxu0 %v270
  %v554 = vpop.f32.mrf.mxu0
  %v555 = vadd.f32 %v412, %v554
  %v556 = vpop.f32.mrf.mxu0
  %v557 = vadd.f32 %v412, %v556
  %558 = vmatmul.bf16.gmra.mxu0 %v272
  %v559 = vpop.f32.mrf.mxu0
  %v560 = vadd.f32 %v412, %v559
  %v561 = vpop.f32.mrf.mxu0
  %v562 = vadd.f32 %v412, %v561
  %563 = vmatmul.bf16.gmra.mxu0 %v274
  %v564 = vpop.f32.mrf.mxu0
  %v565 = vadd.f32 %v412, %v564
  %v566 = vpop.f32.mrf.mxu0
  %v567 = vadd.f32 %v412, %v566
  %568 = vmatmul.bf16.gmra.mxu0 %v276
  %v569 = vpop.f32.mrf.mxu0
  %v570 = vadd.f32 %v412, %v569
  %v571 = vpop.f32.mrf.mxu0
  %v572 = vadd.f32 %v412, %v571
  %573 = vmatmul.bf16.gmra.mxu0 %v278
  %v574 = vpop.f32.mrf.mxu0
  %v575 = vadd.f32 %v412, %v574
  %v576 = vpop.f32.mrf.mxu0
  %v577 = vadd.f32 %v412, %v576
  %578 = vmatmul.bf16.gmra.mxu0 %v280
  %v579 = vpop.f32.mrf.mxu0
  %v580 = vadd.f32 %v412, %v579
  %v581 = vpop.f32.mrf.mxu0
  %v582 = vadd.f32 %v412, %v581
  %583 = vmatmul.bf16.gmra.mxu0 %v282
  %v584 = vpop.f32.mrf.mxu0
  %v585 = vadd.f32 %v412, %v584
  %v586 = vpop.f32.mrf.mxu0
  %v587 = vadd.f32 %v412, %v586
  %588 = vmatmul.bf16.gmra.mxu0 %v284
  %v589 = vpop.f32.mrf.mxu0
  %v590 = vadd.f32 %v412, %v589
  %v591 = vpop.f32.mrf.mxu0
  %v592 = vadd.f32 %v412, %v591
  %593 = vmatmul.bf16.gmra.mxu0 %v286
  %v594 = vpop.f32.mrf.mxu0
  %v595 = vadd.f32 %v412, %v594
  %v596 = vpop.f32.mrf.mxu0
  %v597 = vadd.f32 %v412, %v596
  %598 = vmatmul.bf16.gmra.mxu0 %v288
  %v599 = vpop.f32.mrf.mxu0
  %v600 = vadd.f32 %v412, %v599
  %v601 = vpop.f32.mrf.mxu0
  %v602 = vadd.f32 %v412, %v601
  %603 = vmatmul.bf16.gmra.mxu0 %v290
  %v604 = vpop.f32.mrf.mxu0
  %v605 = vadd.f32 %v412, %v604
  %v606 = vpop.f32.mrf.mxu0
  %v607 = vadd.f32 %v412, %v606
  %608 = vmatmul.bf16.gmra.mxu0 %v292
  %v609 = vpop.f32.mrf.mxu0
  %v610 = vadd.f32 %v412, %v609
  %v611 = vpop.f32.mrf.mxu0
  %v612 = vadd.f32 %v412, %v611
  %613 = vmatmul.bf16.gmra.mxu0 %v294
  %v614 = vpop.f32.mrf.mxu0
  %v615 = vadd.f32 %v412, %v614
  %v616 = vpop.f32.mrf.mxu0
  %v617 = vadd.f32 %v412, %v616
  %618 = vmatmul.bf16.gmra.mxu0 %v296
  %v619 = vpop.f32.mrf.mxu0
  %v620 = vadd.f32 %v412, %v619
  %v621 = vpop.f32.mrf.mxu0
  %v622 = vadd.f32 %v412, %v621
  %623 = vmatmul.bf16.gmra.mxu0 %v298
  %v624 = vpop.f32.mrf.mxu0
  %v625 = vadd.f32 %v412, %v624
  %v626 = vpop.f32.mrf.mxu0
  %v627 = vadd.f32 %v412, %v626
  %628 = vmatmul.bf16.gmra.mxu0 %v300
  %v629 = vpop.f32.mrf.mxu0
  %v630 = vadd.f32 %v412, %v629
  %v631 = vpop.f32.mrf.mxu0
  %v632 = vadd.f32 %v412, %v631
  %633 = vmatmul.bf16.gmra.mxu0 %v302
  %v634 = vpop.f32.mrf.mxu0
  %v635 = vadd.f32 %v412, %v634
  %v636 = vpop.f32.mrf.mxu0
  %v637 = vadd.f32 %v412, %v636
  %638 = vmatmul.bf16.gmra.mxu0 %v304
  %v639 = vpop.f32.mrf.mxu0
  %v640 = vadd.f32 %v412, %v639
  %v641 = vpop.f32.mrf.mxu0
  %v642 = vadd.f32 %v412, %v641
  %643 = vmatmul.bf16.gmra.mxu0 %v306
  %v644 = vpop.f32.mrf.mxu0
  %v645 = vadd.f32 %v412, %v644
  %v646 = vpop.f32.mrf.mxu0
  %v647 = vadd.f32 %v412, %v646
  %648 = vmatmul.bf16.gmra.mxu0 %v308
  %v649 = vpop.f32.mrf.mxu0
  %v650 = vadd.f32 %v412, %v649
  %v651 = vpop.f32.mrf.mxu0
  %v652 = vadd.f32 %v412, %v651
  %653 = vmatmul.bf16.gmra.mxu0 %v310
  %v654 = vpop.f32.mrf.mxu0
  %v655 = vadd.f32 %v412, %v654
  %v656 = vpop.f32.mrf.mxu0
  %v657 = vadd.f32 %v412, %v656
  %658 = vmatmul.bf16.gmra.mxu0 %v312
  %v659 = vpop.f32.mrf.mxu0
  %v660 = vadd.f32 %v412, %v659
  %v661 = vpop.f32.mrf.mxu0
  %v662 = vadd.f32 %v412, %v661
  %663 = vmatmul.bf16.gmra.mxu0 %v314
  %v664 = vpop.f32.mrf.mxu0
  %v665 = vadd.f32 %v412, %v664
  %v666 = vpop.f32.mrf.mxu0
  %v667 = vadd.f32 %v412, %v666
  %668 = vmatmul.bf16.gmra.mxu0 %v316
  %v669 = vpop.f32.mrf.mxu0
  %v670 = vadd.f32 %v412, %v669
  %v671 = vpop.f32.mrf.mxu0
  %v672 = vadd.f32 %v412, %v671
  %673 = vmatmul.bf16.gmra.mxu0 %v318
  %v674 = vpop.f32.mrf.mxu0
  %v675 = vadd.f32 %v412, %v674
  %v676 = vpop.f32.mrf.mxu0
  %v677 = vadd.f32 %v412, %v676
  %678 = vmatmul.bf16.gmra.mxu0 %v320
  %v679 = vpop.f32.mrf.mxu0
  %v680 = vadd.f32 %v412, %v679
  %v681 = vpop.f32.mrf.mxu0
  %v682 = vadd.f32 %v412, %v681
  %683 = vmatmul.bf16.gmra.mxu0 %v322
  %v684 = vpop.f32.mrf.mxu0
  %v685 = vadd.f32 %v412, %v684
  %v686 = vpop.f32.mrf.mxu0
  %v687 = vadd.f32 %v412, %v686
  %688 = vmatmul.bf16.gmra.mxu0 %v324
  %v689 = vpop.f32.mrf.mxu0
  %v690 = vadd.f32 %v412, %v689
  %v691 = vpop.f32.mrf.mxu0
  %v692 = vadd.f32 %v412, %v691
  %693 = vmatmul.bf16.gmra.mxu0 %v326
  %v694 = vpop.f32.mrf.mxu0
  %v695 = vadd.f32 %v412, %v694
  %v696 = vpop.f32.mrf.mxu0
  %v697 = vadd.f32 %v412, %v696
  %698 = vmatmul.bf16.gmra.mxu0 %v328
  %v699 = vpop.f32.mrf.mxu0
  %v700 = vadd.f32 %v412, %v699
  %v701 = vpop.f32.mrf.mxu0
  %v702 = vadd.f32 %v412, %v701
  %703 = vmatmul.bf16.gmra.mxu0 %v330
  %v704 = vpop.f32.mrf.mxu0
  %v705 = vadd.f32 %v412, %v704
  %v706 = vpop.f32.mrf.mxu0
  %v707 = vadd.f32 %v412, %v706
  %708 = vmatmul.bf16.gmra.mxu0 %v332
  %v709 = vpop.f32.mrf.mxu0
  %v710 = vadd.f32 %v412, %v709
  %v711 = vpop.f32.mrf.mxu0
  %v712 = vadd.f32 %v412, %v711
  %713 = vmatmul.bf16.gmra.mxu0 %v334
  %v714 = vpop.f32.mrf.mxu0
  %v715 = vadd.f32 %v412, %v714
  %v716 = vpop.f32.mrf.mxu0
  %v717 = vadd.f32 %v412, %v716
  %718 = vmatmul.bf16.gmra.mxu0 %v336
  %v719 = vpop.f32.mrf.mxu0
  %v720 = vadd.f32 %v412, %v719
  %v721 = vpop.f32.mrf.mxu0
  %v722 = vadd.f32 %v412, %v721
  %723 = vmatmul.bf16.gmra.mxu0 %v338
  %v724 = vpop.f32.mrf.mxu0
  %v725 = vadd.f32 %v412, %v724
  %v726 = vpop.f32.mrf.mxu0
  %v727 = vadd.f32 %v412, %v726
  %728 = vmatmul.bf16.gmra.mxu0 %v340
  %v729 = vpop.f32.mrf.mxu0
  %v730 = vadd.f32 %v412, %v729
  %v731 = vpop.f32.mrf.mxu0
  %v732 = vadd.f32 %v412, %v731
  %733 = vmatmul.bf16.gmra.mxu0 %v342
  %v734 = vpop.f32.mrf.mxu0
  %v735 = vadd.f32 %v412, %v734
  %v736 = vpop.f32.mrf.mxu0
  %v737 = vadd.f32 %v412, %v736
  %738 = vmatmul.bf16.gmra.mxu0 %v344
  %v739 = vpop.f32.mrf.mxu0
  %v740 = vadd.f32 %v412, %v739
  %v741 = vpop.f32.mrf.mxu0
  %v742 = vadd.f32 %v412, %v741
  %743 = vmatmul.bf16.gmra.mxu0 %v346
  %v744 = vpop.f32.mrf.mxu0
  %v745 = vadd.f32 %v412, %v744
  %v746 = vpop.f32.mrf.mxu0
  %v747 = vadd.f32 %v412, %v746
  %748 = vmatmul.bf16.gmra.mxu0 %v348
  %v749 = vpop.f32.mrf.mxu0
  %v750 = vadd.f32 %v412, %v749
  %v751 = vpop.f32.mrf.mxu0
  %v752 = vadd.f32 %v412, %v751
  %753 = vmatmul.bf16.gmra.mxu0 %v350
  %v754 = vpop.f32.mrf.mxu0
  %v755 = vadd.f32 %v412, %v754
  %v756 = vpop.f32.mrf.mxu0
  %v757 = vadd.f32 %v412, %v756
  %758 = vmatmul.bf16.gmra.mxu0 %v352
  %v759 = vpop.f32.mrf.mxu0
  %v760 = vadd.f32 %v412, %v759
  %v761 = vpop.f32.mrf.mxu0
  %v762 = vadd.f32 %v412, %v761
  %763 = vmatmul.bf16.gmra.mxu0 %v354
  %v764 = vpop.f32.mrf.mxu0
  %v765 = vadd.f32 %v412, %v764
  %v766 = vpop.f32.mrf.mxu0
  %v767 = vadd.f32 %v412, %v766
  %768 = vmatmul.bf16.gmra.mxu0 %v356
  %v769 = vpop.f32.mrf.mxu0
  %v770 = vadd.f32 %v412, %v769
  %v771 = vpop.f32.mrf.mxu0
  %v772 = vadd.f32 %v412, %v771
  %773 = vmatmul.bf16.gmra.mxu0 %v358
  %v774 = vpop.f32.mrf.mxu0
  %v775 = vadd.f32 %v412, %v774
  %v776 = vpop.f32.mrf.mxu0
  %v777 = vadd.f32 %v412, %v776
  %778 = vmatmul.bf16.gmra.mxu0 %v360
  %v779 = vpop.f32.mrf.mxu0
  %v780 = vadd.f32 %v412, %v779
  %v781 = vpop.f32.mrf.mxu0
  %v782 = vadd.f32 %v412, %v781
  %783 = vmatmul.bf16.gmra.mxu0 %v362
  %v784 = vpop.f32.mrf.mxu0
  %v785 = vadd.f32 %v412, %v784
  %v786 = vpop.f32.mrf.mxu0
  %v787 = vadd.f32 %v412, %v786
  %788 = vmatmul.bf16.gmra.mxu0 %v364
  %v789 = vpop.f32.mrf.mxu0
  %v790 = vadd.f32 %v412, %v789
  %v791 = vpop.f32.mrf.mxu0
  %v792 = vadd.f32 %v412, %v791
  %793 = vmatmul.bf16.gmra.mxu0 %v366
  %v794 = vpop.f32.mrf.mxu0
  %v795 = vadd.f32 %v412, %v794
  %v796 = vpop.f32.mrf.mxu0
  %v797 = vadd.f32 %v412, %v796
  %798 = vmatmul.bf16.gmra.mxu0 %v368
  %v799 = vpop.f32.mrf.mxu0
  %v800 = vadd.f32 %v412, %v799
  %v801 = vpop.f32.mrf.mxu0
  %v802 = vadd.f32 %v412, %v801
  %803 = vmatmul.bf16.gmra.mxu0 %v370
  %v804 = vpop.f32.mrf.mxu0
  %v805 = vadd.f32 %v412, %v804
  %v806 = vpop.f32.mrf.mxu0
  %v807 = vadd.f32 %v412, %v806
  %808 = vmatmul.bf16.gmra.mxu0 %v372
  %v809 = vpop.f32.mrf.mxu0
  %v810 = vadd.f32 %v412, %v809
  %v811 = vpop.f32.mrf.mxu0
  %v812 = vadd.f32 %v412, %v811
  %813 = vmatmul.bf16.gmra.mxu0 %v374
  %v814 = vpop.f32.mrf.mxu0
  %v815 = vadd.f32 %v412, %v814
  %v816 = vpop.f32.mrf.mxu0
  %v817 = vadd.f32 %v412, %v816
  %818 = vmatmul.bf16.gmra.mxu0 %v376
  %v819 = vpop.f32.mrf.mxu0
  %v820 = vadd.f32 %v412, %v819
  %v821 = vpop.f32.mrf.mxu0
  %822 = vdwg.mxu0
  %823 = vmatpush.bf16.msra.mxu0 %v493
  %824 = vmatpush.bf16.msra.mxu0 %v492
  %825 = vmatpush.bf16.msra.mxu0 %v491
  %826 = vmatpush.bf16.msra.mxu0 %v490
  %827 = vmatpush.bf16.msra.mxu0 %v489
  %828 = vmatpush.bf16.msra.mxu0 %v488
  %829 = vmatpush.bf16.msra.mxu0 %v487
  %830 = vmatpush.bf16.msra.mxu0 %v486
  %831 = vmatmul.bf16.gmra.mxu0 %v257
  %v832 = vpop.f32.mrf.mxu0
  %v833 = vadd.f32 %v520, %v832
  %v834 = vpop.f32.mrf.mxu0
  %v835 = vadd.f32 %v522, %v834
  %836 = vmatmul.bf16.gmra.mxu0 %v259
  %v837 = vpop.f32.mrf.mxu0
  %v838 = vadd.f32 %v525, %v837
  %v839 = vpop.f32.mrf.mxu0
  %v840 = vadd.f32 %v527, %v839
  %841 = vmatmul.bf16.gmra.mxu0 %v261
  %v842 = vpop.f32.mrf.mxu0
  %v843 = vadd.f32 %v530, %v842
  %v844 = vpop.f32.mrf.mxu0
  %v845 = vadd.f32 %v532, %v844
  %846 = vmatmul.bf16.gmra.mxu0 %v263
  %v847 = vpop.f32.mrf.mxu0
  %v848 = vadd.f32 %v535, %v847
  %v849 = vpop.f32.mrf.mxu0
  %v850 = vadd.f32 %v537, %v849
  %851 = vmatmul.bf16.gmra.mxu0 %v265
  %v852 = vpop.f32.mrf.mxu0
  %v853 = vadd.f32 %v540, %v852
  %v854 = vpop.f32.mrf.mxu0
  %v855 = vadd.f32 %v542, %v854
  %856 = vmatmul.bf16.gmra.mxu0 %v267
  %v857 = vpop.f32.mrf.mxu0
  %v858 = vadd.f32 %v545, %v857
  %v859 = vpop.f32.mrf.mxu0
  %v860 = vadd.f32 %v547, %v859
  %861 = vmatmul.bf16.gmra.mxu0 %v269
  %v862 = vpop.f32.mrf.mxu0
  %v863 = vadd.f32 %v550, %v862
  %v864 = vpop.f32.mrf.mxu0
  %v865 = vadd.f32 %v552, %v864
  %866 = vmatmul.bf16.gmra.mxu0 %v271
  %v867 = vpop.f32.mrf.mxu0
  %v868 = vadd.f32 %v555, %v867
  %v869 = vpop.f32.mrf.mxu0
  %v870 = vadd.f32 %v557, %v869
  %871 = vmatmul.bf16.gmra.mxu0 %v273
  %v872 = vpop.f32.mrf.mxu0
  %v873 = vadd.f32 %v560, %v872
  %v874 = vpop.f32.mrf.mxu0
  %v875 = vadd.f32 %v562, %v874
  %876 = vmatmul.bf16.gmra.mxu0 %v275
  %v877 = vpop.f32.mrf.mxu0
  %v878 = vadd.f32 %v565, %v877
  %v879 = vpop.f32.mrf.mxu0
  %v880 = vadd.f32 %v567, %v879
  %881 = vmatmul.bf16.gmra.mxu0 %v277
  %v882 = vpop.f32.mrf.mxu0
  %v883 = vadd.f32 %v570, %v882
  %v884 = vpop.f32.mrf.mxu0
  %v885 = vadd.f32 %v572, %v884
  %886 = vmatmul.bf16.gmra.mxu0 %v279
  %v887 = vpop.f32.mrf.mxu0
  %v888 = vadd.f32 %v575, %v887
  %v889 = vpop.f32.mrf.mxu0
  %v890 = vadd.f32 %v577, %v889
  %891 = vmatmul.bf16.gmra.mxu0 %v281
  %v892 = vpop.f32.mrf.mxu0
  %v893 = vadd.f32 %v580, %v892
  %v894 = vpop.f32.mrf.mxu0
  %v895 = vadd.f32 %v582, %v894
  %896 = vmatmul.bf16.gmra.mxu0 %v283
  %v897 = vpop.f32.mrf.mxu0
  %v898 = vadd.f32 %v585, %v897
  %v899 = vpop.f32.mrf.mxu0
  %v900 = vadd.f32 %v587, %v899
  %901 = vmatmul.bf16.gmra.mxu0 %v285
  %v902 = vpop.f32.mrf.mxu0
  %v903 = vadd.f32 %v590, %v902
  %v904 = vpop.f32.mrf.mxu0
  %v905 = vadd.f32 %v592, %v904
  %906 = vmatmul.bf16.gmra.mxu0 %v287
  %v907 = vpop.f32.mrf.mxu0
  %v908 = vadd.f32 %v595, %v907
  %v909 = vpop.f32.mrf.mxu0
  %v910 = vadd.f32 %v597, %v909
  %911 = vmatmul.bf16.gmra.mxu0 %v289
  %v912 = vpop.f32.mrf.mxu0
  %v913 = vadd.f32 %v600, %v912
  %v914 = vpop.f32.mrf.mxu0
  %v915 = vadd.f32 %v602, %v914
  %916 = vmatmul.bf16.gmra.mxu0 %v291
  %v917 = vpop.f32.mrf.mxu0
  %v918 = vadd.f32 %v605, %v917
  %v919 = vpop.f32.mrf.mxu0
  %v920 = vadd.f32 %v607, %v919
  %921 = vmatmul.bf16.gmra.mxu0 %v293
  %v922 = vpop.f32.mrf.mxu0
  %v923 = vadd.f32 %v610, %v922
  %v924 = vpop.f32.mrf.mxu0
  %v925 = vadd.f32 %v612, %v924
  %926 = vmatmul.bf16.gmra.mxu0 %v295
  %v927 = vpop.f32.mrf.mxu0
  %v928 = vadd.f32 %v615, %v927
  %v929 = vpop.f32.mrf.mxu0
  %v930 = vadd.f32 %v617, %v929
  %931 = vmatmul.bf16.gmra.mxu0 %v297
  %v932 = vpop.f32.mrf.mxu0
  %v933 = vadd.f32 %v620, %v932
  %v934 = vpop.f32.mrf.mxu0
  %v935 = vadd.f32 %v622, %v934
  %936 = vmatmul.bf16.gmra.mxu0 %v299
  %v937 = vpop.f32.mrf.mxu0
  %v938 = vadd.f32 %v625, %v937
  %v939 = vpop.f32.mrf.mxu0
  %v940 = vadd.f32 %v627, %v939
  %941 = vmatmul.bf16.gmra.mxu0 %v301
  %v942 = vpop.f32.mrf.mxu0
  %v943 = vadd.f32 %v630, %v942
  %v944 = vpop.f32.mrf.mxu0
  %v945 = vadd.f32 %v632, %v944
  %946 = vmatmul.bf16.gmra.mxu0 %v303
  %v947 = vpop.f32.mrf.mxu0
  %v948 = vadd.f32 %v635, %v947
  %v949 = vpop.f32.mrf.mxu0
  %v950 = vadd.f32 %v637, %v949
  %951 = vmatmul.bf16.gmra.mxu0 %v305
  %v952 = vpop.f32.mrf.mxu0
  %v953 = vadd.f32 %v640, %v952
  %v954 = vpop.f32.mrf.mxu0
  %v955 = vadd.f32 %v642, %v954
  %956 = vmatmul.bf16.gmra.mxu0 %v307
  %v957 = vpop.f32.mrf.mxu0
  %v958 = vadd.f32 %v645, %v957
  %v959 = vpop.f32.mrf.mxu0
  %v960 = vadd.f32 %v647, %v959
  %961 = vmatmul.bf16.gmra.mxu0 %v309
  %v962 = vpop.f32.mrf.mxu0
  %v963 = vadd.f32 %v650, %v962
  %v964 = vpop.f32.mrf.mxu0
  %v965 = vadd.f32 %v652, %v964
  %966 = vmatmul.bf16.gmra.mxu0 %v311
  %v967 = vpop.f32.mrf.mxu0
  %v968 = vadd.f32 %v655, %v967
  %v969 = vpop.f32.mrf.mxu0
  %v970 = vadd.f32 %v657, %v969
  %971 = vmatmul.bf16.gmra.mxu0 %v313
  %v972 = vpop.f32.mrf.mxu0
  %v973 = vadd.f32 %v660, %v972
  %v974 = vpop.f32.mrf.mxu0
  %v975 = vadd.f32 %v662, %v974
  %976 = vmatmul.bf16.gmra.mxu0 %v315
  %v977 = vpop.f32.mrf.mxu0
  %v978 = vadd.f32 %v665, %v977
  %v979 = vpop.f32.mrf.mxu0
  %v980 = vadd.f32 %v667, %v979
  %981 = vmatmul.bf16.gmra.mxu0 %v317
  %v982 = vpop.f32.mrf.mxu0
  %v983 = vadd.f32 %v670, %v982
  %v984 = vpop.f32.mrf.mxu0
  %v985 = vadd.f32 %v672, %v984
  %986 = vmatmul.bf16.gmra.mxu0 %v319
  %v987 = vpop.f32.mrf.mxu0
  %v988 = vadd.f32 %v675, %v987
  %v989 = vpop.f32.mrf.mxu0
  %v990 = vadd.f32 %v677, %v989
  %991 = vmatmul.bf16.gmra.mxu0 %v321
  %v992 = vpop.f32.mrf.mxu0
  %v993 = vadd.f32 %v680, %v992
  %v994 = vpop.f32.mrf.mxu0
  %v995 = vadd.f32 %v682, %v994
  %996 = vmatmul.bf16.gmra.mxu0 %v323
  %v997 = vpop.f32.mrf.mxu0
  %v998 = vadd.f32 %v685, %v997
  %v999 = vpop.f32.mrf.mxu0
  %v1000 = vadd.f32 %v687, %v999
  %1001 = vmatmul.bf16.gmra.mxu0 %v325
  %v1002 = vpop.f32.mrf.mxu0
  %v1003 = vadd.f32 %v690, %v1002
  %v1004 = vpop.f32.mrf.mxu0
  %v1005 = vadd.f32 %v692, %v1004
  %1006 = vmatmul.bf16.gmra.mxu0 %v327
  %v1007 = vpop.f32.mrf.mxu0
  %v1008 = vadd.f32 %v695, %v1007
  %v1009 = vpop.f32.mrf.mxu0
  %v1010 = vadd.f32 %v697, %v1009
  %1011 = vmatmul.bf16.gmra.mxu0 %v329
  %v1012 = vpop.f32.mrf.mxu0
  %v1013 = vadd.f32 %v700, %v1012
  %v1014 = vpop.f32.mrf.mxu0
  %v1015 = vadd.f32 %v702, %v1014
  %1016 = vmatmul.bf16.gmra.mxu0 %v331
  %v1017 = vpop.f32.mrf.mxu0
  %v1018 = vadd.f32 %v705, %v1017
  %v1019 = vpop.f32.mrf.mxu0
  %v1020 = vadd.f32 %v707, %v1019
  %1021 = vmatmul.bf16.gmra.mxu0 %v333
  %v1022 = vpop.f32.mrf.mxu0
  %v1023 = vadd.f32 %v710, %v1022
  %v1024 = vpop.f32.mrf.mxu0
  %v1025 = vadd.f32 %v712, %v1024
  %1026 = vmatmul.bf16.gmra.mxu0 %v335
  %v1027 = vpop.f32.mrf.mxu0
  %v1028 = vadd.f32 %v715, %v1027
  %v1029 = vpop.f32.mrf.mxu0
  %v1030 = vadd.f32 %v717, %v1029
  %1031 = vmatmul.bf16.gmra.mxu0 %v337
  %v1032 = vpop.f32.mrf.mxu0
  %v1033 = vadd.f32 %v720, %v1032
  %v1034 = vpop.f32.mrf.mxu0
  %v1035 = vadd.f32 %v722, %v1034
  %1036 = vmatmul.bf16.gmra.mxu0 %v339
  %v1037 = vpop.f32.mrf.mxu0
  %v1038 = vadd.f32 %v725, %v1037
  %v1039 = vpop.f32.mrf.mxu0
  %v1040 = vadd.f32 %v727, %v1039
  %1041 = vmatmul.bf16.gmra.mxu0 %v341
  %v1042 = vpop.f32.mrf.mxu0
  %v1043 = vadd.f32 %v730, %v1042
  %v1044 = vpop.f32.mrf.mxu0
  %v1045 = vadd.f32 %v732, %v1044
  %1046 = vmatmul.bf16.gmra.mxu0 %v343
  %v1047 = vpop.f32.mrf.mxu0
  %v1048 = vadd.f32 %v735, %v1047
  %v1049 = vpop.f32.mrf.mxu0
  %v1050 = vadd.f32 %v737, %v1049
  %1051 = vmatmul.bf16.gmra.mxu0 %v345
  %v1052 = vpop.f32.mrf.mxu0
  %v1053 = vadd.f32 %v740, %v1052
  %v1054 = vpop.f32.mrf.mxu0
  %v1055 = vadd.f32 %v742, %v1054
  %1056 = vmatmul.bf16.gmra.mxu0 %v347
  %v1057 = vpop.f32.mrf.mxu0
  %v1058 = vadd.f32 %v745, %v1057
  %v1059 = vpop.f32.mrf.mxu0
  %v1060 = vadd.f32 %v747, %v1059
  %1061 = vmatmul.bf16.gmra.mxu0 %v349
  %v1062 = vpop.f32.mrf.mxu0
  %v1063 = vadd.f32 %v750, %v1062
  %v1064 = vpop.f32.mrf.mxu0
  %v1065 = vadd.f32 %v752, %v1064
  %1066 = vmatmul.bf16.gmra.mxu0 %v351
  %v1067 = vpop.f32.mrf.mxu0
  %v1068 = vadd.f32 %v755, %v1067
  %v1069 = vpop.f32.mrf.mxu0
  %v1070 = vadd.f32 %v757, %v1069
  %1071 = vmatmul.bf16.gmra.mxu0 %v353
  %v1072 = vpop.f32.mrf.mxu0
  %v1073 = vadd.f32 %v760, %v1072
  %v1074 = vpop.f32.mrf.mxu0
  %v1075 = vadd.f32 %v762, %v1074
  %1076 = vmatmul.bf16.gmra.mxu0 %v355
  %v1077 = vpop.f32.mrf.mxu0
  %v1078 = vadd.f32 %v765, %v1077
  %v1079 = vpop.f32.mrf.mxu0
  %v1080 = vadd.f32 %v767, %v1079
  %1081 = vmatmul.bf16.gmra.mxu0 %v357
  %v1082 = vpop.f32.mrf.mxu0
  %v1083 = vadd.f32 %v770, %v1082
  %v1084 = vpop.f32.mrf.mxu0
  %v1085 = vadd.f32 %v772, %v1084
  %1086 = vmatmul.bf16.gmra.mxu0 %v359
  %v1087 = vpop.f32.mrf.mxu0
  %v1088 = vadd.f32 %v775, %v1087
  %v1089 = vpop.f32.mrf.mxu0
  %v1090 = vadd.f32 %v777, %v1089
  %1091 = vmatmul.bf16.gmra.mxu0 %v361
  %v1092 = vpop.f32.mrf.mxu0
  %v1093 = vadd.f32 %v780, %v1092
  %v1094 = vpop.f32.mrf.mxu0
  %v1095 = vadd.f32 %v782, %v1094
  %1096 = vmatmul.bf16.gmra.mxu0 %v363
  %v1097 = vpop.f32.mrf.mxu0
  %v1098 = vadd.f32 %v785, %v1097
  %v1099 = vpop.f32.mrf.mxu0
  %v1100 = vadd.f32 %v787, %v1099
  %1101 = vmatmul.bf16.gmra.mxu0 %v365
  %v1102 = vpop.f32.mrf.mxu0
  %v1103 = vadd.f32 %v790, %v1102
  %v1104 = vpop.f32.mrf.mxu0
  %v1105 = vadd.f32 %v792, %v1104
  %1106 = vmatmul.bf16.gmra.mxu0 %v367
  %v1107 = vpop.f32.mrf.mxu0
  %v1108 = vadd.f32 %v795, %v1107
  %v1109 = vpop.f32.mrf.mxu0
  %v1110 = vadd.f32 %v797, %v1109
  %1111 = vmatmul.bf16.gmra.mxu0 %v369
  %v1112 = vpop.f32.mrf.mxu0
  %v1113 = vadd.f32 %v800, %v1112
  %v1114 = vpop.f32.mrf.mxu0
  %v1115 = vadd.f32 %v802, %v1114
  %1116 = vmatmul.bf16.gmra.mxu0 %v371
  %v1117 = vpop.f32.mrf.mxu0
  %v1118 = vadd.f32 %v805, %v1117
  %v1119 = vpop.f32.mrf.mxu0
  %v1120 = vadd.f32 %v807, %v1119
  %1121 = vmatmul.bf16.gmra.mxu0 %v373
  %v1122 = vpop.f32.mrf.mxu0
  %v1123 = vadd.f32 %v810, %v1122
  %v1124 = vpop.f32.mrf.mxu0
  %v1125 = vadd.f32 %v812, %v1124
  %1126 = vmatmul.bf16.gmra.mxu0 %v375
  %v1127 = vpop.f32.mrf.mxu0
  %v1128 = vadd.f32 %v815, %v1127
  %v1129 = vpop.f32.mrf.mxu0
  %v1130 = vadd.f32 %v817, %v1129
  %1131 = vmatmul.bf16.gmra.mxu0 %v377
  %v1132 = vpop.f32.mrf.mxu0
  %v1133 = vadd.f32 %v820, %v1132
  %v1134 = vpop.f32.mrf.mxu0
  %1135 = vdwg.mxu0
  %v1136 = vmax.f32 %v833, 0.0
  %v1137 = vmax.f32 %v835, 0.0
  %v1138 = vmax.f32 %v838, 0.0
  %v1139 = vmax.f32 %v840, 0.0
  %v1140 = vmax.f32 %v843, 0.0
  %v1141 = vmax.f32 %v845, 0.0
  %v1142 = vmax.f32 %v848, 0.0
  %v1143 = vmax.f32 %v850, 0.0
  %v1144 = vmax.f32 %v853, 0.0
  %v1145 = vmax.f32 %v855, 0.0
  %v1146 = vmax.f32 %v858, 0.0
  %v1147 = vmax.f32 %v860, 0.0
  %v1148 = vmax.f32 %v863, 0.0
  %v1149 = vmax.f32 %v865, 0.0
  %v1150 = vmax.f32 %v868, 0.0
  %v1151 = vmax.f32 %v870, 0.0
  %v1152 = vmax.f32 %v873, 0.0
  %v1153 = vmax.f32 %v875, 0.0
  %v1154 = vmax.f32 %v878, 0.0
  %v1155 = vmax.f32 %v880, 0.0
  %v1156 = vmax.f32 %v883, 0.0
  %v1157 = vmax.f32 %v885, 0.0
  %v1158 = vmax.f32 %v888, 0.0
  %v1159 = vmax.f32 %v890, 0.0
  %v1160 = vmax.f32 %v893, 0.0
  %v1161 = vmax.f32 %v895, 0.0
  %v1162 = vmax.f32 %v898, 0.0
  %v1163 = vmax.f32 %v900, 0.0
  %v1164 = vmax.f32 %v903, 0.0
  %v1165 = vmax.f32 %v905, 0.0
  %v1166 = vmax.f32 %v908, 0.0
  %v1167 = vmax.f32 %v910, 0.0
  %v1168 = vmax.f32 %v913, 0.0
  %v1169 = vmax.f32 %v915, 0.0
  %v1170 = vmax.f32 %v918, 0.0
  %v1171 = vmax.f32 %v920, 0.0
  %v1172 = vmax.f32 %v923, 0.0
  %v1173 = vmax.f32 %v925, 0.0
  %v1174 = vmax.f32 %v928, 0.0
  %v1175 = vmax.f32 %v930, 0.0
  %v1176 = vmax.f32 %v933, 0.0
  %v1177 = vmax.f32 %v935, 0.0
  %v1178 = vmax.f32 %v938, 0.0
  %v1179 = vmax.f32 %v940, 0.0
  %v1180 = vmax.f32 %v943, 0.0
  %v1181 = vmax.f32 %v945, 0.0
  %v1182 = vmax.f32 %v948, 0.0
  %v1183 = vmax.f32 %v950, 0.0
  %v1184 = vmax.f32 %v953, 0.0
  %v1185 = vmax.f32 %v955, 0.0
  %v1186 = vmax.f32 %v958, 0.0
  %v1187 = vmax.f32 %v960, 0.0
  %v1188 = vmax.f32 %v963, 0.0
  %v1189 = vmax.f32 %v965, 0.0
  %v1190 = vmax.f32 %v968, 0.0
  %v1191 = vmax.f32 %v970, 0.0
  %v1192 = vmax.f32 %v973, 0.0
  %v1193 = vmax.f32 %v975, 0.0
  %v1194 = vmax.f32 %v978, 0.0
  %v1195 = vmax.f32 %v980, 0.0
  %v1196 = vmax.f32 %v983, 0.0
  %v1197 = vmax.f32 %v985, 0.0
  %v1198 = vmax.f32 %v988, 0.0
  %v1199 = vmax.f32 %v990, 0.0
  %v1200 = vmax.f32 %v993, 0.0
  %v1201 = vmax.f32 %v995, 0.0
  %v1202 = vmax.f32 %v998, 0.0
  %v1203 = vmax.f32 %v1000, 0.0
  %v1204 = vmax.f32 %v1003, 0.0
  %v1205 = vmax.f32 %v1005, 0.0
  %v1206 = vmax.f32 %v1008, 0.0
  %v1207 = vmax.f32 %v1010, 0.0
  %v1208 = vmax.f32 %v1013, 0.0
  %v1209 = vmax.f32 %v1015, 0.0
  %v1210 = vmax.f32 %v1018, 0.0
  %v1211 = vmax.f32 %v1020, 0.0
  %v1212 = vmax.f32 %v1023, 0.0
  %v1213 = vmax.f32 %v1025, 0.0
  %v1214 = vmax.f32 %v1028, 0.0
  %v1215 = vmax.f32 %v1030, 0.0
  %v1216 = vmax.f32 %v1033, 0.0
  %v1217 = vmax.f32 %v1035, 0.0
  %v1218 = vmax.f32 %v1038, 0.0
  %v1219 = vmax.f32 %v1040, 0.0
  %v1220 = vmax.f32 %v1043, 0.0
  %v1221 = vmax.f32 %v1045, 0.0
  %v1222 = vmax.f32 %v1048, 0.0
  %v1223 = vmax.f32 %v1050, 0.0
  %v1224 = vmax.f32 %v1053, 0.0
  %v1225 = vmax.f32 %v1055, 0.0
  %v1226 = vmax.f32 %v1058, 0.0
  %v1227 = vmax.f32 %v1060, 0.0
  %v1228 = vmax.f32 %v1063, 0.0
  %v1229 = vmax.f32 %v1065, 0.0
  %v1230 = vmax.f32 %v1068, 0.0
  %v1231 = vmax.f32 %v1070, 0.0
  %v1232 = vmax.f32 %v1073, 0.0
  %v1233 = vmax.f32 %v1075, 0.0
  %v1234 = vmax.f32 %v1078, 0.0
  %v1235 = vmax.f32 %v1080, 0.0
  %v1236 = vmax.f32 %v1083, 0.0
  %v1237 = vmax.f32 %v1085, 0.0
  %v1238 = vmax.f32 %v1088, 0.0
  %v1239 = vmax.f32 %v1090, 0.0
  %v1240 = vmax.f32 %v1093, 0.0
  %v1241 = vmax.f32 %v1095, 0.0
  %v1242 = vmax.f32 %v1098, 0.0
  %v1243 = vmax.f32 %v1100, 0.0
  %v1244 = vmax.f32 %v1103, 0.0
  %v1245 = vmax.f32 %v1105, 0.0
  %v1246 = vmax.f32 %v1108, 0.0
  %v1247 = vmax.f32 %v1110, 0.0
  %v1248 = vmax.f32 %v1113, 0.0
  %v1249 = vmax.f32 %v1115, 0.0
  %v1250 = vmax.f32 %v1118, 0.0
  %v1251 = vmax.f32 %v1120, 0.0
  %v1252 = vmax.f32 %v1123, 0.0
  %v1253 = vmax.f32 %v1125, 0.0
  %v1254 = vmax.f32 %v1128, 0.0
  %v1255 = vmax.f32 %v1130, 0.0
  %v1256 = vmax.f32 %v1133, 0.0
  %1257 = vst [vmem:[%s3] sm:$0xff] %v1136
  %1258 = vst [vmem:[%s3 + $0x8] sm:$0xff] %v1137
  %1259 = vst [vmem:[%s3 + $0x10] sm:$0xff] %v1138
  %1260 = vst [vmem:[%s3 + $0x18] sm:$0xff] %v1139
  %1261 = vst [vmem:[%s3 + $0x20] sm:$0xff] %v1140
  %1262 = vst [vmem:[%s3 + $0x28] sm:$0xff] %v1141
  %1263 = vst [vmem:[%s3 + $0x30] sm:$0xff] %v1142
  %1264 = vst [vmem:[%s3 + $0x38] sm:$0xff] %v1143
  %1265 = vst [vmem:[%s3 + $0x40] sm:$0xff] %v1144
  %1266 = vst [vmem:[%s3 + $0x48] sm:$0xff] %v1145
  %1267 = vst [vmem:[%s3 + $0x50] sm:$0xff] %v1146
  %1268 = vst [vmem:[%s3 + $0x58] sm:$0xff] %v1147
  %1269 = vst [vmem:[%s3 + $0x60] sm:$0xff] %v1148
  %1270 = vst [vmem:[%s3 + $0x68] sm:$0xff] %v1149
  %1271 = vst [vmem:[%s3 + $0x70] sm:$0xff] %v1150
  %1272 = vst [vmem:[%s3 + $0x78] sm:$0xff] %v1151
  %1273 = vst [vmem:[%s3 + $0x80] sm:$0xff] %v1152
  %1274 = vst [vmem:[%s3 + $0x88] sm:$0xff] %v1153
  %1275 = vst [vmem:[%s3 + $0x90] sm:$0xff] %v1154
  %1276 = vst [vmem:[%s3 + $0x98] sm:$0xff] %v1155
  %1277 = vst [vmem:[%s3 + $0xa0] sm:$0xff] %v1156
  %1278 = vst [vmem:[%s3 + $0xa8] sm:$0xff] %v1157
  %1279 = vst [vmem:[%s3 + $0xb0] sm:$0xff] %v1158
  %1280 = vst [vmem:[%s3 + $0xb8] sm:$0xff] %v1159
  %1281 = vst [vmem:[%s3 + $0xc0] sm:$0xff] %v1160
  %1282 = vst [vmem:[%s3 + $0xc8] sm:$0xff] %v1161
  %1283 = vst [vmem:[%s3 + $0xd0] sm:$0xff] %v1162
  %1284 = vst [vmem:[%s3 + $0xd8] sm:$0xff] %v1163
  %1285 = vst [vmem:[%s3 + $0xe0] sm:$0xff] %v1164
  %1286 = vst [vmem:[%s3 + $0xe8] sm:$0xff] %v1165
  %1287 = vst [vmem:[%s3 + $0xf0] sm:$0xff] %v1166
  %1288 = vst [vmem:[%s3 + $0xf8] sm:$0xff] %v1167
  %1289 = vst [vmem:[%s3 + $0x100] sm:$0xff] %v1168
  %1290 = vst [vmem:[%s3 + $0x108] sm:$0xff] %v1169
  %1291 = vst [vmem:[%s3 + $0x110] sm:$0xff] %v1170
  %1292 = vst [vmem:[%s3 + $0x118] sm:$0xff] %v1171
  %1293 = vst [vmem:[%s3 + $0x120] sm:$0xff] %v1172
  %1294 = vst [vmem:[%s3 + $0x128] sm:$0xff] %v1173
  %1295 = vst [vmem:[%s3 + $0x130] sm:$0xff] %v1174
  %1296 = vst [vmem:[%s3 + $0x138] sm:$0xff] %v1175
  %1297 = vst [vmem:[%s3 + $0x140] sm:$0xff] %v1176
  %1298 = vst [vmem:[%s3 + $0x148] sm:$0xff] %v1177
  %1299 = vst [vmem:[%s3 + $0x150] sm:$0xff] %v1178
  %1300 = vst [vmem:[%s3 + $0x158] sm:$0xff] %v1179
  %1301 = vst [vmem:[%s3 + $0x160] sm:$0xff] %v1180
  %1302 = vst [vmem:[%s3 + $0x168] sm:$0xff] %v1181
  %1303 = vst [vmem:[%s3 + $0x170] sm:$0xff] %v1182
  %1304 = vst [vmem:[%s3 + $0x178] sm:$0xff] %v1183
  %1305 = vst [vmem:[%s3 + $0x180] sm:$0xff] %v1184
  %1306 = vst [vmem:[%s3 + $0x188] sm:$0xff] %v1185
  %1307 = vst [vmem:[%s3 + $0x190] sm:$0xff] %v1186
  %1308 = vst [vmem:[%s3 + $0x198] sm:$0xff] %v1187
  %1309 = vst [vmem:[%s3 + $0x1a0] sm:$0xff] %v1188
  %1310 = vst [vmem:[%s3 + $0x1a8] sm:$0xff] %v1189
  %1311 = vst [vmem:[%s3 + $0x1b0] sm:$0xff] %v1190
  %1312 = vst [vmem:[%s3 + $0x1b8] sm:$0xff] %v1191
  %1313 = vst [vmem:[%s3 + $0x1c0] sm:$0xff] %v1192
  %1314 = vst [vmem:[%s3 + $0x1c8] sm:$0xff] %v1193
  %1315 = vst [vmem:[%s3 + $0x1d0] sm:$0xff] %v1194
  %1316 = vst [vmem:[%s3 + $0x1d8] sm:$0xff] %v1195
  %1317 = vst [vmem:[%s3 + $0x1e0] sm:$0xff] %v1196
  %1318 = vst [vmem:[%s3 + $0x1e8] sm:$0xff] %v1197
  %1319 = vst [vmem:[%s3 + $0x1f0] sm:$0xff] %v1198
  %1320 = vst [vmem:[%s3 + $0x1f8] sm:$0xff] %v1199
  %1321 = vst [vmem:[%s3 + $0x200] sm:$0xff] %v1200
  %1322 = vst [vmem:[%s3 + $0x208] sm:$0xff] %v1201
  %1323 = vst [vmem:[%s3 + $0x210] sm:$0xff] %v1202
  %1324 = vst [vmem:[%s3 + $0x218] sm:$0xff] %v1203
  %1325 = vst [vmem:[%s3 + $0x220] sm:$0xff] %v1204
  %1326 = vst [vmem:[%s3 + $0x228] sm:$0xff] %v1205
  %1327 = vst [vmem:[%s3 + $0x230] sm:$0xff] %v1206
  %1328 = vst [vmem:[%s3 + $0x238] sm:$0xff] %v1207
  %1329 = vst [vmem:[%s3 + $0x240] sm:$0xff] %v1208
  %1330 = vst [vmem:[%s3 + $0x248] sm:$0xff] %v1209
  %1331 = vst [vmem:[%s3 + $0x250] sm:$0xff] %v1210
  %1332 = vst [vmem:[%s3 + $0x258] sm:$0xff] %v1211
  %1333 = vst [vmem:[%s3 + $0x260] sm:$0xff] %v1212
  %1334 = vst [vmem:[%s3 + $0x268] sm:$0xff] %v1213
  %1335 = vst [vmem:[%s3 + $0x270] sm:$0xff] %v1214
  %1336 = vst [vmem:[%s3 + $0x278] sm:$0xff] %v1215
  %1337 = vst [vmem:[%s3 + $0x280] sm:$0xff] %v1216
  %1338 = vst [vmem:[%s3 + $0x288] sm:$0xff] %v1217
  %1339 = vst [vmem:[%s3 + $0x290] sm:$0xff] %v1218
  %1340 = vst [vmem:[%s3 + $0x298] sm:$0xff] %v1219
  %1341 = vst [vmem:[%s3 + $0x2a0] sm:$0xff] %v1220
  %1342 = vst [vmem:[%s3 + $0x2a8] sm:$0xff] %v1221
  %1343 = vst [vmem:[%s3 + $0x2b0] sm:$0xff] %v1222
  %1344 = vst [vmem:[%s3 + $0x2b8] sm:$0xff] %v1223
  %1345 = vst [vmem:[%s3 + $0x2c0] sm:$0xff] %v1224
  %1346 = vst [vmem:[%s3 + $0x2c8] sm:$0xff] %v1225
  %1347 = vst [vmem:[%s3 + $0x2d0] sm:$0xff] %v1226
  %1348 = vst [vmem:[%s3 + $0x2d8] sm:$0xff] %v1227
  %1349 = vst [vmem:[%s3 + $0x2e0] sm:$0xff] %v1228
  %1350 = vst [vmem:[%s3 + $0x2e8] sm:$0xff] %v1229
  %1351 = vst [vmem:[%s3 + $0x2f0] sm:$0xff] %v1230
  %1352 = vst [vmem:[%s3 + $0x2f8] sm:$0xff] %v1231
  %1353 = vst [vmem:[%s3 + $0x300] sm:$0xff] %v1232
  %1354 = vst [vmem:[%s3 + $0x308] sm:$0xff] %v1233
  %1355 = vst [vmem:[%s3 + $0x310] sm:$0xff] %v1234
  %1356 = vst [vmem:[%s3 + $0x318] sm:$0xff] %v1235
  %1357 = vst [vmem:[%s3 + $0x320] sm:$0xff] %v1236
  %1358 = vst [vmem:[%s3 + $0x328] sm:$0xff] %v1237
  %1359 = vst [vmem:[%s3 + $0x330] sm:$0xff] %v1238
  %1360 = vst [vmem:[%s3 + $0x338] sm:$0xff] %v1239
  %1361 = vst [vmem:[%s3 + $0x340] sm:$0xff] %v1240
  %1362 = vst [vmem:[%s3 + $0x348] sm:$0xff] %v1241
  %1363 = vst [vmem:[%s3 + $0x350] sm:$0xff] %v1242
  %1364 = vst [vmem:[%s3 + $0x358] sm:$0xff] %v1243
  %1365 = vst [vmem:[%s3 + $0x360] sm:$0xff] %v1244
  %1366 = vst [vmem:[%s3 + $0x368] sm:$0xff] %v1245
  %1367 = vst [vmem:[%s3 + $0x370] sm:$0xff] %v1246
  %1368 = vst [vmem:[%s3 + $0x378] sm:$0xff] %v1247
  %1369 = vst [vmem:[%s3 + $0x380] sm:$0xff] %v1248
  %1370 = vst [vmem:[%s3 + $0x388] sm:$0xff] %v1249
  %1371 = vst [vmem:[%s3 + $0x390] sm:$0xff] %v1250
  %1372 = vst [vmem:[%s3 + $0x398] sm:$0xff] %v1251
  %1373 = vst [vmem:[%s3 + $0x3a0] sm:$0xff] %v1252
  %1374 = vst [vmem:[%s3 + $0x3a8] sm:$0xff] %v1253
  %1375 = vst [vmem:[%s3 + $0x3b0] sm:$0xff] %v1254
  %1376 = vst [vmem:[%s3 + $0x3b8] sm:$0xff] %v1255
  %1377 = vst [vmem:[%s3 + $0x3c0] sm:$0xff] %v1256
  // Predicated region
  $region14: #{_lambda_.9} parent=0 // pred_check
    _
  $region15: #{_lambda_.9} parent=0 // pred_check_branch
    %1379 = sbr.rel (0) target = $region17
  $region16: #{_lambda_.9} parent=0 // pred_region
    _
  $region17: #{_lambda_.9} parent=0 // pred_fallthru
    _
  // Predicated region
  $region18: #{_lambda_.9} parent=0 // pred_check
    _
  $region19: #{_lambda_.9} parent=0 // pred_check_branch
    %1381 = sbr.rel (0) target = $region21
  $region20: #{_lambda_.9} parent=0 // pred_region
    _
  $region21: #{_lambda_.9} parent=0 // pred_fallthru
    _

// kernel: _lambda_.10
$region0: #{_lambda_.10}
  #allocation0 [shape = 'u32[]', space=smem, size = 0x4, offset = 0x4, fixed_abs, tag = 'smem constant byte address 0x4 - core index']
  #allocation1 [shape = 'u32[72,128]{1,0:T(1,128)}', space=vmem, size = 0x9000, scoped, tag = 'internal scratch']
  %s0 = inlined_call_operand.vmem [shape: f32[200,288], index: 0, kind: input, shape index: {}]
  %s1 = inlined_call_operand.vmem [shape: bf16[288,128], index: 1, kind: input, shape index: {}]
  %s2 = inlined_call_operand.vmem [shape: f32[1,128], index: 2, kind: input, shape index: {}]
  %s3 = inlined_call_operand.vmem [shape: f32[200,128], index: 3, kind: output, shape index: {}]
  %s4 = sld [smem:[#allocation0]]
  $region22: #{_lambda_.10} parent=0
    _
  %s6 = ssub.s32 1, %s4
  %s7 = scalar_select 0, %s6, %s4
  // Predicated region
  $region2: #{_lambda_.10} parent=0 // pred_check
    _
  $region3: #{_lambda_.10} parent=0 // pred_check_branch
    %9 = sbr.rel (0) target = $region5
  $region4: #{_lambda_.10} parent=0 // pred_region
    _
  $region5: #{_lambda_.10} parent=0 // pred_fallthru
    _
  // Predicated region
  $region6: #{_lambda_.10} parent=0 // pred_check
    _
  $region7: #{_lambda_.10} parent=0 // pred_check_branch
    %11 = sbr.rel (0) target = $region9
  $region8: #{_lambda_.10} parent=0 // pred_region
    _
  $region9: #{_lambda_.10} parent=0 // pred_fallthru
    _
  // Predicated region
  $region10: #{_lambda_.10} parent=0 // pred_check
    _
  $region11: #{_lambda_.10} parent=0 // pred_check_branch
    %13 = sbr.rel (0) target = $region13
  $region12: #{_lambda_.10} parent=0 // pred_region
    _
  $region13: #{_lambda_.10} parent=0 // pred_fallthru
    _
  %v15 = vld [vmem:[%s0] sm:$0xff]
  %v16 = vld [vmem:[%s0 + $0x8] sm:$0xff]
  %v17 = vld [vmem:[%s0 + $0x10] sm:$0xff]
  %v18 = vld [vmem:[%s0 + $0x18] sm:$0xff]
  %v19 = vld [vmem:[%s0 + $0x20] sm:$0xff]
  %v20 = vld [vmem:[%s0 + $0x28] sm:$0xff]
  %v21 = vld [vmem:[%s0 + $0x30] sm:$0xff]
  %v22 = vld [vmem:[%s0 + $0x38] sm:$0xff]
  %v23 = vld [vmem:[%s0 + $0x40] sm:$0xff]
  %v24 = vld [vmem:[%s0 + $0x48] sm:$0xff]
  %v25 = vld [vmem:[%s0 + $0x50] sm:$0xff]
  %v26 = vld [vmem:[%s0 + $0x58] sm:$0xff]
  %v27 = vld [vmem:[%s0 + $0x60] sm:$0xff]
  %v28 = vld [vmem:[%s0 + $0x68] sm:$0xff]
  %v29 = vld [vmem:[%s0 + $0x70] sm:$0xff]
  %v30 = vld [vmem:[%s0 + $0x78] sm:$0xff]
  %v31 = vld [vmem:[%s0 + $0x80] sm:$0xff]
  %v32 = vld [vmem:[%s0 + $0x88] sm:$0xff]
  %v33 = vld [vmem:[%s0 + $0x90] sm:$0xff]
  %v34 = vld [vmem:[%s0 + $0x98] sm:$0xff]
  %v35 = vld [vmem:[%s0 + $0xa0] sm:$0xff]
  %v36 = vld [vmem:[%s0 + $0xa8] sm:$0xff]
  %v37 = vld [vmem:[%s0 + $0xb0] sm:$0xff]
  %v38 = vld [vmem:[%s0 + $0xb8] sm:$0xff]
  %v39 = vld [vmem:[%s0 + $0xc0] sm:$0xff]
  %v40 = vld [vmem:[%s0 + $0xc8] sm:$0xff]
  %v41 = vld [vmem:[%s0 + $0xd0] sm:$0xff]
  %v42 = vld [vmem:[%s0 + $0xd8] sm:$0xff]
  %v43 = vld [vmem:[%s0 + $0xe0] sm:$0xff]
  %v44 = vld [vmem:[%s0 + $0xe8] sm:$0xff]
  %v45 = vld [vmem:[%s0 + $0xf0] sm:$0xff]
  %v46 = vld [vmem:[%s0 + $0xf8] sm:$0xff]
  %v47 = vld [vmem:[%s0 + $0x100] sm:$0xff]
  %v48 = vld [vmem:[%s0 + $0x108] sm:$0xff]
  %v49 = vld [vmem:[%s0 + $0x110] sm:$0xff]
  %v50 = vld [vmem:[%s0 + $0x118] sm:$0xff]
  %v51 = vld [vmem:[%s0 + $0x120] sm:$0xff]
  %v52 = vld [vmem:[%s0 + $0x128] sm:$0xff]
  %v53 = vld [vmem:[%s0 + $0x130] sm:$0xff]
  %v54 = vld [vmem:[%s0 + $0x138] sm:$0xff]
  %v55 = vld [vmem:[%s0 + $0x140] sm:$0xff]
  %v56 = vld [vmem:[%s0 + $0x148] sm:$0xff]
  %v57 = vld [vmem:[%s0 + $0x150] sm:$0xff]
  %v58 = vld [vmem:[%s0 + $0x158] sm:$0xff]
  %v59 = vld [vmem:[%s0 + $0x160] sm:$0xff]
  %v60 = vld [vmem:[%s0 + $0x168] sm:$0xff]
  %v61 = vld [vmem:[%s0 + $0x170] sm:$0xff]
  %v62 = vld [vmem:[%s0 + $0x178] sm:$0xff]
  %v63 = vld [vmem:[%s0 + $0x180] sm:$0xff]
  %v64 = vld [vmem:[%s0 + $0x188] sm:$0xff]
  %v65 = vld [vmem:[%s0 + $0x190] sm:$0xff]
  %v66 = vld [vmem:[%s0 + $0x198] sm:$0xff]
  %v67 = vld [vmem:[%s0 + $0x1a0] sm:$0xff]
  %v68 = vld [vmem:[%s0 + $0x1a8] sm:$0xff]
  %v69 = vld [vmem:[%s0 + $0x1b0] sm:$0xff]
  %v70 = vld [vmem:[%s0 + $0x1b8] sm:$0xff]
  %v71 = vld [vmem:[%s0 + $0x1c0] sm:$0xff]
  %v72 = vld [vmem:[%s0 + $0x1c8] sm:$0xff]
  %v73 = vld [vmem:[%s0 + $0x1d0] sm:$0xff]
  %v74 = vld [vmem:[%s0 + $0x1d8] sm:$0xff]
  %v75 = vld [vmem:[%s0 + $0x1e0] sm:$0xff]
  %v76 = vld [vmem:[%s0 + $0x1e8] sm:$0xff]
  %v77 = vld [vmem:[%s0 + $0x1f0] sm:$0xff]
  %v78 = vld [vmem:[%s0 + $0x1f8] sm:$0xff]
  %v79 = vld [vmem:[%s0 + $0x200] sm:$0xff]
  %v80 = vld [vmem:[%s0 + $0x208] sm:$0xff]
  %v81 = vld [vmem:[%s0 + $0x210] sm:$0xff]
  %v82 = vld [vmem:[%s0 + $0x218] sm:$0xff]
  %v83 = vld [vmem:[%s0 + $0x220] sm:$0xff]
  %v84 = vld [vmem:[%s0 + $0x228] sm:$0xff]
  %v85 = vld [vmem:[%s0 + $0x230] sm:$0xff]
  %v86 = vld [vmem:[%s0 + $0x238] sm:$0xff]
  %v87 = vld [vmem:[%s0 + $0x240] sm:$0xff]
  %v88 = vld [vmem:[%s0 + $0x248] sm:$0xff]
  %v89 = vld [vmem:[%s0 + $0x250] sm:$0xff]
  %v90 = vpack.c.bf16 %v18, %v15
  %v91 = vpack.c.bf16 %v19, %v16
  %v92 = vpack.c.bf16 %v20, %v17
  %v93 = vpack.c.bf16 %v24, %v21
  %v94 = vpack.c.bf16 %v25, %v22
  %v95 = vpack.c.bf16 %v26, %v23
  %v96 = vpack.c.bf16 %v30, %v27
  %v97 = vpack.c.bf16 %v31, %v28
  %v98 = vpack.c.bf16 %v32, %v29
  %v99 = vpack.c.bf16 %v36, %v33
  %v100 = vpack.c.bf16 %v37, %v34
  %v101 = vpack.c.bf16 %v38, %v35
  %v102 = vpack.c.bf16 %v42, %v39
  %v103 = vpack.c.bf16 %v43, %v40
  %v104 = vpack.c.bf16 %v44, %v41
  %v105 = vpack.c.bf16 %v48, %v45
  %v106 = vpack.c.bf16 %v49, %v46
  %v107 = vpack.c.bf16 %v50, %v47
  %v108 = vpack.c.bf16 %v54, %v51
  %v109 = vpack.c.bf16 %v55, %v52
  %v110 = vpack.c.bf16 %v56, %v53
  %v111 = vpack.c.bf16 %v60, %v57
  %v112 = vpack.c.bf16 %v61, %v58
  %v113 = vpack.c.bf16 %v62, %v59
  %v114 = vpack.c.bf16 %v66, %v63
  %v115 = vpack.c.bf16 %v67, %v64
  %v116 = vpack.c.bf16 %v68, %v65
  %v117 = vpack.c.bf16 %v72, %v69
  %v118 = vpack.c.bf16 %v73, %v70
  %v119 = vpack.c.bf16 %v74, %v71
  %v120 = vpack.c.bf16 %v78, %v75
  %v121 = vpack.c.bf16 %v79, %v76
  %v122 = vpack.c.bf16 %v80, %v77
  %v123 = vpack.c.bf16 %v84, %v81
  %v124 = vpack.c.bf16 %v85, %v82
  %v125 = vpack.c.bf16 %v86, %v83
  %v126 = vpack.c.bf16 %v87, %v87
  %v127 = vpack.c.bf16 %v88, %v88
  %v128 = vpack.c.bf16 %v89, %v89
  %v129 = vld [vmem:[%s1] sm:$0xf]
  %v130 = vld [vmem:[%s1 + $0x4] sm:$0xf]
  %v131 = vld [vmem:[%s1 + $0x8] sm:$0xf]
  %v132 = vld [vmem:[%s1 + $0xc] sm:$0xf]
  %v133 = vld [vmem:[%s1 + $0x10] sm:$0xf]
  %v134 = vld [vmem:[%s1 + $0x14] sm:$0xf]
  %v135 = vld [vmem:[%s1 + $0x18] sm:$0xf]
  %v136 = vld [vmem:[%s1 + $0x1c] sm:$0xf]
  %v137 = vld [vmem:[%s1 + $0x20] sm:$0xf]
  %v138 = vld [vmem:[%s1 + $0x24] sm:$0xf]
  %v139 = vld [vmem:[%s1 + $0x28] sm:$0xf]
  %v140 = vld [vmem:[%s1 + $0x2c] sm:$0xf]
  %v141 = vld [vmem:[%s1 + $0x30] sm:$0xf]
  %v142 = vld [vmem:[%s1 + $0x34] sm:$0xf]
  %v143 = vld [vmem:[%s1 + $0x38] sm:$0xf]
  %v144 = vld [vmem:[%s1 + $0x3c] sm:$0xf]
  %v145 = vld [vmem:[%s1 + $0x40] sm:$0xf]
  %v146 = vld [vmem:[%s1 + $0x44] sm:$0xf]
  %v147 = vld [vmem:[%s1 + $0x48] sm:$0xf]
  %v148 = vld [vmem:[%s1 + $0x4c] sm:$0xf]
  %v149 = vld [vmem:[%s1 + $0x50] sm:$0xf]
  %v150 = vld [vmem:[%s1 + $0x54] sm:$0xf]
  %v151 = vld [vmem:[%s1 + $0x58] sm:$0xf]
  %v152 = vld [vmem:[%s1 + $0x5c] sm:$0xf]
  %v153 = vld [vmem:[%s1 + $0x60] sm:$0xf]
  %v154 = vld [vmem:[%s1 + $0x64] sm:$0xf]
  %v155 = vld [vmem:[%s1 + $0x68] sm:$0xf]
  %v156 = vld [vmem:[%s1 + $0x6c] sm:$0xf]
  %v157 = vld [vmem:[%s1 + $0x70] sm:$0xf]
  %v158 = vld [vmem:[%s1 + $0x74] sm:$0xf]
  %v159 = vld [vmem:[%s1 + $0x78] sm:$0xf]
  %v160 = vld [vmem:[%s1 + $0x7c] sm:$0xf]
  %v161 = vld [vmem:[%s1 + $0x80] sm:$0xf]
  %v162 = vld [vmem:[%s1 + $0x84] sm:$0xf]
  %v163 = vld [vmem:[%s1 + $0x88] sm:$0xf]
  %v164 = vld [vmem:[%s1 + $0x8c] sm:$0xf]
  %v165 = vld [vmem:[%s2] sm:$0x1]
  %v167 = vperm.slane %v165, 0
  %v205 = vunpack.c.l.b16 %v129
  %v206 = vunpack.c.l.b16 %v130
  %v207 = vunpack.c.l.b16 %v131
  %v208 = vunpack.c.l.b16 %v132
  %v209 = vunpack.c.l.b16 %v133
  %v210 = vunpack.c.l.b16 %v134
  %v211 = vunpack.c.l.b16 %v135
  %v212 = vunpack.c.l.b16 %v136
  %v213 = vunpack.c.l.b16 %v137
  %v214 = vunpack.c.l.b16 %v138
  %v215 = vunpack.c.l.b16 %v139
  %v216 = vunpack.c.l.b16 %v140
  %v217 = vunpack.c.l.b16 %v141
  %v218 = vunpack.c.l.b16 %v142
  %v219 = vunpack.c.l.b16 %v143
  %v220 = vunpack.c.l.b16 %v144
  %v221 = vunpack.c.l.b16 %v145
  %v222 = vunpack.c.l.b16 %v146
  %v223 = vunpack.c.l.b16 %v147
  %v224 = vunpack.c.l.b16 %v148
  %v225 = vunpack.c.l.b16 %v149
  %v226 = vunpack.c.l.b16 %v150
  %v227 = vunpack.c.l.b16 %v151
  %v228 = vunpack.c.l.b16 %v152
  %v229 = vunpack.c.l.b16 %v153
  %v230 = vunpack.c.l.b16 %v154
  %v231 = vunpack.c.l.b16 %v155
  %v232 = vunpack.c.l.b16 %v156
  %v233 = vunpack.c.l.b16 %v157
  %v234 = vunpack.c.l.b16 %v158
  %v235 = vunpack.c.l.b16 %v159
  %v236 = vunpack.c.l.b16 %v160
  %v237 = vunpack.c.l.b16 %v161
  %v238 = vunpack.c.l.b16 %v162
  %v239 = vunpack.c.l.b16 %v163
  %v240 = vunpack.c.l.b16 %v164
  %v241 = vpack.c.b16 %v206, %v205
  %v242 = vpack.c.b16 %v208, %v207
  %v243 = vpack.c.b16 %v210, %v209
  %v244 = vpack.c.b16 %v212, %v211
  %v245 = vpack.c.b16 %v214, %v213
  %v246 = vpack.c.b16 %v216, %v215
  %v247 = vpack.c.b16 %v218, %v217
  %v248 = vpack.c.b16 %v220, %v219
  %v249 = vpack.c.b16 %v222, %v221
  %v250 = vpack.c.b16 %v224, %v223
  %v251 = vpack.c.b16 %v226, %v225
  %v252 = vpack.c.b16 %v228, %v227
  %v253 = vpack.c.b16 %v230, %v229
  %v254 = vpack.c.b16 %v232, %v231
  %v255 = vpack.c.b16 %v234, %v233
  %v256 = vpack.c.b16 %v236, %v235
  %v257 = vpack.c.b16 %v238, %v237
  %v258 = vpack.c.b16 %v240, %v239
  %vm277 = vcmask 261120
  %v279 = vsel %vm277, %v92, 0
  %v282 = vsel %vm277, %v95, 0
  %v285 = vsel %vm277, %v98, 0
  %v288 = vsel %vm277, %v101, 0
  %v291 = vsel %vm277, %v104, 0
  %v294 = vsel %vm277, %v107, 0
  %v297 = vsel %vm277, %v110, 0
  %v300 = vsel %vm277, %v113, 0
  %v303 = vsel %vm277, %v116, 0
  %v306 = vsel %vm277, %v119, 0
  %v309 = vsel %vm277, %v122, 0
  %v312 = vsel %vm277, %v125, 0
  %v315 = vsel %vm277, %v128, 0
  %317 = vmatpush.bf16.msra.mxu0 %v248
  %318 = vmatpush.bf16.msra.mxu0 %v247
  %319 = vmatpush.bf16.msra.mxu0 %v246
  %320 = vmatpush.bf16.msra.mxu0 %v245
  %321 = vmatpush.bf16.msra.mxu0 %v244
  %322 = vmatpush.bf16.msra.mxu0 %v243
  %323 = vmatpush.bf16.msra.mxu0 %v242
  %324 = vmatpush.bf16.msra.mxu0 %v241
  %325 = vmatmul.bf16.gmra.mxu0 %v90
  %v326 = vpop.f32.mrf.mxu0
  %v327 = vadd.f32 %v167, %v326
  %v328 = vpop.f32.mrf.mxu0
  %v329 = vadd.f32 %v167, %v328
  %330 = vmatmul.bf16.gmra.mxu0 %v93
  %v331 = vpop.f32.mrf.mxu0
  %v332 = vadd.f32 %v167, %v331
  %v333 = vpop.f32.mrf.mxu0
  %v334 = vadd.f32 %v167, %v333
  %335 = vmatmul.bf16.gmra.mxu0 %v96
  %v336 = vpop.f32.mrf.mxu0
  %v337 = vadd.f32 %v167, %v336
  %v338 = vpop.f32.mrf.mxu0
  %v339 = vadd.f32 %v167, %v338
  %340 = vmatmul.bf16.gmra.mxu0 %v99
  %v341 = vpop.f32.mrf.mxu0
  %v342 = vadd.f32 %v167, %v341
  %v343 = vpop.f32.mrf.mxu0
  %v344 = vadd.f32 %v167, %v343
  %345 = vmatmul.bf16.gmra.mxu0 %v102
  %v346 = vpop.f32.mrf.mxu0
  %v347 = vadd.f32 %v167, %v346
  %v348 = vpop.f32.mrf.mxu0
  %v349 = vadd.f32 %v167, %v348
  %350 = vmatmul.bf16.gmra.mxu0 %v105
  %v351 = vpop.f32.mrf.mxu0
  %v352 = vadd.f32 %v167, %v351
  %v353 = vpop.f32.mrf.mxu0
  %v354 = vadd.f32 %v167, %v353
  %355 = vmatmul.bf16.gmra.mxu0 %v108
  %v356 = vpop.f32.mrf.mxu0
  %v357 = vadd.f32 %v167, %v356
  %v358 = vpop.f32.mrf.mxu0
  %v359 = vadd.f32 %v167, %v358
  %360 = vmatmul.bf16.gmra.mxu0 %v111
  %v361 = vpop.f32.mrf.mxu0
  %v362 = vadd.f32 %v167, %v361
  %v363 = vpop.f32.mrf.mxu0
  %v364 = vadd.f32 %v167, %v363
  %365 = vmatmul.bf16.gmra.mxu0 %v114
  %v366 = vpop.f32.mrf.mxu0
  %v367 = vadd.f32 %v167, %v366
  %v368 = vpop.f32.mrf.mxu0
  %v369 = vadd.f32 %v167, %v368
  %370 = vmatmul.bf16.gmra.mxu0 %v117
  %v371 = vpop.f32.mrf.mxu0
  %v372 = vadd.f32 %v167, %v371
  %v373 = vpop.f32.mrf.mxu0
  %v374 = vadd.f32 %v167, %v373
  %375 = vmatmul.bf16.gmra.mxu0 %v120
  %v376 = vpop.f32.mrf.mxu0
  %v377 = vadd.f32 %v167, %v376
  %v378 = vpop.f32.mrf.mxu0
  %v379 = vadd.f32 %v167, %v378
  %380 = vmatmul.bf16.gmra.mxu0 %v123
  %v381 = vpop.f32.mrf.mxu0
  %v382 = vadd.f32 %v167, %v381
  %v383 = vpop.f32.mrf.mxu0
  %v384 = vadd.f32 %v167, %v383
  %385 = vmatmul.bf16.gmra.mxu0 %v126
  %v386 = vpop.f32.mrf.mxu0
  %v387 = vadd.f32 %v167, %v386
  %v388 = vpop.f32.mrf.mxu0
  %389 = vdwg.mxu0
  %390 = vmatpush.bf16.msra.mxu0 %v256
  %391 = vmatpush.bf16.msra.mxu0 %v255
  %392 = vmatpush.bf16.msra.mxu0 %v254
  %393 = vmatpush.bf16.msra.mxu0 %v253
  %394 = vmatpush.bf16.msra.mxu0 %v252
  %395 = vmatpush.bf16.msra.mxu0 %v251
  %396 = vmatpush.bf16.msra.mxu0 %v250
  %397 = vmatpush.bf16.msra.mxu0 %v249
  %398 = vmatmul.bf16.gmra.mxu0 %v91
  %v399 = vpop.f32.mrf.mxu0
  %v400 = vadd.f32 %v327, %v399
  %v401 = vpop.f32.mrf.mxu0
  %v402 = vadd.f32 %v329, %v401
  %403 = vmatmul.bf16.gmra.mxu0 %v94
  %v404 = vpop.f32.mrf.mxu0
  %v405 = vadd.f32 %v332, %v404
  %v406 = vpop.f32.mrf.mxu0
  %v407 = vadd.f32 %v334, %v406
  %408 = vmatmul.bf16.gmra.mxu0 %v97
  %v409 = vpop.f32.mrf.mxu0
  %v410 = vadd.f32 %v337, %v409
  %v411 = vpop.f32.mrf.mxu0
  %v412 = vadd.f32 %v339, %v411
  %413 = vmatmul.bf16.gmra.mxu0 %v100
  %v414 = vpop.f32.mrf.mxu0
  %v415 = vadd.f32 %v342, %v414
  %v416 = vpop.f32.mrf.mxu0
  %v417 = vadd.f32 %v344, %v416
  %418 = vmatmul.bf16.gmra.mxu0 %v103
  %v419 = vpop.f32.mrf.mxu0
  %v420 = vadd.f32 %v347, %v419
  %v421 = vpop.f32.mrf.mxu0
  %v422 = vadd.f32 %v349, %v421
  %423 = vmatmul.bf16.gmra.mxu0 %v106
  %v424 = vpop.f32.mrf.mxu0
  %v425 = vadd.f32 %v352, %v424
  %v426 = vpop.f32.mrf.mxu0
  %v427 = vadd.f32 %v354, %v426
  %428 = vmatmul.bf16.gmra.mxu0 %v109
  %v429 = vpop.f32.mrf.mxu0
  %v430 = vadd.f32 %v357, %v429
  %v431 = vpop.f32.mrf.mxu0
  %v432 = vadd.f32 %v359, %v431
  %433 = vmatmul.bf16.gmra.mxu0 %v112
  %v434 = vpop.f32.mrf.mxu0
  %v435 = vadd.f32 %v362, %v434
  %v436 = vpop.f32.mrf.mxu0
  %v437 = vadd.f32 %v364, %v436
  %438 = vmatmul.bf16.gmra.mxu0 %v115
  %v439 = vpop.f32.mrf.mxu0
  %v440 = vadd.f32 %v367, %v439
  %v441 = vpop.f32.mrf.mxu0
  %v442 = vadd.f32 %v369, %v441
  %443 = vmatmul.bf16.gmra.mxu0 %v118
  %v444 = vpop.f32.mrf.mxu0
  %v445 = vadd.f32 %v372, %v444
  %v446 = vpop.f32.mrf.mxu0
  %v447 = vadd.f32 %v374, %v446
  %448 = vmatmul.bf16.gmra.mxu0 %v121
  %v449 = vpop.f32.mrf.mxu0
  %v450 = vadd.f32 %v377, %v449
  %v451 = vpop.f32.mrf.mxu0
  %v452 = vadd.f32 %v379, %v451
  %453 = vmatmul.bf16.gmra.mxu0 %v124
  %v454 = vpop.f32.mrf.mxu0
  %v455 = vadd.f32 %v382, %v454
  %v456 = vpop.f32.mrf.mxu0
  %v457 = vadd.f32 %v384, %v456
  %458 = vmatmul.bf16.gmra.mxu0 %v127
  %v459 = vpop.f32.mrf.mxu0
  %v460 = vadd.f32 %v387, %v459
  %v461 = vpop.f32.mrf.mxu0
  %462 = vdwg.mxu0
  %463 = vmatpush.bf16.msra.mxu0 0
  %464 = vmatpush.bf16.msra.mxu0 0
  %465 = vmatpush.bf16.msra.mxu0 0
  %466 = vmatpush.bf16.msra.mxu0 0
  %467 = vmatpush.bf16.msra.mxu0 0
  %468 = vmatpush.bf16.msra.mxu0 0
  %469 = vmatpush.bf16.msra.mxu0 %v258
  %470 = vmatpush.bf16.msra.mxu0 %v257
  %471 = vmatmul.bf16.gmra.mxu0 %v279
  %v472 = vpop.f32.mrf.mxu0
  %v473 = vadd.f32 %v400, %v472
  %v474 = vpop.f32.mrf.mxu0
  %v475 = vadd.f32 %v402, %v474
  %476 = vmatmul.bf16.gmra.mxu0 %v282
  %v477 = vpop.f32.mrf.mxu0
  %v478 = vadd.f32 %v405, %v477
  %v479 = vpop.f32.mrf.mxu0
  %v480 = vadd.f32 %v407, %v479
  %481 = vmatmul.bf16.gmra.mxu0 %v285
  %v482 = vpop.f32.mrf.mxu0
  %v483 = vadd.f32 %v410, %v482
  %v484 = vpop.f32.mrf.mxu0
  %v485 = vadd.f32 %v412, %v484
  %486 = vmatmul.bf16.gmra.mxu0 %v288
  %v487 = vpop.f32.mrf.mxu0
  %v488 = vadd.f32 %v415, %v487
  %v489 = vpop.f32.mrf.mxu0
  %v490 = vadd.f32 %v417, %v489
  %491 = vmatmul.bf16.gmra.mxu0 %v291
  %v492 = vpop.f32.mrf.mxu0
  %v493 = vadd.f32 %v420, %v492
  %v494 = vpop.f32.mrf.mxu0
  %v495 = vadd.f32 %v422, %v494
  %496 = vmatmul.bf16.gmra.mxu0 %v294
  %v497 = vpop.f32.mrf.mxu0
  %v498 = vadd.f32 %v425, %v497
  %v499 = vpop.f32.mrf.mxu0
  %v500 = vadd.f32 %v427, %v499
  %501 = vmatmul.bf16.gmra.mxu0 %v297
  %v502 = vpop.f32.mrf.mxu0
  %v503 = vadd.f32 %v430, %v502
  %v504 = vpop.f32.mrf.mxu0
  %v505 = vadd.f32 %v432, %v504
  %506 = vmatmul.bf16.gmra.mxu0 %v300
  %v507 = vpop.f32.mrf.mxu0
  %v508 = vadd.f32 %v435, %v507
  %v509 = vpop.f32.mrf.mxu0
  %v510 = vadd.f32 %v437, %v509
  %511 = vmatmul.bf16.gmra.mxu0 %v303
  %v512 = vpop.f32.mrf.mxu0
  %v513 = vadd.f32 %v440, %v512
  %v514 = vpop.f32.mrf.mxu0
  %v515 = vadd.f32 %v442, %v514
  %516 = vmatmul.bf16.gmra.mxu0 %v306
  %v517 = vpop.f32.mrf.mxu0
  %v518 = vadd.f32 %v445, %v517
  %v519 = vpop.f32.mrf.mxu0
  %v520 = vadd.f32 %v447, %v519
  %521 = vmatmul.bf16.gmra.mxu0 %v309
  %v522 = vpop.f32.mrf.mxu0
  %v523 = vadd.f32 %v450, %v522
  %v524 = vpop.f32.mrf.mxu0
  %v525 = vadd.f32 %v452, %v524
  %526 = vmatmul.bf16.gmra.mxu0 %v312
  %v527 = vpop.f32.mrf.mxu0
  %v528 = vadd.f32 %v455, %v527
  %v529 = vpop.f32.mrf.mxu0
  %v530 = vadd.f32 %v457, %v529
  %531 = vmatmul.bf16.gmra.mxu0 %v315
  %v532 = vpop.f32.mrf.mxu0
  %v533 = vadd.f32 %v460, %v532
  %v534 = vpop.f32.mrf.mxu0
  %535 = vdwg.mxu0
  %v536 = vmax.f32 %v473, 0.0
  %v537 = vmax.f32 %v475, 0.0
  %v538 = vmax.f32 %v478, 0.0
  %v539 = vmax.f32 %v480, 0.0
  %v540 = vmax.f32 %v483, 0.0
  %v541 = vmax.f32 %v485, 0.0
  %v542 = vmax.f32 %v488, 0.0
  %v543 = vmax.f32 %v490, 0.0
  %v544 = vmax.f32 %v493, 0.0
  %v545 = vmax.f32 %v495, 0.0
  %v546 = vmax.f32 %v498, 0.0
  %v547 = vmax.f32 %v500, 0.0
  %v548 = vmax.f32 %v503, 0.0
  %v549 = vmax.f32 %v505, 0.0
  %v550 = vmax.f32 %v508, 0.0
  %v551 = vmax.f32 %v510, 0.0
  %v552 = vmax.f32 %v513, 0.0
  %v553 = vmax.f32 %v515, 0.0
  %v554 = vmax.f32 %v518, 0.0
  %v555 = vmax.f32 %v520, 0.0
  %v556 = vmax.f32 %v523, 0.0
  %v557 = vmax.f32 %v525, 0.0
  %v558 = vmax.f32 %v528, 0.0
  %v559 = vmax.f32 %v530, 0.0
  %v560 = vmax.f32 %v533, 0.0
  %561 = vst [vmem:[%s3] sm:$0xff] %v536
  %562 = vst [vmem:[%s3 + $0x8] sm:$0xff] %v537
  %563 = vst [vmem:[%s3 + $0x10] sm:$0xff] %v538
  %564 = vst [vmem:[%s3 + $0x18] sm:$0xff] %v539
  %565 = vst [vmem:[%s3 + $0x20] sm:$0xff] %v540
  %566 = vst [vmem:[%s3 + $0x28] sm:$0xff] %v541
  %567 = vst [vmem:[%s3 + $0x30] sm:$0xff] %v542
  %568 = vst [vmem:[%s3 + $0x38] sm:$0xff] %v543
  %569 = vst [vmem:[%s3 + $0x40] sm:$0xff] %v544
  %570 = vst [vmem:[%s3 + $0x48] sm:$0xff] %v545
  %571 = vst [vmem:[%s3 + $0x50] sm:$0xff] %v546
  %572 = vst [vmem:[%s3 + $0x58] sm:$0xff] %v547
  %573 = vst [vmem:[%s3 + $0x60] sm:$0xff] %v548
  %574 = vst [vmem:[%s3 + $0x68] sm:$0xff] %v549
  %575 = vst [vmem:[%s3 + $0x70] sm:$0xff] %v550
  %576 = vst [vmem:[%s3 + $0x78] sm:$0xff] %v551
  %577 = vst [vmem:[%s3 + $0x80] sm:$0xff] %v552
  %578 = vst [vmem:[%s3 + $0x88] sm:$0xff] %v553
  %579 = vst [vmem:[%s3 + $0x90] sm:$0xff] %v554
  %580 = vst [vmem:[%s3 + $0x98] sm:$0xff] %v555
  %581 = vst [vmem:[%s3 + $0xa0] sm:$0xff] %v556
  %582 = vst [vmem:[%s3 + $0xa8] sm:$0xff] %v557
  %583 = vst [vmem:[%s3 + $0xb0] sm:$0xff] %v558
  %584 = vst [vmem:[%s3 + $0xb8] sm:$0xff] %v559
  %585 = vst [vmem:[%s3 + $0xc0] sm:$0xff] %v560
  // Predicated region
  $region14: #{_lambda_.10} parent=0 // pred_check
    _
  $region15: #{_lambda_.10} parent=0 // pred_check_branch
    %587 = sbr.rel (0) target = $region17
  $region16: #{_lambda_.10} parent=0 // pred_region
    _
  $region17: #{_lambda_.10} parent=0 // pred_fallthru
    _
  // Predicated region
  $region18: #{_lambda_.10} parent=0 // pred_check
    _
  $region19: #{_lambda_.10} parent=0 // pred_check_branch
    %589 = sbr.rel (0) target = $region21
  $region20: #{_lambda_.10} parent=0 // pred_region
    _
  $region21: #{_lambda_.10} parent=0 // pred_fallthru
    _

// kernel: _lambda_.11
$region0: #{_lambda_.11}
  #allocation0 [shape = 'u32[]', space=smem, size = 0x4, offset = 0x4, fixed_abs, tag = 'smem constant byte address 0x4 - core index']
  #allocation1 [shape = 'u32[72,128]{1,0:T(1,128)}', space=vmem, size = 0x9000, scoped, tag = 'internal scratch']
  %s0 = inlined_call_operand.vmem [shape: f32[32,576], index: 0, kind: input, shape index: {}]
  %s1 = inlined_call_operand.vmem [shape: bf16[576,128], index: 1, kind: input, shape index: {}]
  %s2 = inlined_call_operand.vmem [shape: f32[1,128], index: 2, kind: input, shape index: {}]
  %s3 = inlined_call_operand.vmem [shape: f32[32,128], index: 3, kind: output, shape index: {}]
  %s4 = sld [smem:[#allocation0]]
  $region22: #{_lambda_.11} parent=0
    _
  %s6 = ssub.s32 1, %s4
  %s7 = scalar_select 0, %s6, %s4
  // Predicated region
  $region2: #{_lambda_.11} parent=0 // pred_check
    _
  $region3: #{_lambda_.11} parent=0 // pred_check_branch
    %9 = sbr.rel (0) target = $region5
  $region4: #{_lambda_.11} parent=0 // pred_region
    _
  $region5: #{_lambda_.11} parent=0 // pred_fallthru
    _
  // Predicated region
  $region6: #{_lambda_.11} parent=0 // pred_check
    _
  $region7: #{_lambda_.11} parent=0 // pred_check_branch
    %11 = sbr.rel (0) target = $region9
  $region8: #{_lambda_.11} parent=0 // pred_region
    _
  $region9: #{_lambda_.11} parent=0 // pred_fallthru
    _
  // Predicated region
  $region10: #{_lambda_.11} parent=0 // pred_check
    _
  $region11: #{_lambda_.11} parent=0 // pred_check_branch
    %13 = sbr.rel (0) target = $region13
  $region12: #{_lambda_.11} parent=0 // pred_region
    _
  $region13: #{_lambda_.11} parent=0 // pred_fallthru
    _
  %v15 = vld [vmem:[%s0] sm:$0xff]
  %v16 = vld [vmem:[%s0 + $0x8] sm:$0xff]
  %v17 = vld [vmem:[%s0 + $0x10] sm:$0xff]
  %v18 = vld [vmem:[%s0 + $0x18] sm:$0xff]
  %v19 = vld [vmem:[%s0 + $0x20] sm:$0xff]
  %v20 = vld [vmem:[%s0 + $0x28] sm:$0xff]
  %v21 = vld [vmem:[%s0 + $0x30] sm:$0xff]
  %v22 = vld [vmem:[%s0 + $0x38] sm:$0xff]
  %v23 = vld [vmem:[%s0 + $0x40] sm:$0xff]
  %v24 = vld [vmem:[%s0 + $0x48] sm:$0xff]
  %v25 = vld [vmem:[%s0 + $0x50] sm:$0xff]
  %v26 = vld [vmem:[%s0 + $0x58] sm:$0xff]
  %v27 = vld [vmem:[%s0 + $0x60] sm:$0xff]
  %v28 = vld [vmem:[%s0 + $0x68] sm:$0xff]
  %v29 = vld [vmem:[%s0 + $0x70] sm:$0xff]
  %v30 = vld [vmem:[%s0 + $0x78] sm:$0xff]
  %v31 = vld [vmem:[%s0 + $0x80] sm:$0xff]
  %v32 = vld [vmem:[%s0 + $0x88] sm:$0xff]
  %v33 = vld [vmem:[%s0 + $0x90] sm:$0xff]
  %v34 = vld [vmem:[%s0 + $0x98] sm:$0xff]
  %v35 = vpack.c.bf16 %v20, %v15
  %v36 = vpack.c.bf16 %v21, %v16
  %v37 = vpack.c.bf16 %v22, %v17
  %v38 = vpack.c.bf16 %v23, %v18
  %v39 = vpack.c.bf16 %v24, %v19
  %v40 = vpack.c.bf16 %v30, %v25
  %v41 = vpack.c.bf16 %v31, %v26
  %v42 = vpack.c.bf16 %v32, %v27
  %v43 = vpack.c.bf16 %v33, %v28
  %v44 = vpack.c.bf16 %v34, %v29
  %v45 = vld [vmem:[%s1] sm:$0xf]
  %v46 = vld [vmem:[%s1 + $0x4] sm:$0xf]
  %v47 = vld [vmem:[%s1 + $0x8] sm:$0xf]
  %v48 = vld [vmem:[%s1 + $0xc] sm:$0xf]
  %v49 = vld [vmem:[%s1 + $0x10] sm:$0xf]
  %v50 = vld [vmem:[%s1 + $0x14] sm:$0xf]
  %v51 = vld [vmem:[%s1 + $0x18] sm:$0xf]
  %v52 = vld [vmem:[%s1 + $0x1c] sm:$0xf]
  %v53 = vld [vmem:[%s1 + $0x20] sm:$0xf]
  %v54 = vld [vmem:[%s1 + $0x24] sm:$0xf]
  %v55 = vld [vmem:[%s1 + $0x28] sm:$0xf]
  %v56 = vld [vmem:[%s1 + $0x2c] sm:$0xf]
  %v57 = vld [vmem:[%s1 + $0x30] sm:$0xf]
  %v58 = vld [vmem:[%s1 + $0x34] sm:$0xf]
  %v59 = vld [vmem:[%s1 + $0x38] sm:$0xf]
  %v60 = vld [vmem:[%s1 + $0x3c] sm:$0xf]
  %v61 = vld [vmem:[%s1 + $0x40] sm:$0xf]
  %v62 = vld [vmem:[%s1 + $0x44] sm:$0xf]
  %v63 = vld [vmem:[%s1 + $0x48] sm:$0xf]
  %v64 = vld [vmem:[%s1 + $0x4c] sm:$0xf]
  %v65 = vld [vmem:[%s1 + $0x50] sm:$0xf]
  %v66 = vld [vmem:[%s1 + $0x54] sm:$0xf]
  %v67 = vld [vmem:[%s1 + $0x58] sm:$0xf]
  %v68 = vld [vmem:[%s1 + $0x5c] sm:$0xf]
  %v69 = vld [vmem:[%s1 + $0x60] sm:$0xf]
  %v70 = vld [vmem:[%s1 + $0x64] sm:$0xf]
  %v71 = vld [vmem:[%s1 + $0x68] sm:$0xf]
  %v72 = vld [vmem:[%s1 + $0x6c] sm:$0xf]
  %v73 = vld [vmem:[%s1 + $0x70] sm:$0xf]
  %v74 = vld [vmem:[%s1 + $0x74] sm:$0xf]
  %v75 = vld [vmem:[%s1 + $0x78] sm:$0xf]
  %v76 = vld [vmem:[%s1 + $0x7c] sm:$0xf]
  %v77 = vld [vmem:[%s1 + $0x80] sm:$0xf]
  %v78 = vld [vmem:[%s1 + $0x84] sm:$0xf]
  %v79 = vld [vmem:[%s1 + $0x88] sm:$0xf]
  %v80 = vld [vmem:[%s1 + $0x8c] sm:$0xf]
  %v81 = vld [vmem:[%s1 + $0x90] sm:$0xf]
  %v82 = vld [vmem:[%s1 + $0x94] sm:$0xf]
  %v83 = vld [vmem:[%s1 + $0x98] sm:$0xf]
  %v84 = vld [vmem:[%s1 + $0x9c] sm:$0xf]
  %v85 = vld [vmem:[%s1 + $0xa0] sm:$0xf]
  %v86 = vld [vmem:[%s1 + $0xa4] sm:$0xf]
  %v87 = vld [vmem:[%s1 + $0xa8] sm:$0xf]
  %v88 = vld [vmem:[%s1 + $0xac] sm:$0xf]
  %v89 = vld [vmem:[%s1 + $0xb0] sm:$0xf]
  %v90 = vld [vmem:[%s1 + $0xb4] sm:$0xf]
  %v91 = vld [vmem:[%s1 + $0xb8] sm:$0xf]
  %v92 = vld [vmem:[%s1 + $0xbc] sm:$0xf]
  %v93 = vld [vmem:[%s1 + $0xc0] sm:$0xf]
  %v94 = vld [vmem:[%s1 + $0xc4] sm:$0xf]
  %v95 = vld [vmem:[%s1 + $0xc8] sm:$0xf]
  %v96 = vld [vmem:[%s1 + $0xcc] sm:$0xf]
  %v97 = vld [vmem:[%s1 + $0xd0] sm:$0xf]
  %v98 = vld [vmem:[%s1 + $0xd4] sm:$0xf]
  %v99 = vld [vmem:[%s1 + $0xd8] sm:$0xf]
  %v100 = vld [vmem:[%s1 + $0xdc] sm:$0xf]
  %v101 = vld [vmem:[%s1 + $0xe0] sm:$0xf]
  %v102 = vld [vmem:[%s1 + $0xe4] sm:$0xf]
  %v103 = vld [vmem:[%s1 + $0xe8] sm:$0xf]
  %v104 = vld [vmem:[%s1 + $0xec] sm:$0xf]
  %v105 = vld [vmem:[%s1 + $0xf0] sm:$0xf]
  %v106 = vld [vmem:[%s1 + $0xf4] sm:$0xf]
  %v107 = vld [vmem:[%s1 + $0xf8] sm:$0xf]
  %v108 = vld [vmem:[%s1 + $0xfc] sm:$0xf]
  %v109 = vld [vmem:[%s1 + $0x100] sm:$0xf]
  %v110 = vld [vmem:[%s1 + $0x104] sm:$0xf]
  %v111 = vld [vmem:[%s1 + $0x108] sm:$0xf]
  %v112 = vld [vmem:[%s1 + $0x10c] sm:$0xf]
  %v113 = vld [vmem:[%s1 + $0x110] sm:$0xf]
  %v114 = vld [vmem:[%s1 + $0x114] sm:$0xf]
  %v115 = vld [vmem:[%s1 + $0x118] sm:$0xf]
  %v116 = vld [vmem:[%s1 + $0x11c] sm:$0xf]
  %v117 = vld [vmem:[%s2] sm:$0x1]
  %v119 = vperm.slane %v117, 0
  %v193 = vunpack.c.l.b16 %v45
  %v194 = vunpack.c.l.b16 %v46
  %v195 = vunpack.c.l.b16 %v47
  %v196 = vunpack.c.l.b16 %v48
  %v197 = vunpack.c.l.b16 %v49
  %v198 = vunpack.c.l.b16 %v50
  %v199 = vunpack.c.l.b16 %v51
  %v200 = vunpack.c.l.b16 %v52
  %v201 = vunpack.c.l.b16 %v53
  %v202 = vunpack.c.l.b16 %v54
  %v203 = vunpack.c.l.b16 %v55
  %v204 = vunpack.c.l.b16 %v56
  %v205 = vunpack.c.l.b16 %v57
  %v206 = vunpack.c.l.b16 %v58
  %v207 = vunpack.c.l.b16 %v59
  %v208 = vunpack.c.l.b16 %v60
  %v209 = vunpack.c.l.b16 %v61
  %v210 = vunpack.c.l.b16 %v62
  %v211 = vunpack.c.l.b16 %v63
  %v212 = vunpack.c.l.b16 %v64
  %v213 = vunpack.c.l.b16 %v65
  %v214 = vunpack.c.l.b16 %v66
  %v215 = vunpack.c.l.b16 %v67
  %v216 = vunpack.c.l.b16 %v68
  %v217 = vunpack.c.l.b16 %v69
  %v218 = vunpack.c.l.b16 %v70
  %v219 = vunpack.c.l.b16 %v71
  %v220 = vunpack.c.l.b16 %v72
  %v221 = vunpack.c.l.b16 %v73
  %v222 = vunpack.c.l.b16 %v74
  %v223 = vunpack.c.l.b16 %v75
  %v224 = vunpack.c.l.b16 %v76
  %v225 = vunpack.c.l.b16 %v77
  %v226 = vunpack.c.l.b16 %v78
  %v227 = vunpack.c.l.b16 %v79
  %v228 = vunpack.c.l.b16 %v80
  %v229 = vunpack.c.l.b16 %v81
  %v230 = vunpack.c.l.b16 %v82
  %v231 = vunpack.c.l.b16 %v83
  %v232 = vunpack.c.l.b16 %v84
  %v233 = vunpack.c.l.b16 %v85
  %v234 = vunpack.c.l.b16 %v86
  %v235 = vunpack.c.l.b16 %v87
  %v236 = vunpack.c.l.b16 %v88
  %v237 = vunpack.c.l.b16 %v89
  %v238 = vunpack.c.l.b16 %v90
  %v239 = vunpack.c.l.b16 %v91
  %v240 = vunpack.c.l.b16 %v92
  %v241 = vunpack.c.l.b16 %v93
  %v242 = vunpack.c.l.b16 %v94
  %v243 = vunpack.c.l.b16 %v95
  %v244 = vunpack.c.l.b16 %v96
  %v245 = vunpack.c.l.b16 %v97
  %v246 = vunpack.c.l.b16 %v98
  %v247 = vunpack.c.l.b16 %v99
  %v248 = vunpack.c.l.b16 %v100
  %v249 = vunpack.c.l.b16 %v101
  %v250 = vunpack.c.l.b16 %v102
  %v251 = vunpack.c.l.b16 %v103
  %v252 = vunpack.c.l.b16 %v104
  %v253 = vunpack.c.l.b16 %v105
  %v254 = vunpack.c.l.b16 %v106
  %v255 = vunpack.c.l.b16 %v107
  %v256 = vunpack.c.l.b16 %v108
  %v257 = vunpack.c.l.b16 %v109
  %v258 = vunpack.c.l.b16 %v110
  %v259 = vunpack.c.l.b16 %v111
  %v260 = vunpack.c.l.b16 %v112
  %v261 = vunpack.c.l.b16 %v113
  %v262 = vunpack.c.l.b16 %v114
  %v263 = vunpack.c.l.b16 %v115
  %v264 = vunpack.c.l.b16 %v116
  %v265 = vpack.c.b16 %v194, %v193
  %v266 = vpack.c.b16 %v196, %v195
  %v267 = vpack.c.b16 %v198, %v197
  %v268 = vpack.c.b16 %v200, %v199
  %v269 = vpack.c.b16 %v202, %v201
  %v270 = vpack.c.b16 %v204, %v203
  %v271 = vpack.c.b16 %v206, %v205
  %v272 = vpack.c.b16 %v208, %v207
  %v273 = vpack.c.b16 %v210, %v209
  %v274 = vpack.c.b16 %v212, %v211
  %v275 = vpack.c.b16 %v214, %v213
  %v276 = vpack.c.b16 %v216, %v215
  %v277 = vpack.c.b16 %v218, %v217
  %v278 = vpack.c.b16 %v220, %v219
  %v279 = vpack.c.b16 %v222, %v221
  %v280 = vpack.c.b16 %v224, %v223
  %v281 = vpack.c.b16 %v226, %v225
  %v282 = vpack.c.b16 %v228, %v227
  %v283 = vpack.c.b16 %v230, %v229
  %v284 = vpack.c.b16 %v232, %v231
  %v285 = vpack.c.b16 %v234, %v233
  %v286 = vpack.c.b16 %v236, %v235
  %v287 = vpack.c.b16 %v238, %v237
  %v288 = vpack.c.b16 %v240, %v239
  %v289 = vpack.c.b16 %v242, %v241
  %v290 = vpack.c.b16 %v244, %v243
  %v291 = vpack.c.b16 %v246, %v245
  %v292 = vpack.c.b16 %v248, %v247
  %v293 = vpack.c.b16 %v250, %v249
  %v294 = vpack.c.b16 %v252, %v251
  %v295 = vpack.c.b16 %v254, %v253
  %v296 = vpack.c.b16 %v256, %v255
  %v297 = vpack.c.b16 %v258, %v257
  %v298 = vpack.c.b16 %v260, %v259
  %v299 = vpack.c.b16 %v262, %v261
  %v300 = vpack.c.b16 %v264, %v263
  %vm337 = vcmask 523264
  %v339 = vsel %vm337, %v39, 0
  %v342 = vsel %vm337, %v44, 0
  %344 = vmatpush.bf16.msra.mxu0 %v272
  %345 = vmatpush.bf16.msra.mxu0 %v271
  %346 = vmatpush.bf16.msra.mxu0 %v270
  %347 = vmatpush.bf16.msra.mxu0 %v269
  %348 = vmatpush.bf16.msra.mxu0 %v268
  %349 = vmatpush.bf16.msra.mxu0 %v267
  %350 = vmatpush.bf16.msra.mxu0 %v266
  %351 = vmatpush.bf16.msra.mxu0 %v265
  %352 = vmatmul.bf16.gmra.mxu0 %v35
  %v353 = vpop.f32.mrf.mxu0
  %v354 = vadd.f32 %v119, %v353
  %v355 = vpop.f32.mrf.mxu0
  %v356 = vadd.f32 %v119, %v355
  %357 = vmatmul.bf16.gmra.mxu0 %v40
  %v358 = vpop.f32.mrf.mxu0
  %v359 = vadd.f32 %v119, %v358
  %v360 = vpop.f32.mrf.mxu0
  %v361 = vadd.f32 %v119, %v360
  %362 = vdwg.mxu0
  %363 = vmatpush.bf16.msra.mxu0 %v280
  %364 = vmatpush.bf16.msra.mxu0 %v279
  %365 = vmatpush.bf16.msra.mxu0 %v278
  %366 = vmatpush.bf16.msra.mxu0 %v277
  %367 = vmatpush.bf16.msra.mxu0 %v276
  %368 = vmatpush.bf16.msra.mxu0 %v275
  %369 = vmatpush.bf16.msra.mxu0 %v274
  %370 = vmatpush.bf16.msra.mxu0 %v273
  %371 = vmatmul.bf16.gmra.mxu0 %v36
  %v372 = vpop.f32.mrf.mxu0
  %v373 = vadd.f32 %v354, %v372
  %v374 = vpop.f32.mrf.mxu0
  %v375 = vadd.f32 %v356, %v374
  %376 = vmatmul.bf16.gmra.mxu0 %v41
  %v377 = vpop.f32.mrf.mxu0
  %v378 = vadd.f32 %v359, %v377
  %v379 = vpop.f32.mrf.mxu0
  %v380 = vadd.f32 %v361, %v379
  %381 = vdwg.mxu0
  %382 = vmatpush.bf16.msra.mxu0 %v288
  %383 = vmatpush.bf16.msra.mxu0 %v287
  %384 = vmatpush.bf16.msra.mxu0 %v286
  %385 = vmatpush.bf16.msra.mxu0 %v285
  %386 = vmatpush.bf16.msra.mxu0 %v284
  %387 = vmatpush.bf16.msra.mxu0 %v283
  %388 = vmatpush.bf16.msra.mxu0 %v282
  %389 = vmatpush.bf16.msra.mxu0 %v281
  %390 = vmatmul.bf16.gmra.mxu0 %v37
  %v391 = vpop.f32.mrf.mxu0
  %v392 = vadd.f32 %v373, %v391
  %v393 = vpop.f32.mrf.mxu0
  %v394 = vadd.f32 %v375, %v393
  %395 = vmatmul.bf16.gmra.mxu0 %v42
  %v396 = vpop.f32.mrf.mxu0
  %v397 = vadd.f32 %v378, %v396
  %v398 = vpop.f32.mrf.mxu0
  %v399 = vadd.f32 %v380, %v398
  %400 = vdwg.mxu0
  %401 = vmatpush.bf16.msra.mxu0 %v296
  %402 = vmatpush.bf16.msra.mxu0 %v295
  %403 = vmatpush.bf16.msra.mxu0 %v294
  %404 = vmatpush.bf16.msra.mxu0 %v293
  %405 = vmatpush.bf16.msra.mxu0 %v292
  %406 = vmatpush.bf16.msra.mxu0 %v291
  %407 = vmatpush.bf16.msra.mxu0 %v290
  %408 = vmatpush.bf16.msra.mxu0 %v289
  %409 = vmatmul.bf16.gmra.mxu0 %v38
  %v410 = vpop.f32.mrf.mxu0
  %v411 = vadd.f32 %v392, %v410
  %v412 = vpop.f32.mrf.mxu0
  %v413 = vadd.f32 %v394, %v412
  %414 = vmatmul.bf16.gmra.mxu0 %v43
  %v415 = vpop.f32.mrf.mxu0
  %v416 = vadd.f32 %v397, %v415
  %v417 = vpop.f32.mrf.mxu0
  %v418 = vadd.f32 %v399, %v417
  %419 = vdwg.mxu0
  %420 = vmatpush.bf16.msra.mxu0 0
  %421 = vmatpush.bf16.msra.mxu0 0
  %422 = vmatpush.bf16.msra.mxu0 0
  %423 = vmatpush.bf16.msra.mxu0 0
  %424 = vmatpush.bf16.msra.mxu0 %v300
  %425 = vmatpush.bf16.msra.mxu0 %v299
  %426 = vmatpush.bf16.msra.mxu0 %v298
  %427 = vmatpush.bf16.msra.mxu0 %v297
  %428 = vmatmul.bf16.gmra.mxu0 %v339
  %v429 = vpop.f32.mrf.mxu0
  %v430 = vadd.f32 %v411, %v429
  %v431 = vpop.f32.mrf.mxu0
  %v432 = vadd.f32 %v413, %v431
  %433 = vmatmul.bf16.gmra.mxu0 %v342
  %v434 = vpop.f32.mrf.mxu0
  %v435 = vadd.f32 %v416, %v434
  %v436 = vpop.f32.mrf.mxu0
  %v437 = vadd.f32 %v418, %v436
  %438 = vdwg.mxu0
  %v439 = vmax.f32 %v430, 0.0
  %v440 = vmax.f32 %v432, 0.0
  %v441 = vmax.f32 %v435, 0.0
  %v442 = vmax.f32 %v437, 0.0
  %443 = vst [vmem:[%s3] sm:$0xff] %v439
  %444 = vst [vmem:[%s3 + $0x8] sm:$0xff] %v440
  %445 = vst [vmem:[%s3 + $0x10] sm:$0xff] %v441
  %446 = vst [vmem:[%s3 + $0x18] sm:$0xff] %v442
  // Predicated region
  $region14: #{_lambda_.11} parent=0 // pred_check
    _
  $region15: #{_lambda_.11} parent=0 // pred_check_branch
    %448 = sbr.rel (0) target = $region17
  $region16: #{_lambda_.11} parent=0 // pred_region
    _
  $region17: #{_lambda_.11} parent=0 // pred_fallthru
    _
  // Predicated region
  $region18: #{_lambda_.11} parent=0 // pred_check
    _
  $region19: #{_lambda_.11} parent=0 // pred_check_branch
    %450 = sbr.rel (0) target = $region21
  $region20: #{_lambda_.11} parent=0 // pred_region
    _
  $region21: #{_lambda_.11} parent=0 // pred_fallthru
    _

// kernel: _lambda_.13
$region0: #{_lambda_.13}
  #allocation0 [shape = 'u32[]', space=smem, size = 0x4, offset = 0x4, fixed_abs, tag = 'smem constant byte address 0x4 - core index']
  #allocation1 [shape = 'u32[72,128]{1,0:T(1,128)}', space=vmem, size = 0x9000, scoped, tag = 'internal scratch']
  %s0 = inlined_call_operand.vmem [shape: f32[2,16], index: 0, kind: input, shape index: {}]
  %s1 = inlined_call_operand.vmem [shape: f32[2,32], index: 1, kind: input, shape index: {}]
  %s2 = inlined_call_operand.vmem [shape: bf16[16,32], index: 2, kind: input, shape index: {}]
  %s3 = inlined_call_operand.vmem [shape: f32[1,32], index: 3, kind: input, shape index: {}]
  %s4 = inlined_call_operand.vmem [shape: bf16[32,32], index: 4, kind: input, shape index: {}]
  %s5 = inlined_call_operand.vmem [shape: bf16[32,32], index: 5, kind: input, shape index: {}]
  %s6 = inlined_call_operand.vmem [shape: f32[1,32], index: 6, kind: input, shape index: {}]
  %s7 = inlined_call_operand.vmem [shape: bf16[32,16], index: 7, kind: input, shape index: {}]
  %s8 = inlined_call_operand.vmem [shape: f32[1,16], index: 8, kind: input, shape index: {}]
  %s9 = inlined_call_operand.vmem [shape: f32[2,16], index: 9, kind: output, shape index: {}]
  %s10 = sld [smem:[#allocation0]]
  $region46: #{_lambda_.13} parent=0
    _
  %s12 = ssub.s32 1, %s10
  %s13 = scalar_select 0, %s12, %s10
  // Predicated region
  $region2: #{_lambda_.13} parent=0 // pred_check
    _
  $region3: #{_lambda_.13} parent=0 // pred_check_branch
    %15 = sbr.rel (0) target = $region5
  $region4: #{_lambda_.13} parent=0 // pred_region
    _
  $region5: #{_lambda_.13} parent=0 // pred_fallthru
    _
  // Predicated region
  $region6: #{_lambda_.13} parent=0 // pred_check
    _
  $region7: #{_lambda_.13} parent=0 // pred_check_branch
    %17 = sbr.rel (0) target = $region9
  $region8: #{_lambda_.13} parent=0 // pred_region
    _
  $region9: #{_lambda_.13} parent=0 // pred_fallthru
    _
  // Predicated region
  $region10: #{_lambda_.13} parent=0 // pred_check
    _
  $region11: #{_lambda_.13} parent=0 // pred_check_branch
    %19 = sbr.rel (0) target = $region13
  $region12: #{_lambda_.13} parent=0 // pred_region
    _
  $region13: #{_lambda_.13} parent=0 // pred_fallthru
    _
  // Predicated region
  $region14: #{_lambda_.13} parent=0 // pred_check
    _
  $region15: #{_lambda_.13} parent=0 // pred_check_branch
    %21 = sbr.rel (0) target = $region17
  $region16: #{_lambda_.13} parent=0 // pred_region
    _
  $region17: #{_lambda_.13} parent=0 // pred_fallthru
    _
  // Predicated region
  $region18: #{_lambda_.13} parent=0 // pred_check
    _
  $region19: #{_lambda_.13} parent=0 // pred_check_branch
    %23 = sbr.rel (0) target = $region21
  $region20: #{_lambda_.13} parent=0 // pred_region
    _
  $region21: #{_lambda_.13} parent=0 // pred_fallthru
    _
  // Predicated region
  $region22: #{_lambda_.13} parent=0 // pred_check
    _
  $region23: #{_lambda_.13} parent=0 // pred_check_branch
    %25 = sbr.rel (0) target = $region25
  $region24: #{_lambda_.13} parent=0 // pred_region
    _
  $region25: #{_lambda_.13} parent=0 // pred_fallthru
    _
  // Predicated region
  $region26: #{_lambda_.13} parent=0 // pred_check
    _
  $region27: #{_lambda_.13} parent=0 // pred_check_branch
    %27 = sbr.rel (0) target = $region29
  $region28: #{_lambda_.13} parent=0 // pred_region
    _
  $region29: #{_lambda_.13} parent=0 // pred_fallthru
    _
  // Predicated region
  $region30: #{_lambda_.13} parent=0 // pred_check
    _
  $region31: #{_lambda_.13} parent=0 // pred_check_branch
    %29 = sbr.rel (0) target = $region33
  $region32: #{_lambda_.13} parent=0 // pred_region
    _
  $region33: #{_lambda_.13} parent=0 // pred_fallthru
    _
  // Predicated region
  $region34: #{_lambda_.13} parent=0 // pred_check
    _
  $region35: #{_lambda_.13} parent=0 // pred_check_branch
    %31 = sbr.rel (0) target = $region37
  $region36: #{_lambda_.13} parent=0 // pred_region
    _
  $region37: #{_lambda_.13} parent=0 // pred_fallthru
    _
  %v33 = vld [vmem:[%s0] sm:$0x3]
  %v34 = vpack.c.bf16 %v33, %v33
  %v35 = vld [vmem:[%s2] sm:$0xf]
  %v36 = vld [vmem:[%s2 + $0x4] sm:$0xf]
  %v37 = vld [vmem:[%s3] sm:$0x1]
  %v39 = vperm.slane %v37, 0
  %v43 = vunpack.c.l.b16 %v35
  %v44 = vunpack.c.l.b16 %v36
  %v45 = vpack.c.b16 %v44, %v43
  %vm47 = vcmask 130048
  %v49 = vsel %vm47, %v34, 0
  %51 = vmatpush.bf16.msra.mxu0 0
  %52 = vmatpush.bf16.msra.mxu0 0
  %53 = vmatpush.bf16.msra.mxu0 0
  %54 = vmatpush.bf16.msra.mxu0 0
  %55 = vmatpush.bf16.msra.mxu0 0
  %56 = vmatpush.bf16.msra.mxu0 0
  %57 = vmatpush.bf16.msra.mxu0 0
  %58 = vmatpush.bf16.msra.mxu0 %v45
  %59 = vmatmul.bf16.gmra.mxu0 %v49
  %v60 = vpop.f32.mrf.mxu0
  %v61 = vadd.f32 %v39, %v60
  %v62 = vpop.f32.mrf.mxu0
  %63 = vdwg.mxu0
  %v64 = vmax.f32 %v61, 0.0
  %v65 = vpack.c.bf16 %v64, %v64
  %v66 = vld [vmem:[%s4] sm:$0xf]
  %v67 = vld [vmem:[%s4 + $0x4] sm:$0xf]
  %v68 = vld [vmem:[%s4 + $0x8] sm:$0xf]
  %v69 = vld [vmem:[%s4 + $0xc] sm:$0xf]
  %v74 = vunpack.c.l.b16 %v66
  %v75 = vunpack.c.l.b16 %v67
  %v76 = vunpack.c.l.b16 %v68
  %v77 = vunpack.c.l.b16 %v69
  %v78 = vpack.c.b16 %v75, %v74
  %v79 = vpack.c.b16 %v77, %v76
  %vm82 = vcmask 261120
  %v84 = vsel %vm82, %v65, 0
  %86 = vmatpush.bf16.msra.mxu0 0
  %87 = vmatpush.bf16.msra.mxu0 0
  %88 = vmatpush.bf16.msra.mxu0 0
  %89 = vmatpush.bf16.msra.mxu0 0
  %90 = vmatpush.bf16.msra.mxu0 0
  %91 = vmatpush.bf16.msra.mxu0 0
  %92 = vmatpush.bf16.msra.mxu0 %v79
  %93 = vmatpush.bf16.msra.mxu0 %v78
  %94 = vmatmul.bf16.gmra.mxu0 %v84
  %v95 = vpop.f32.mrf.mxu0
  %v96 = vadd.f32 0.0, %v95
  %v97 = vpop.f32.mrf.mxu0
  %98 = vdwg.mxu0
  %v99 = vld [vmem:[%s1] sm:$0x3]
  %v100 = vmul.f32 %v96, %v99
  %v101 = vpack.c.bf16 %v100, %v100
  %v102 = vld [vmem:[%s5] sm:$0xf]
  %v103 = vld [vmem:[%s5 + $0x4] sm:$0xf]
  %v104 = vld [vmem:[%s5 + $0x8] sm:$0xf]
  %v105 = vld [vmem:[%s5 + $0xc] sm:$0xf]
  %v106 = vld [vmem:[%s6] sm:$0x1]
  %v108 = vperm.slane %v106, 0
  %v114 = vunpack.c.l.b16 %v102
  %v115 = vunpack.c.l.b16 %v103
  %v116 = vunpack.c.l.b16 %v104
  %v117 = vunpack.c.l.b16 %v105
  %v118 = vpack.c.b16 %v115, %v114
  %v119 = vpack.c.b16 %v117, %v116
  %v123 = vsel %vm82, %v101, 0
  %125 = vmatpush.bf16.msra.mxu0 0
  %126 = vmatpush.bf16.msra.mxu0 0
  %127 = vmatpush.bf16.msra.mxu0 0
  %128 = vmatpush.bf16.msra.mxu0 0
  %129 = vmatpush.bf16.msra.mxu0 0
  %130 = vmatpush.bf16.msra.mxu0 0
  %131 = vmatpush.bf16.msra.mxu0 %v119
  %132 = vmatpush.bf16.msra.mxu0 %v118
  %133 = vmatmul.bf16.gmra.mxu0 %v123
  %v134 = vpop.f32.mrf.mxu0
  %v135 = vadd.f32 %v108, %v134
  %v136 = vpop.f32.mrf.mxu0
  %137 = vdwg.mxu0
  %v138 = vpack.c.bf16 %v135, %v135
  %v139 = vld [vmem:[%s7] sm:$0xf]
  %v140 = vld [vmem:[%s7 + $0x4] sm:$0xf]
  %v141 = vld [vmem:[%s7 + $0x8] sm:$0xf]
  %v142 = vld [vmem:[%s7 + $0xc] sm:$0xf]
  %v143 = vld [vmem:[%s8] sm:$0x1]
  %v145 = vperm.slane %v143, 0
  %v151 = vunpack.c.l.b16 %v139
  %v152 = vunpack.c.l.b16 %v140
  %v153 = vunpack.c.l.b16 %v141
  %v154 = vunpack.c.l.b16 %v142
  %v155 = vpack.c.b16 %v152, %v151
  %v156 = vpack.c.b16 %v154, %v153
  %v160 = vsel %vm82, %v138, 0
  %162 = vmatpush.bf16.msra.mxu0 0
  %163 = vmatpush.bf16.msra.mxu0 0
  %164 = vmatpush.bf16.msra.mxu0 0
  %165 = vmatpush.bf16.msra.mxu0 0
  %166 = vmatpush.bf16.msra.mxu0 0
  %167 = vmatpush.bf16.msra.mxu0 0
  %168 = vmatpush.bf16.msra.mxu0 %v156
  %169 = vmatpush.bf16.msra.mxu0 %v155
  %170 = vmatmul.bf16.gmra.mxu0 %v160
  %v171 = vpop.f32.mrf.mxu0
  %v172 = vadd.f32 %v145, %v171
  %v173 = vpop.f32.mrf.mxu0
  %174 = vdwg.mxu0
  %v175 = vmax.f32 %v172, 0.0
  %vm176 = vcmask 123904
  %177 = vst.msk [vmem:[%s9] sm:$0x3] %vm176, %v175
  // Predicated region
  $region38: #{_lambda_.13} parent=0 // pred_check
    _
  $region39: #{_lambda_.13} parent=0 // pred_check_branch
    %179 = sbr.rel (0) target = $region41
  $region40: #{_lambda_.13} parent=0 // pred_region
    _
  $region41: #{_lambda_.13} parent=0 // pred_fallthru
    _
  // Predicated region
  $region42: #{_lambda_.13} parent=0 // pred_check
    _
  $region43: #{_lambda_.13} parent=0 // pred_check_branch
    %181 = sbr.rel (0) target = $region45
  $region44: #{_lambda_.13} parent=0 // pred_region
    _
  $region45: #{_lambda_.13} parent=0 // pred_fallthru
    _

// kernel: _lambda_.12
$region0: #{_lambda_.12}
  #allocation0 [shape = 'u32[]', space=smem, size = 0x4, offset = 0x4, fixed_abs, tag = 'smem constant byte address 0x4 - core index']
  #allocation1 [shape = 'u32[72,128]{1,0:T(1,128)}', space=vmem, size = 0x9000, scoped, tag = 'internal scratch']
  %s0 = inlined_call_operand.vmem [shape: f32[2,256], index: 0, kind: input, shape index: {}]
  %s1 = inlined_call_operand.vmem [shape: bf16[256,128], index: 1, kind: input, shape index: {}]
  %s2 = inlined_call_operand.vmem [shape: f32[1,128], index: 2, kind: input, shape index: {}]
  %s3 = inlined_call_operand.vmem [shape: f32[2,128], index: 3, kind: output, shape index: {}]
  %s4 = sld [smem:[#allocation0]]
  $region22: #{_lambda_.12} parent=0
    _
  %s6 = ssub.s32 1, %s4
  %s7 = scalar_select 0, %s6, %s4
  // Predicated region
  $region2: #{_lambda_.12} parent=0 // pred_check
    _
  $region3: #{_lambda_.12} parent=0 // pred_check_branch
    %9 = sbr.rel (0) target = $region5
  $region4: #{_lambda_.12} parent=0 // pred_region
    _
  $region5: #{_lambda_.12} parent=0 // pred_fallthru
    _
  // Predicated region
  $region6: #{_lambda_.12} parent=0 // pred_check
    _
  $region7: #{_lambda_.12} parent=0 // pred_check_branch
    %11 = sbr.rel (0) target = $region9
  $region8: #{_lambda_.12} parent=0 // pred_region
    _
  $region9: #{_lambda_.12} parent=0 // pred_fallthru
    _
  // Predicated region
  $region10: #{_lambda_.12} parent=0 // pred_check
    _
  $region11: #{_lambda_.12} parent=0 // pred_check_branch
    %13 = sbr.rel (0) target = $region13
  $region12: #{_lambda_.12} parent=0 // pred_region
    _
  $region13: #{_lambda_.12} parent=0 // pred_fallthru
    _
  %v14 = vld [vmem:[%s0] sm:$0xf]
  %16 = vst [vmem:[#allocation1] ss:$4 sm:$0xff] %v14
  %v17 = vld.sshfl [vmem:[#allocation1] sm:$0xff pattern:$0x73625140]
  %v18 = vld.sshfl [vmem:[#allocation1 + $0x8] sm:$0xff pattern:$0x73625140]
  %v21 = vpack.c.bf16 %v17, %v17
  %v22 = vpack.c.bf16 %v18, %v18
  %v23 = vld [vmem:[%s1] sm:$0xf]
  %v24 = vld [vmem:[%s1 + $0x4] sm:$0xf]
  %v25 = vld [vmem:[%s1 + $0x8] sm:$0xf]
  %v26 = vld [vmem:[%s1 + $0xc] sm:$0xf]
  %v27 = vld [vmem:[%s1 + $0x10] sm:$0xf]
  %v28 = vld [vmem:[%s1 + $0x14] sm:$0xf]
  %v29 = vld [vmem:[%s1 + $0x18] sm:$0xf]
  %v30 = vld [vmem:[%s1 + $0x1c] sm:$0xf]
  %v31 = vld [vmem:[%s1 + $0x20] sm:$0xf]
  %v32 = vld [vmem:[%s1 + $0x24] sm:$0xf]
  %v33 = vld [vmem:[%s1 + $0x28] sm:$0xf]
  %v34 = vld [vmem:[%s1 + $0x2c] sm:$0xf]
  %v35 = vld [vmem:[%s1 + $0x30] sm:$0xf]
  %v36 = vld [vmem:[%s1 + $0x34] sm:$0xf]
  %v37 = vld [vmem:[%s1 + $0x38] sm:$0xf]
  %v38 = vld [vmem:[%s1 + $0x3c] sm:$0xf]
  %v39 = vld [vmem:[%s1 + $0x40] sm:$0xf]
  %v40 = vld [vmem:[%s1 + $0x44] sm:$0xf]
  %v41 = vld [vmem:[%s1 + $0x48] sm:$0xf]
  %v42 = vld [vmem:[%s1 + $0x4c] sm:$0xf]
  %v43 = vld [vmem:[%s1 + $0x50] sm:$0xf]
  %v44 = vld [vmem:[%s1 + $0x54] sm:$0xf]
  %v45 = vld [vmem:[%s1 + $0x58] sm:$0xf]
  %v46 = vld [vmem:[%s1 + $0x5c] sm:$0xf]
  %v47 = vld [vmem:[%s1 + $0x60] sm:$0xf]
  %v48 = vld [vmem:[%s1 + $0x64] sm:$0xf]
  %v49 = vld [vmem:[%s1 + $0x68] sm:$0xf]
  %v50 = vld [vmem:[%s1 + $0x6c] sm:$0xf]
  %v51 = vld [vmem:[%s1 + $0x70] sm:$0xf]
  %v52 = vld [vmem:[%s1 + $0x74] sm:$0xf]
  %v53 = vld [vmem:[%s1 + $0x78] sm:$0xf]
  %v54 = vld [vmem:[%s1 + $0x7c] sm:$0xf]
  %v55 = vld [vmem:[%s2] sm:$0x1]
  %v57 = vperm.slane %v55, 0
  %v91 = vunpack.c.l.b16 %v23
  %v92 = vunpack.c.l.b16 %v24
  %v93 = vunpack.c.l.b16 %v25
  %v94 = vunpack.c.l.b16 %v26
  %v95 = vunpack.c.l.b16 %v27
  %v96 = vunpack.c.l.b16 %v28
  %v97 = vunpack.c.l.b16 %v29
  %v98 = vunpack.c.l.b16 %v30
  %v99 = vunpack.c.l.b16 %v31
  %v100 = vunpack.c.l.b16 %v32
  %v101 = vunpack.c.l.b16 %v33
  %v102 = vunpack.c.l.b16 %v34
  %v103 = vunpack.c.l.b16 %v35
  %v104 = vunpack.c.l.b16 %v36
  %v105 = vunpack.c.l.b16 %v37
  %v106 = vunpack.c.l.b16 %v38
  %v107 = vunpack.c.l.b16 %v39
  %v108 = vunpack.c.l.b16 %v40
  %v109 = vunpack.c.l.b16 %v41
  %v110 = vunpack.c.l.b16 %v42
  %v111 = vunpack.c.l.b16 %v43
  %v112 = vunpack.c.l.b16 %v44
  %v113 = vunpack.c.l.b16 %v45
  %v114 = vunpack.c.l.b16 %v46
  %v115 = vunpack.c.l.b16 %v47
  %v116 = vunpack.c.l.b16 %v48
  %v117 = vunpack.c.l.b16 %v49
  %v118 = vunpack.c.l.b16 %v50
  %v119 = vunpack.c.l.b16 %v51
  %v120 = vunpack.c.l.b16 %v52
  %v121 = vunpack.c.l.b16 %v53
  %v122 = vunpack.c.l.b16 %v54
  %v123 = vpack.c.b16 %v92, %v91
  %v124 = vpack.c.b16 %v94, %v93
  %v125 = vpack.c.b16 %v96, %v95
  %v126 = vpack.c.b16 %v98, %v97
  %v127 = vpack.c.b16 %v100, %v99
  %v128 = vpack.c.b16 %v102, %v101
  %v129 = vpack.c.b16 %v104, %v103
  %v130 = vpack.c.b16 %v106, %v105
  %v131 = vpack.c.b16 %v108, %v107
  %v132 = vpack.c.b16 %v110, %v109
  %v133 = vpack.c.b16 %v112, %v111
  %v134 = vpack.c.b16 %v114, %v113
  %v135 = vpack.c.b16 %v116, %v115
  %v136 = vpack.c.b16 %v118, %v117
  %v137 = vpack.c.b16 %v120, %v119
  %v138 = vpack.c.b16 %v122, %v121
  %155 = vmatpush.bf16.msra.mxu0 %v130
  %156 = vmatpush.bf16.msra.mxu0 %v129
  %157 = vmatpush.bf16.msra.mxu0 %v128
  %158 = vmatpush.bf16.msra.mxu0 %v127
  %159 = vmatpush.bf16.msra.mxu0 %v126
  %160 = vmatpush.bf16.msra.mxu0 %v125
  %161 = vmatpush.bf16.msra.mxu0 %v124
  %162 = vmatpush.bf16.msra.mxu0 %v123
  %163 = vmatmul.bf16.gmra.mxu0 %v21
  %v164 = vpop.f32.mrf.mxu0
  %v165 = vadd.f32 %v57, %v164
  %v166 = vpop.f32.mrf.mxu0
  %167 = vdwg.mxu0
  %168 = vmatpush.bf16.msra.mxu0 %v138
  %169 = vmatpush.bf16.msra.mxu0 %v137
  %170 = vmatpush.bf16.msra.mxu0 %v136
  %171 = vmatpush.bf16.msra.mxu0 %v135
  %172 = vmatpush.bf16.msra.mxu0 %v134
  %173 = vmatpush.bf16.msra.mxu0 %v133
  %174 = vmatpush.bf16.msra.mxu0 %v132
  %175 = vmatpush.bf16.msra.mxu0 %v131
  %176 = vmatmul.bf16.gmra.mxu0 %v22
  %v177 = vpop.f32.mrf.mxu0
  %v178 = vadd.f32 %v165, %v177
  %v179 = vpop.f32.mrf.mxu0
  %180 = vdwg.mxu0
  %v181 = vmax.f32 %v178, 0.0
  %182 = vst [vmem:[%s3] sm:$0x3] %v181
  // Predicated region
  $region14: #{_lambda_.12} parent=0 // pred_check
    _
  $region15: #{_lambda_.12} parent=0 // pred_check_branch
    %184 = sbr.rel (0) target = $region17
  $region16: #{_lambda_.12} parent=0 // pred_region
    _
  $region17: #{_lambda_.12} parent=0 // pred_fallthru
    _
  // Predicated region
  $region18: #{_lambda_.12} parent=0 // pred_check
    _
  $region19: #{_lambda_.12} parent=0 // pred_check_branch
    %186 = sbr.rel (0) target = $region21
  $region20: #{_lambda_.12} parent=0 // pred_region
    _
  $region21: #{_lambda_.12} parent=0 // pred_fallthru
    _

// kernel: _lambda_.14
$region0: #{_lambda_.14}
  #allocation0 [shape = 'u32[]', space=smem, size = 0x4, offset = 0x4, fixed_abs, tag = 'smem constant byte address 0x4 - core index']
  #allocation1 [shape = 'u32[72,128]{1,0:T(1,128)}', space=vmem, size = 0x9000, scoped, tag = 'internal scratch']
  %s0 = inlined_call_operand.vmem [shape: f32[4,8,64], index: 0, kind: input, shape index: {}]
  %s1 = inlined_call_operand.vmem [shape: bf16[4,64,128], index: 1, kind: input, shape index: {}]
  %s2 = inlined_call_operand.vmem [shape: f32[1,128], index: 2, kind: input, shape index: {}]
  %s3 = inlined_call_operand.vmem [shape: f32[4,8,128], index: 3, kind: output, shape index: {}]
  %s4 = sld [smem:[#allocation0]]
  $region45: #{_lambda_.14} parent=0
    _
  %s6 = ssub.s32 1, %s4
  %s7 = scalar_select 0, %s6, %s4
  loop: start=0, step=1, limit=6
  $region2: #{_lambda_.14} parent=0 // loop_pre_header
    _
  $region3: #{_lambda_.14} parent=0 // loop_header
    %s9 = sphi 0, %s13
    %p10 = scmp.ge.s32.totalorder %s9, 6
    %s16 = sphi 0, %s28
    %s17 = sphi 0, %s24
    %s18 = sphi 0, %s16
    %s19 = sphi 0, %s17
    %s20 = sphi 0, %s18
    %s21 = sphi 0, %s19
    %s33 = sphi 0, %s35
    %s36 = sphi 0, %s33
    %s37 = sphi 0, %s36
    %s53 = sphi 0, %s37
    %s59 = sphi 0, %s61
    %s62 = sphi 0, %s59
    %s63 = sphi 0, %s62
    %s79 = sphi 0, %s63
    %s83 = sphi 0, %s83
    %s85 = sphi 0, %s83
    %s86 = sphi 0, %s85
    %s100 = sphi 0, %s86
    %s108 = sphi 0, %s110
    %s111 = sphi 0, %s108
    %s112 = sphi 0, %s111
    %s128 = sphi 0, %s112
  $region4: #{_lambda_.14} parent=0 // loop_header_branch
    %12 = sbr.rel (%p10) target = $region8
  $region5: #{_lambda_.14} parent=0 // loop_body
    %s14 = ssub.s32 %s9, 1
    %s15 = ssub.s32 %s9, 2
    %s22 = sadd.s32 1, %s17
    %p23 = scmp.ge.s32.totalorder %s22, 1
    %s24 = scalar_select %p23, 0, %s22
    %s25 = sadd.s32 1, %s16
    %s26 = scalar_select %p23, %s25, %s16
    %p27 = scmp.ge.s32.totalorder %s26, 4
    %s28 = scalar_select %p27, 0, %s26
    %s29 = ssub.s32 %s16, %s28
    %s30 = ssub.s32 %s17, %s24
    %s31 = sor.u32 %s29, %s30
    %p32 = scmp.eq.s32.totalorder %s31, 0
    %s34 = sadd.s32 %s33, 1
    %s35 = scalar_select %p32, %s33, %s34
    %p38 = pneg %p32
    %p39 = scmp.eq.s32.totalorder %s9, 3
    %p40 = por %p38, %p39
    %p41 = scmp.ne.s32.totalorder %s33, %s36
    %p42 = scmp.eq.s32.totalorder %s9, 0
    %p43 = por %p41, %p42
    %p44 = scmp.ne.s32.totalorder %s33, %s36
    %p45 = scmp.eq.s32.totalorder %s14, 3
    %p46 = por %p44, %p45
    %p47 = scmp.ne.s32.totalorder %s36, %s37
    %p48 = scmp.eq.s32.totalorder %s14, 0
    %p49 = por %p47, %p48
    %p50 = scmp.ne.s32.totalorder %s36, %s37
    %p51 = scmp.eq.s32.totalorder %s15, 3
    %p52 = por %p50, %p51
    %p54 = scmp.ne.s32.totalorder %s37, %s53
    %p55 = scmp.eq.s32.totalorder %s15, 0
    %p56 = por %p54, %p55
    %s57 = ssub.s32 %s16, %s28
    %p58 = scmp.eq.s32.totalorder %s57, 0
    %s60 = sadd.s32 %s59, 1
    %s61 = scalar_select %p58, %s59, %s60
    %p64 = pneg %p58
    %p65 = scmp.eq.s32.totalorder %s9, 3
    %p66 = por %p64, %p65
    %p67 = scmp.ne.s32.totalorder %s59, %s62
    %p68 = scmp.eq.s32.totalorder %s9, 0
    %p69 = por %p67, %p68
    %p70 = scmp.ne.s32.totalorder %s59, %s62
    %p71 = scmp.eq.s32.totalorder %s14, 3
    %p72 = por %p70, %p71
    %p73 = scmp.ne.s32.totalorder %s62, %s63
    %p74 = scmp.eq.s32.totalorder %s14, 0
    %p75 = por %p73, %p74
    %p76 = scmp.ne.s32.totalorder %s62, %s63
    %p77 = scmp.eq.s32.totalorder %s15, 3
    %p78 = por %p76, %p77
    %p80 = scmp.ne.s32.totalorder %s63, %s79
    %p81 = scmp.eq.s32.totalorder %s15, 0
    %p82 = por %p80, %p81
    %s84 = sadd.s32 %s83, 1
    %p87 = scmp.eq.s32.totalorder %s9, 3
    %p88 = scmp.ne.s32.totalorder %s83, %s85
    %p89 = scmp.eq.s32.totalorder %s9, 0
    %p90 = por %p88, %p89
    %p91 = scmp.ne.s32.totalorder %s83, %s85
    %p92 = scmp.eq.s32.totalorder %s14, 3
    %p93 = por %p91, %p92
    %p94 = scmp.ne.s32.totalorder %s85, %s86
    %p95 = scmp.eq.s32.totalorder %s14, 0
    %p96 = por %p94, %p95
    %p97 = scmp.ne.s32.totalorder %s85, %s86
    %p98 = scmp.eq.s32.totalorder %s15, 3
    %p99 = por %p97, %p98
    %p101 = scmp.ne.s32.totalorder %s86, %s100
    %p102 = scmp.eq.s32.totalorder %s15, 0
    %p103 = por %p101, %p102
    %s104 = ssub.s32 %s16, %s28
    %s105 = ssub.s32 %s17, %s24
    %s106 = sor.u32 %s104, %s105
    %p107 = scmp.eq.s32.totalorder %s106, 0
    %s109 = sadd.s32 %s108, 1
    %s110 = scalar_select %p107, %s108, %s109
    %p113 = pneg %p107
    %p114 = scmp.eq.s32.totalorder %s9, 3
    %p115 = por %p113, %p114
    %p116 = scmp.ne.s32.totalorder %s108, %s111
    %p117 = scmp.eq.s32.totalorder %s9, 0
    %p118 = por %p116, %p117
    %p119 = scmp.ne.s32.totalorder %s108, %s111
    %p120 = scmp.eq.s32.totalorder %s14, 3
    %p121 = por %p119, %p120
    %p122 = scmp.ne.s32.totalorder %s111, %s112
    %p123 = scmp.eq.s32.totalorder %s14, 0
    %p124 = por %p122, %p123
    %p125 = scmp.ne.s32.totalorder %s111, %s112
    %p126 = scmp.eq.s32.totalorder %s15, 3
    %p127 = por %p125, %p126
    %p129 = scmp.ne.s32.totalorder %s112, %s128
    %p130 = scmp.eq.s32.totalorder %s15, 0
    %p131 = por %p129, %p130
    %p132 = scmp.le.s32.totalorder 1, %s9
    %p133 = scmp.lt.s32.totalorder %s9, 5
    %p134 = pnand %p132, %p133
    %p135 = pneg %p134
    // Predicated region
    $region9: #{_lambda_.14} parent=5 // pred_check
      _
    $region10: #{_lambda_.14} parent=5 // pred_check_branch
      %137 = sbr.rel (%p134) target = $region12
    $region11: #{_lambda_.14} parent=5 // pred_region
      %s138 = ssub.s32 %s9, 1
      // Predicated region
      $region13: #{_lambda_.14} parent=11 // pred_check
        %p139 = pneg %p96
      $region14: #{_lambda_.14} parent=11 // pred_check_branch
        %141 = sbr.rel (%p139) target = $region16
      $region15: #{_lambda_.14} parent=11 // pred_region
        _
      $region16: #{_lambda_.14} parent=11 // pred_fallthru
        _
    $region12: #{_lambda_.14} parent=5 // pred_fallthru
      _
    %p142 = scmp.lt.s32.totalorder %s9, 4
    // Predicated region
    $region17: #{_lambda_.14} parent=5 // pred_check
      %p143 = pneg %p142
    $region18: #{_lambda_.14} parent=5 // pred_check_branch
      %145 = sbr.rel (%p143) target = $region20
    $region19: #{_lambda_.14} parent=5 // pred_region
      // Predicated region
      $region21: #{_lambda_.14} parent=19 // pred_check
        %p146 = pneg %p43
      $region22: #{_lambda_.14} parent=19 // pred_check_branch
        %148 = sbr.rel (%p146) target = $region24
      $region23: #{_lambda_.14} parent=19 // pred_region
        %p149 = scmp.lt.s32.totalorder %s16, 3
        %s150 = scalar_select %p149, %s16, 3
        %p151 = scmp.lt.s32.totalorder %s17, 0
        %s152 = scalar_select %p151, %s17, 0
        %s153 = sadd.s32 %s152, %s150
        %s154 = smul.addr %s153, 8
        %s155 = scalar_lea.vmem %s0, %s154
      $region24: #{_lambda_.14} parent=19 // pred_fallthru
        _
      // Predicated region
      $region25: #{_lambda_.14} parent=19 // pred_check
        %p156 = pneg %p69
      $region26: #{_lambda_.14} parent=19 // pred_check_branch
        %158 = sbr.rel (%p156) target = $region28
      $region27: #{_lambda_.14} parent=19 // pred_region
        %p159 = scmp.lt.s32.totalorder %s16, 3
        %s160 = scalar_select %p159, %s16, 3
        %s161 = smul.addr %s160, 8
        %s162 = smul.addr %s161, 4
        %s163 = scalar_lea.vmem %s1, %s162
      $region28: #{_lambda_.14} parent=19 // pred_fallthru
        _
    $region20: #{_lambda_.14} parent=5 // pred_fallthru
      _
    %p164 = scmp.le.s32.totalorder 1, %s9
    %p165 = scmp.lt.s32.totalorder %s9, 5
    %p166 = pnand %p164, %p165
    %p167 = pneg %p166
    // Predicated region
    $region29: #{_lambda_.14} parent=5 // pred_check
      _
    $region30: #{_lambda_.14} parent=5 // pred_check_branch
      %169 = sbr.rel (%p166) target = $region32
    $region31: #{_lambda_.14} parent=5 // pred_region
      %s170 = ssub.s32 %s9, 1
      %p171 = scmp.lt.s32.totalorder %s18, 3
      %s172 = scalar_select %p171, %s18, 3
      %p173 = scmp.lt.s32.totalorder %s19, 0
      %s174 = scalar_select %p173, %s19, 0
      %s175 = sadd.s32 %s174, %s172
      %s176 = smul.addr %s175, 8
      %s177 = scalar_lea.vmem %s0, %s176
      %p178 = pneg %p49
      %p179 = pneg %p46
      %p180 = scmp.lt.s32.totalorder %s18, 3
      %s181 = scalar_select %p180, %s18, 3
      %s182 = smul.addr %s181, 8
      %s183 = smul.addr %s182, 4
      %s184 = scalar_lea.vmem %s1, %s183
      %p185 = pneg %p75
      %p186 = pneg %p72
      %p187 = pneg %p96
      %p188 = pneg %p93
      %p189 = pneg %p124
      %p190 = pneg %p121
      %p191 = scmp.lt.s32.totalorder %s18, 3
      %s192 = scalar_select %p191, %s18, 3
      %p193 = scmp.lt.s32.totalorder %s19, 0
      %s194 = scalar_select %p193, %s19, 0
      %s195 = sadd.s32 %s194, %s192
      %s196 = smul.addr %s195, 8
      %s197 = scalar_lea.vmem %s3, %s196
      %p198 = scmp.lt.s32.totalorder %s18, 3
      %s199 = scalar_select %p198, %s18, 3
      %p200 = scmp.lt.s32.totalorder %s19, 0
      %s201 = scalar_select %p200, %s19, 0
      %s202 = sadd.s32 %s201, %s199
      %s203 = smul.addr %s202, 8
      %s204 = scalar_lea.vmem %s0, %s203
      %p205 = scmp.lt.s32.totalorder %s18, 3
      %s206 = scalar_select %p205, %s18, 3
      %s207 = smul.addr %s206, 8
      %s208 = smul.addr %s207, 4
      %s209 = scalar_lea.vmem %s1, %s208
      %p210 = scmp.lt.s32.totalorder %s18, 3
      %s211 = scalar_select %p210, %s18, 3
      %p212 = scmp.lt.s32.totalorder %s19, 0
      %s213 = scalar_select %p212, %s19, 0
      %s214 = sadd.s32 %s213, %s211
      %s215 = smul.addr %s214, 8
      %s216 = scalar_lea.vmem %s3, %s215
      %v218 = vld [vmem:[%s204] sm:$0xff]
      %v219 = vpack.c.bf16 %v218, %v218
      %v220 = vld [vmem:[%s209] sm:$0xf]
      %v221 = vld [vmem:[%s209 + $0x4] sm:$0xf]
      %v222 = vld [vmem:[%s209 + $0x8] sm:$0xf]
      %v223 = vld [vmem:[%s209 + $0xc] sm:$0xf]
      %v224 = vld [vmem:[%s209 + $0x10] sm:$0xf]
      %v225 = vld [vmem:[%s209 + $0x14] sm:$0xf]
      %v226 = vld [vmem:[%s209 + $0x18] sm:$0xf]
      %v227 = vld [vmem:[%s209 + $0x1c] sm:$0xf]
      %v228 = vld [vmem:[%s2] sm:$0x1]
      %v230 = vperm.slane %v228, 0
      %v240 = vunpack.c.l.b16 %v220
      %v241 = vunpack.c.l.b16 %v221
      %v242 = vunpack.c.l.b16 %v222
      %v243 = vunpack.c.l.b16 %v223
      %v244 = vunpack.c.l.b16 %v224
      %v245 = vunpack.c.l.b16 %v225
      %v246 = vunpack.c.l.b16 %v226
      %v247 = vunpack.c.l.b16 %v227
      %v248 = vpack.c.b16 %v241, %v240
      %v249 = vpack.c.b16 %v243, %v242
      %v250 = vpack.c.b16 %v245, %v244
      %v251 = vpack.c.b16 %v247, %v246
      %vm256 = vcmask 523264
      %v258 = vsel %vm256, %v219, 0
      %260 = vmatpush.bf16.msra.mxu0 0
      %261 = vmatpush.bf16.msra.mxu0 0
      %262 = vmatpush.bf16.msra.mxu0 0
      %263 = vmatpush.bf16.msra.mxu0 0
      %264 = vmatpush.bf16.msra.mxu0 %v251
      %265 = vmatpush.bf16.msra.mxu0 %v250
      %266 = vmatpush.bf16.msra.mxu0 %v249
      %267 = vmatpush.bf16.msra.mxu0 %v248
      %268 = vmatmul.bf16.gmra.mxu0 %v258
      %v269 = vpop.f32.mrf.mxu0
      %v270 = vadd.f32 %v230, %v269
      %v271 = vpop.f32.mrf.mxu0
      %272 = vdwg.mxu0
      %v273 = vmax.f32 %v270, 0.0
      %274 = vst [vmem:[%s216] sm:$0xff] %v273
      %p275 = scmp.lt.s32.totalorder %s18, 3
      %s276 = scalar_select %p275, %s18, 3
      %p277 = scmp.lt.s32.totalorder %s19, 0
      %s278 = scalar_select %p277, %s19, 0
      %s279 = sadd.s32 %s278, %s276
      %s280 = smul.addr %s279, 8
      %s281 = scalar_lea.vmem %s3, %s280
      // Predicated region
      $region33: #{_lambda_.14} parent=31 // pred_check
        %p282 = pneg %p121
      $region34: #{_lambda_.14} parent=31 // pred_check_branch
        %284 = sbr.rel (%p282) target = $region36
      $region35: #{_lambda_.14} parent=31 // pred_region
        _
      $region36: #{_lambda_.14} parent=31 // pred_fallthru
        _
    $region32: #{_lambda_.14} parent=5 // pred_fallthru
      _
    %p285 = scmp.le.s32.totalorder 2, %s9
    // Predicated region
    $region37: #{_lambda_.14} parent=5 // pred_check
      %p286 = pneg %p285
    $region38: #{_lambda_.14} parent=5 // pred_check_branch
      %288 = sbr.rel (%p286) target = $region40
    $region39: #{_lambda_.14} parent=5 // pred_region
      %s289 = ssub.s32 %s9, 2
      // Predicated region
      $region41: #{_lambda_.14} parent=39 // pred_check
        %p290 = pneg %p127
      $region42: #{_lambda_.14} parent=39 // pred_check_branch
        %292 = sbr.rel (%p290) target = $region44
      $region43: #{_lambda_.14} parent=39 // pred_region
        %p293 = scmp.lt.s32.totalorder %s20, 3
        %s294 = scalar_select %p293, %s20, 3
        %p295 = scmp.lt.s32.totalorder %s21, 0
        %s296 = scalar_select %p295, %s21, 0
        %s297 = sadd.s32 %s296, %s294
        %s298 = smul.addr %s297, 8
        %s299 = scalar_lea.vmem %s3, %s298
      $region44: #{_lambda_.14} parent=39 // pred_fallthru
        _
    $region40: #{_lambda_.14} parent=5 // pred_fallthru
      _
  $region6: #{_lambda_.14} parent=0 // loop_footer
    %s13 = sadd.s32 1, %s9
  $region7: #{_lambda_.14} parent=0 // loop_footer_branch
    %8 = sbr.rel target = $region3
  $region8: #{_lambda_.14} parent=0 // loop_exit
    _

// kernel: _lambda_.15
$region0: #{_lambda_.15}
  #allocation0 [shape = 'u32[]', space=smem, size = 0x4, offset = 0x4, fixed_abs, tag = 'smem constant byte address 0x4 - core index']
  #allocation1 [shape = 'u32[72,128]{1,0:T(1,128)}', space=vmem, size = 0x9000, scoped, tag = 'internal scratch']
  %s0 = inlined_call_operand.vmem [shape: f32[4,50,144], index: 0, kind: input, shape index: {}]
  %s1 = inlined_call_operand.vmem [shape: bf16[4,144,128], index: 1, kind: input, shape index: {}]
  %s2 = inlined_call_operand.vmem [shape: f32[1,128], index: 2, kind: input, shape index: {}]
  %s3 = inlined_call_operand.vmem [shape: f32[4,50,128], index: 3, kind: output, shape index: {}]
  %s4 = sld [smem:[#allocation0]]
  $region45: #{_lambda_.15} parent=0
    _
  %s6 = ssub.s32 1, %s4
  %s7 = scalar_select 0, %s6, %s4
  loop: start=0, step=1, limit=6
  $region2: #{_lambda_.15} parent=0 // loop_pre_header
    _
  $region3: #{_lambda_.15} parent=0 // loop_header
    %s9 = sphi 0, %s13
    %p10 = scmp.ge.s32.totalorder %s9, 6
    %s16 = sphi 0, %s28
    %s17 = sphi 0, %s24
    %s18 = sphi 0, %s16
    %s19 = sphi 0, %s17
    %s20 = sphi 0, %s18
    %s21 = sphi 0, %s19
    %s33 = sphi 0, %s35
    %s36 = sphi 0, %s33
    %s37 = sphi 0, %s36
    %s53 = sphi 0, %s37
    %s59 = sphi 0, %s61
    %s62 = sphi 0, %s59
    %s63 = sphi 0, %s62
    %s79 = sphi 0, %s63
    %s83 = sphi 0, %s83
    %s85 = sphi 0, %s83
    %s86 = sphi 0, %s85
    %s100 = sphi 0, %s86
    %s108 = sphi 0, %s110
    %s111 = sphi 0, %s108
    %s112 = sphi 0, %s111
    %s128 = sphi 0, %s112
  $region4: #{_lambda_.15} parent=0 // loop_header_branch
    %12 = sbr.rel (%p10) target = $region8
  $region5: #{_lambda_.15} parent=0 // loop_body
    %s14 = ssub.s32 %s9, 1
    %s15 = ssub.s32 %s9, 2
    %s22 = sadd.s32 1, %s17
    %p23 = scmp.ge.s32.totalorder %s22, 1
    %s24 = scalar_select %p23, 0, %s22
    %s25 = sadd.s32 1, %s16
    %s26 = scalar_select %p23, %s25, %s16
    %p27 = scmp.ge.s32.totalorder %s26, 4
    %s28 = scalar_select %p27, 0, %s26
    %s29 = ssub.s32 %s16, %s28
    %s30 = ssub.s32 %s17, %s24
    %s31 = sor.u32 %s29, %s30
    %p32 = scmp.eq.s32.totalorder %s31, 0
    %s34 = sadd.s32 %s33, 1
    %s35 = scalar_select %p32, %s33, %s34
    %p38 = pneg %p32
    %p39 = scmp.eq.s32.totalorder %s9, 3
    %p40 = por %p38, %p39
    %p41 = scmp.ne.s32.totalorder %s33, %s36
    %p42 = scmp.eq.s32.totalorder %s9, 0
    %p43 = por %p41, %p42
    %p44 = scmp.ne.s32.totalorder %s33, %s36
    %p45 = scmp.eq.s32.totalorder %s14, 3
    %p46 = por %p44, %p45
    %p47 = scmp.ne.s32.totalorder %s36, %s37
    %p48 = scmp.eq.s32.totalorder %s14, 0
    %p49 = por %p47, %p48
    %p50 = scmp.ne.s32.totalorder %s36, %s37
    %p51 = scmp.eq.s32.totalorder %s15, 3
    %p52 = por %p50, %p51
    %p54 = scmp.ne.s32.totalorder %s37, %s53
    %p55 = scmp.eq.s32.totalorder %s15, 0
    %p56 = por %p54, %p55
    %s57 = ssub.s32 %s16, %s28
    %p58 = scmp.eq.s32.totalorder %s57, 0
    %s60 = sadd.s32 %s59, 1
    %s61 = scalar_select %p58, %s59, %s60
    %p64 = pneg %p58
    %p65 = scmp.eq.s32.totalorder %s9, 3
    %p66 = por %p64, %p65
    %p67 = scmp.ne.s32.totalorder %s59, %s62
    %p68 = scmp.eq.s32.totalorder %s9, 0
    %p69 = por %p67, %p68
    %p70 = scmp.ne.s32.totalorder %s59, %s62
    %p71 = scmp.eq.s32.totalorder %s14, 3
    %p72 = por %p70, %p71
    %p73 = scmp.ne.s32.totalorder %s62, %s63
    %p74 = scmp.eq.s32.totalorder %s14, 0
    %p75 = por %p73, %p74
    %p76 = scmp.ne.s32.totalorder %s62, %s63
    %p77 = scmp.eq.s32.totalorder %s15, 3
    %p78 = por %p76, %p77
    %p80 = scmp.ne.s32.totalorder %s63, %s79
    %p81 = scmp.eq.s32.totalorder %s15, 0
    %p82 = por %p80, %p81
    %s84 = sadd.s32 %s83, 1
    %p87 = scmp.eq.s32.totalorder %s9, 3
    %p88 = scmp.ne.s32.totalorder %s83, %s85
    %p89 = scmp.eq.s32.totalorder %s9, 0
    %p90 = por %p88, %p89
    %p91 = scmp.ne.s32.totalorder %s83, %s85
    %p92 = scmp.eq.s32.totalorder %s14, 3
    %p93 = por %p91, %p92
    %p94 = scmp.ne.s32.totalorder %s85, %s86
    %p95 = scmp.eq.s32.totalorder %s14, 0
    %p96 = por %p94, %p95
    %p97 = scmp.ne.s32.totalorder %s85, %s86
    %p98 = scmp.eq.s32.totalorder %s15, 3
    %p99 = por %p97, %p98
    %p101 = scmp.ne.s32.totalorder %s86, %s100
    %p102 = scmp.eq.s32.totalorder %s15, 0
    %p103 = por %p101, %p102
    %s104 = ssub.s32 %s16, %s28
    %s105 = ssub.s32 %s17, %s24
    %s106 = sor.u32 %s104, %s105
    %p107 = scmp.eq.s32.totalorder %s106, 0
    %s109 = sadd.s32 %s108, 1
    %s110 = scalar_select %p107, %s108, %s109
    %p113 = pneg %p107
    %p114 = scmp.eq.s32.totalorder %s9, 3
    %p115 = por %p113, %p114
    %p116 = scmp.ne.s32.totalorder %s108, %s111
    %p117 = scmp.eq.s32.totalorder %s9, 0
    %p118 = por %p116, %p117
    %p119 = scmp.ne.s32.totalorder %s108, %s111
    %p120 = scmp.eq.s32.totalorder %s14, 3
    %p121 = por %p119, %p120
    %p122 = scmp.ne.s32.totalorder %s111, %s112
    %p123 = scmp.eq.s32.totalorder %s14, 0
    %p124 = por %p122, %p123
    %p125 = scmp.ne.s32.totalorder %s111, %s112
    %p126 = scmp.eq.s32.totalorder %s15, 3
    %p127 = por %p125, %p126
    %p129 = scmp.ne.s32.totalorder %s112, %s128
    %p130 = scmp.eq.s32.totalorder %s15, 0
    %p131 = por %p129, %p130
    %p132 = scmp.le.s32.totalorder 1, %s9
    %p133 = scmp.lt.s32.totalorder %s9, 5
    %p134 = pnand %p132, %p133
    %p135 = pneg %p134
    // Predicated region
    $region9: #{_lambda_.15} parent=5 // pred_check
      _
    $region10: #{_lambda_.15} parent=5 // pred_check_branch
      %137 = sbr.rel (%p134) target = $region12
    $region11: #{_lambda_.15} parent=5 // pred_region
      %s138 = ssub.s32 %s9, 1
      // Predicated region
      $region13: #{_lambda_.15} parent=11 // pred_check
        %p139 = pneg %p96
      $region14: #{_lambda_.15} parent=11 // pred_check_branch
        %141 = sbr.rel (%p139) target = $region16
      $region15: #{_lambda_.15} parent=11 // pred_region
        _
      $region16: #{_lambda_.15} parent=11 // pred_fallthru
        _
    $region12: #{_lambda_.15} parent=5 // pred_fallthru
      _
    %p142 = scmp.lt.s32.totalorder %s9, 4
    // Predicated region
    $region17: #{_lambda_.15} parent=5 // pred_check
      %p143 = pneg %p142
    $region18: #{_lambda_.15} parent=5 // pred_check_branch
      %145 = sbr.rel (%p143) target = $region20
    $region19: #{_lambda_.15} parent=5 // pred_region
      // Predicated region
      $region21: #{_lambda_.15} parent=19 // pred_check
        %p146 = pneg %p43
      $region22: #{_lambda_.15} parent=19 // pred_check_branch
        %148 = sbr.rel (%p146) target = $region24
      $region23: #{_lambda_.15} parent=19 // pred_region
        %s149 = smul.u32 7, %s17
        %p150 = scmp.lt.s32.totalorder %s16, 3
        %s151 = scalar_select %p150, %s16, 3
        %p152 = scmp.lt.s32.totalorder %s149, 6
        %s153 = scalar_select %p152, %s149, 6
        %s154 = smul.addr %s153, 2
        %s155 = smul.addr %s151, 14
        %s156 = sadd.s32 %s154, %s155
        %s157 = smul.addr %s156, 8
        %s158 = scalar_lea.vmem %s0, %s157
        %s159 = smul.u32 7, %s17
      $region24: #{_lambda_.15} parent=19 // pred_fallthru
        _
      // Predicated region
      $region25: #{_lambda_.15} parent=19 // pred_check
        %p160 = pneg %p69
      $region26: #{_lambda_.15} parent=19 // pred_check_branch
        %162 = sbr.rel (%p160) target = $region28
      $region27: #{_lambda_.15} parent=19 // pred_region
        %p163 = scmp.lt.s32.totalorder %s16, 3
        %s164 = scalar_select %p163, %s16, 3
        %s165 = smul.addr %s164, 18
        %s166 = smul.addr %s165, 4
        %s167 = scalar_lea.vmem %s1, %s166
      $region28: #{_lambda_.15} parent=19 // pred_fallthru
        _
    $region20: #{_lambda_.15} parent=5 // pred_fallthru
      _
    %p168 = scmp.le.s32.totalorder 1, %s9
    %p169 = scmp.lt.s32.totalorder %s9, 5
    %p170 = pnand %p168, %p169
    %p171 = pneg %p170
    // Predicated region
    $region29: #{_lambda_.15} parent=5 // pred_check
      _
    $region30: #{_lambda_.15} parent=5 // pred_check_branch
      %173 = sbr.rel (%p170) target = $region32
    $region31: #{_lambda_.15} parent=5 // pred_region
      %s174 = ssub.s32 %s9, 1
      %s175 = smul.u32 7, %s19
      %p176 = scmp.lt.s32.totalorder %s18, 3
      %s177 = scalar_select %p176, %s18, 3
      %p178 = scmp.lt.s32.totalorder %s175, 6
      %s179 = scalar_select %p178, %s175, 6
      %s180 = smul.addr %s179, 2
      %s181 = smul.addr %s177, 14
      %s182 = sadd.s32 %s180, %s181
      %s183 = smul.addr %s182, 8
      %s184 = scalar_lea.vmem %s0, %s183
      %p185 = pneg %p49
      %p186 = pneg %p46
      %p187 = scmp.lt.s32.totalorder %s18, 3
      %s188 = scalar_select %p187, %s18, 3
      %s189 = smul.addr %s188, 18
      %s190 = smul.addr %s189, 4
      %s191 = scalar_lea.vmem %s1, %s190
      %p192 = pneg %p75
      %p193 = pneg %p72
      %p194 = pneg %p96
      %p195 = pneg %p93
      %p196 = pneg %p124
      %p197 = pneg %p121
      %s198 = smul.u32 7, %s19
      %p199 = scmp.lt.s32.totalorder %s18, 3
      %s200 = scalar_select %p199, %s18, 3
      %p201 = scmp.lt.s32.totalorder %s198, 6
      %s202 = scalar_select %p201, %s198, 6
      %s203 = smul.addr %s200, 7
      %s204 = sadd.s32 %s202, %s203
      %s205 = smul.addr %s204, 8
      %s206 = scalar_lea.vmem %s3, %s205
      %s207 = smul.u32 7, %s19
      %p208 = scmp.lt.s32.totalorder %s18, 3
      %s209 = scalar_select %p208, %s18, 3
      %p210 = scmp.lt.s32.totalorder %s207, 6
      %s211 = scalar_select %p210, %s207, 6
      %s212 = smul.addr %s211, 2
      %s213 = smul.addr %s209, 14
      %s214 = sadd.s32 %s212, %s213
      %s215 = smul.addr %s214, 8
      %s216 = scalar_lea.vmem %s0, %s215
      %s217 = smul.u32 7, %s19
      %p218 = scmp.lt.s32.totalorder %s18, 3
      %s219 = scalar_select %p218, %s18, 3
      %s220 = smul.addr %s219, 18
      %s221 = smul.addr %s220, 4
      %s222 = scalar_lea.vmem %s1, %s221
      %s223 = smul.u32 7, %s19
      %p224 = scmp.lt.s32.totalorder %s18, 3
      %s225 = scalar_select %p224, %s18, 3
      %p226 = scmp.lt.s32.totalorder %s223, 6
      %s227 = scalar_select %p226, %s223, 6
      %s228 = smul.addr %s225, 7
      %s229 = sadd.s32 %s227, %s228
      %s230 = smul.addr %s229, 8
      %s231 = scalar_lea.vmem %s3, %s230
      %s232 = smul.u32 7, %s19
      %v234 = vld [vmem:[%s216] sm:$0xff]
      %v235 = vld [vmem:[%s216 + $0x8] sm:$0xff]
      %v236 = vld [vmem:[%s216 + $0x10] sm:$0xff]
      %v237 = vld [vmem:[%s216 + $0x18] sm:$0xff]
      %v238 = vld [vmem:[%s216 + $0x20] sm:$0xff]
      %v239 = vld [vmem:[%s216 + $0x28] sm:$0xff]
      %v240 = vld [vmem:[%s216 + $0x30] sm:$0xff]
      %v241 = vld [vmem:[%s216 + $0x38] sm:$0xff]
      %v242 = vld [vmem:[%s216 + $0x40] sm:$0xff]
      %v243 = vld [vmem:[%s216 + $0x48] sm:$0xff]
      %v244 = vld [vmem:[%s216 + $0x50] sm:$0xff]
      %v245 = vld [vmem:[%s216 + $0x58] sm:$0xff]
      %v246 = vld [vmem:[%s216 + $0x60] sm:$0x3]
      %v247 = vld [vmem:[%s216 + $0x68] sm:$0x3]
      %v248 = vpack.c.bf16 %v236, %v234
      %v249 = vpack.c.bf16 %v237, %v235
      %v250 = vpack.c.bf16 %v240, %v238
      %v251 = vpack.c.bf16 %v241, %v239
      %v252 = vpack.c.bf16 %v244, %v242
      %v253 = vpack.c.bf16 %v245, %v243
      %v254 = vpack.c.bf16 %v246, %v246
      %v255 = vpack.c.bf16 %v247, %v247
      %v256 = vld [vmem:[%s222] sm:$0xf]
      %v257 = vld [vmem:[%s222 + $0x4] sm:$0xf]
      %v258 = vld [vmem:[%s222 + $0x8] sm:$0xf]
      %v259 = vld [vmem:[%s222 + $0xc] sm:$0xf]
      %v260 = vld [vmem:[%s222 + $0x10] sm:$0xf]
      %v261 = vld [vmem:[%s222 + $0x14] sm:$0xf]
      %v262 = vld [vmem:[%s222 + $0x18] sm:$0xf]
      %v263 = vld [vmem:[%s222 + $0x1c] sm:$0xf]
      %v264 = vld [vmem:[%s222 + $0x20] sm:$0xf]
      %v265 = vld [vmem:[%s222 + $0x24] sm:$0xf]
      %v266 = vld [vmem:[%s222 + $0x28] sm:$0xf]
      %v267 = vld [vmem:[%s222 + $0x2c] sm:$0xf]
      %v268 = vld [vmem:[%s222 + $0x30] sm:$0xf]
      %v269 = vld [vmem:[%s222 + $0x34] sm:$0xf]
      %v270 = vld [vmem:[%s222 + $0x38] sm:$0xf]
      %v271 = vld [vmem:[%s222 + $0x3c] sm:$0xf]
      %v272 = vld [vmem:[%s222 + $0x40] sm:$0xf]
      %v273 = vld [vmem:[%s222 + $0x44] sm:$0xf]
      %v274 = vld [vmem:[%s2] sm:$0x1]
      %v276 = vperm.slane %v274, 0
      %v296 = vunpack.c.l.b16 %v256
      %v297 = vunpack.c.l.b16 %v257
      %v298 = vunpack.c.l.b16 %v258
      %v299 = vunpack.c.l.b16 %v259
      %v300 = vunpack.c.l.b16 %v260
      %v301 = vunpack.c.l.b16 %v261
      %v302 = vunpack.c.l.b16 %v262
      %v303 = vunpack.c.l.b16 %v263
      %v304 = vunpack.c.l.b16 %v264
      %v305 = vunpack.c.l.b16 %v265
      %v306 = vunpack.c.l.b16 %v266
      %v307 = vunpack.c.l.b16 %v267
      %v308 = vunpack.c.l.b16 %v268
      %v309 = vunpack.c.l.b16 %v269
      %v310 = vunpack.c.l.b16 %v270
      %v311 = vunpack.c.l.b16 %v271
      %v312 = vunpack.c.l.b16 %v272
      %v313 = vunpack.c.l.b16 %v273
      %v314 = vpack.c.b16 %v297, %v296
      %v315 = vpack.c.b16 %v299, %v298
      %v316 = vpack.c.b16 %v301, %v300
      %v317 = vpack.c.b16 %v303, %v302
      %v318 = vpack.c.b16 %v305, %v304
      %v319 = vpack.c.b16 %v307, %v306
      %v320 = vpack.c.b16 %v309, %v308
      %v321 = vpack.c.b16 %v311, %v310
      %v322 = vpack.c.b16 %v313, %v312
      %vm332 = vcmask 130048
      %v334 = vsel %vm332, %v249, 0
      %v337 = vsel %vm332, %v251, 0
      %v340 = vsel %vm332, %v253, 0
      %v343 = vsel %vm332, %v255, 0
      %345 = vmatpush.bf16.msra.mxu0 %v321
      %346 = vmatpush.bf16.msra.mxu0 %v320
      %347 = vmatpush.bf16.msra.mxu0 %v319
      %348 = vmatpush.bf16.msra.mxu0 %v318
      %349 = vmatpush.bf16.msra.mxu0 %v317
      %350 = vmatpush.bf16.msra.mxu0 %v316
      %351 = vmatpush.bf16.msra.mxu0 %v315
      %352 = vmatpush.bf16.msra.mxu0 %v314
      %353 = vmatmul.bf16.gmra.mxu0 %v248
      %v354 = vpop.f32.mrf.mxu0
      %v355 = vadd.f32 %v276, %v354
      %v356 = vpop.f32.mrf.mxu0
      %v357 = vadd.f32 %v276, %v356
      %358 = vmatmul.bf16.gmra.mxu0 %v250
      %v359 = vpop.f32.mrf.mxu0
      %v360 = vadd.f32 %v276, %v359
      %v361 = vpop.f32.mrf.mxu0
      %v362 = vadd.f32 %v276, %v361
      %363 = vmatmul.bf16.gmra.mxu0 %v252
      %v364 = vpop.f32.mrf.mxu0
      %v365 = vadd.f32 %v276, %v364
      %v366 = vpop.f32.mrf.mxu0
      %v367 = vadd.f32 %v276, %v366
      %368 = vmatmul.bf16.gmra.mxu0 %v254
      %v369 = vpop.f32.mrf.mxu0
      %v370 = vadd.f32 %v276, %v369
      %v371 = vpop.f32.mrf.mxu0
      %372 = vdwg.mxu0
      %373 = vmatpush.bf16.msra.mxu0 0
      %374 = vmatpush.bf16.msra.mxu0 0
      %375 = vmatpush.bf16.msra.mxu0 0
      %376 = vmatpush.bf16.msra.mxu0 0
      %377 = vmatpush.bf16.msra.mxu0 0
      %378 = vmatpush.bf16.msra.mxu0 0
      %379 = vmatpush.bf16.msra.mxu0 0
      %380 = vmatpush.bf16.msra.mxu0 %v322
      %381 = vmatmul.bf16.gmra.mxu0 %v334
      %v382 = vpop.f32.mrf.mxu0
      %v383 = vadd.f32 %v355, %v382
      %v384 = vpop.f32.mrf.mxu0
      %v385 = vadd.f32 %v357, %v384
      %386 = vmatmul.bf16.gmra.mxu0 %v337
      %v387 = vpop.f32.mrf.mxu0
      %v388 = vadd.f32 %v360, %v387
      %v389 = vpop.f32.mrf.mxu0
      %v390 = vadd.f32 %v362, %v389
      %391 = vmatmul.bf16.gmra.mxu0 %v340
      %v392 = vpop.f32.mrf.mxu0
      %v393 = vadd.f32 %v365, %v392
      %v394 = vpop.f32.mrf.mxu0
      %v395 = vadd.f32 %v367, %v394
      %396 = vmatmul.bf16.gmra.mxu0 %v343
      %v397 = vpop.f32.mrf.mxu0
      %v398 = vadd.f32 %v370, %v397
      %v399 = vpop.f32.mrf.mxu0
      %400 = vdwg.mxu0
      %v401 = vmax.f32 %v383, 0.0
      %v402 = vmax.f32 %v385, 0.0
      %v403 = vmax.f32 %v388, 0.0
      %v404 = vmax.f32 %v390, 0.0
      %v405 = vmax.f32 %v393, 0.0
      %v406 = vmax.f32 %v395, 0.0
      %v407 = vmax.f32 %v398, 0.0
      %408 = vst [vmem:[%s231] sm:$0xff] %v401
      %409 = vst [vmem:[%s231 + $0x8] sm:$0xff] %v402
      %410 = vst [vmem:[%s231 + $0x10] sm:$0xff] %v403
      %411 = vst [vmem:[%s231 + $0x18] sm:$0xff] %v404
      %412 = vst [vmem:[%s231 + $0x20] sm:$0xff] %v405
      %413 = vst [vmem:[%s231 + $0x28] sm:$0xff] %v406
      %414 = vst [vmem:[%s231 + $0x30] sm:$0x3] %v407
      %s415 = smul.u32 7, %s19
      %p416 = scmp.lt.s32.totalorder %s18, 3
      %s417 = scalar_select %p416, %s18, 3
      %p418 = scmp.lt.s32.totalorder %s415, 6
      %s419 = scalar_select %p418, %s415, 6
      %s420 = smul.addr %s417, 7
      %s421 = sadd.s32 %s419, %s420
      %s422 = smul.addr %s421, 8
      %s423 = scalar_lea.vmem %s3, %s422
      // Predicated region
      $region33: #{_lambda_.15} parent=31 // pred_check
        %p424 = pneg %p121
      $region34: #{_lambda_.15} parent=31 // pred_check_branch
        %426 = sbr.rel (%p424) target = $region36
      $region35: #{_lambda_.15} parent=31 // pred_region
        %s427 = smul.u32 7, %s19
      $region36: #{_lambda_.15} parent=31 // pred_fallthru
        _
    $region32: #{_lambda_.15} parent=5 // pred_fallthru
      _
    %p428 = scmp.le.s32.totalorder 2, %s9
    // Predicated region
    $region37: #{_lambda_.15} parent=5 // pred_check
      %p429 = pneg %p428
    $region38: #{_lambda_.15} parent=5 // pred_check_branch
      %431 = sbr.rel (%p429) target = $region40
    $region39: #{_lambda_.15} parent=5 // pred_region
      %s432 = ssub.s32 %s9, 2
      // Predicated region
      $region41: #{_lambda_.15} parent=39 // pred_check
        %p433 = pneg %p127
      $region42: #{_lambda_.15} parent=39 // pred_check_branch
        %435 = sbr.rel (%p433) target = $region44
      $region43: #{_lambda_.15} parent=39 // pred_region
        %s436 = smul.u32 7, %s21
        %p437 = scmp.lt.s32.totalorder %s20, 3
        %s438 = scalar_select %p437, %s20, 3
        %p439 = scmp.lt.s32.totalorder %s436, 6
        %s440 = scalar_select %p439, %s436, 6
        %s441 = smul.addr %s438, 7
        %s442 = sadd.s32 %s440, %s441
        %s443 = smul.addr %s442, 8
        %s444 = scalar_lea.vmem %s3, %s443
      $region44: #{_lambda_.15} parent=39 // pred_fallthru
        _
    $region40: #{_lambda_.15} parent=5 // pred_fallthru
      _
  $region6: #{_lambda_.15} parent=0 // loop_footer
    %s13 = sadd.s32 1, %s9
  $region7: #{_lambda_.15} parent=0 // loop_footer_branch
    %8 = sbr.rel target = $region3
  $region8: #{_lambda_.15} parent=0 // loop_exit
    _

// kernel: _lambda_.16
$region0: #{_lambda_.16}
  #allocation0 [shape = 'u32[]', space=smem, size = 0x4, offset = 0x4, fixed_abs, tag = 'smem constant byte address 0x4 - core index']
  #allocation1 [shape = 'u32[72,128]{1,0:T(1,128)}', space=vmem, size = 0x9000, scoped, tag = 'internal scratch']
  %s0 = inlined_call_operand.vmem [shape: f32[4,242,144], index: 0, kind: input, shape index: {}]
  %s1 = inlined_call_operand.vmem [shape: bf16[4,144,128], index: 1, kind: input, shape index: {}]
  %s2 = inlined_call_operand.vmem [shape: f32[1,128], index: 2, kind: input, shape index: {}]
  %s3 = inlined_call_operand.vmem [shape: f32[4,242,128], index: 3, kind: output, shape index: {}]
  %s4 = sld [smem:[#allocation0]]
  $region45: #{_lambda_.16} parent=0
    _
  %s6 = ssub.s32 1, %s4
  %s7 = scalar_select 0, %s6, %s4
  loop: start=0, step=1, limit=6
  $region2: #{_lambda_.16} parent=0 // loop_pre_header
    _
  $region3: #{_lambda_.16} parent=0 // loop_header
    %s9 = sphi 0, %s13
    %p10 = scmp.ge.s32.totalorder %s9, 6
    %s16 = sphi 0, %s28
    %s17 = sphi 0, %s24
    %s18 = sphi 0, %s16
    %s19 = sphi 0, %s17
    %s20 = sphi 0, %s18
    %s21 = sphi 0, %s19
    %s33 = sphi 0, %s35
    %s36 = sphi 0, %s33
    %s37 = sphi 0, %s36
    %s53 = sphi 0, %s37
    %s59 = sphi 0, %s61
    %s62 = sphi 0, %s59
    %s63 = sphi 0, %s62
    %s79 = sphi 0, %s63
    %s83 = sphi 0, %s83
    %s85 = sphi 0, %s83
    %s86 = sphi 0, %s85
    %s100 = sphi 0, %s86
    %s108 = sphi 0, %s110
    %s111 = sphi 0, %s108
    %s112 = sphi 0, %s111
    %s128 = sphi 0, %s112
  $region4: #{_lambda_.16} parent=0 // loop_header_branch
    %12 = sbr.rel (%p10) target = $region8
  $region5: #{_lambda_.16} parent=0 // loop_body
    %s14 = ssub.s32 %s9, 1
    %s15 = ssub.s32 %s9, 2
    %s22 = sadd.s32 1, %s17
    %p23 = scmp.ge.s32.totalorder %s22, 1
    %s24 = scalar_select %p23, 0, %s22
    %s25 = sadd.s32 1, %s16
    %s26 = scalar_select %p23, %s25, %s16
    %p27 = scmp.ge.s32.totalorder %s26, 4
    %s28 = scalar_select %p27, 0, %s26
    %s29 = ssub.s32 %s16, %s28
    %s30 = ssub.s32 %s17, %s24
    %s31 = sor.u32 %s29, %s30
    %p32 = scmp.eq.s32.totalorder %s31, 0
    %s34 = sadd.s32 %s33, 1
    %s35 = scalar_select %p32, %s33, %s34
    %p38 = pneg %p32
    %p39 = scmp.eq.s32.totalorder %s9, 3
    %p40 = por %p38, %p39
    %p41 = scmp.ne.s32.totalorder %s33, %s36
    %p42 = scmp.eq.s32.totalorder %s9, 0
    %p43 = por %p41, %p42
    %p44 = scmp.ne.s32.totalorder %s33, %s36
    %p45 = scmp.eq.s32.totalorder %s14, 3
    %p46 = por %p44, %p45
    %p47 = scmp.ne.s32.totalorder %s36, %s37
    %p48 = scmp.eq.s32.totalorder %s14, 0
    %p49 = por %p47, %p48
    %p50 = scmp.ne.s32.totalorder %s36, %s37
    %p51 = scmp.eq.s32.totalorder %s15, 3
    %p52 = por %p50, %p51
    %p54 = scmp.ne.s32.totalorder %s37, %s53
    %p55 = scmp.eq.s32.totalorder %s15, 0
    %p56 = por %p54, %p55
    %s57 = ssub.s32 %s16, %s28
    %p58 = scmp.eq.s32.totalorder %s57, 0
    %s60 = sadd.s32 %s59, 1
    %s61 = scalar_select %p58, %s59, %s60
    %p64 = pneg %p58
    %p65 = scmp.eq.s32.totalorder %s9, 3
    %p66 = por %p64, %p65
    %p67 = scmp.ne.s32.totalorder %s59, %s62
    %p68 = scmp.eq.s32.totalorder %s9, 0
    %p69 = por %p67, %p68
    %p70 = scmp.ne.s32.totalorder %s59, %s62
    %p71 = scmp.eq.s32.totalorder %s14, 3
    %p72 = por %p70, %p71
    %p73 = scmp.ne.s32.totalorder %s62, %s63
    %p74 = scmp.eq.s32.totalorder %s14, 0
    %p75 = por %p73, %p74
    %p76 = scmp.ne.s32.totalorder %s62, %s63
    %p77 = scmp.eq.s32.totalorder %s15, 3
    %p78 = por %p76, %p77
    %p80 = scmp.ne.s32.totalorder %s63, %s79
    %p81 = scmp.eq.s32.totalorder %s15, 0
    %p82 = por %p80, %p81
    %s84 = sadd.s32 %s83, 1
    %p87 = scmp.eq.s32.totalorder %s9, 3
    %p88 = scmp.ne.s32.totalorder %s83, %s85
    %p89 = scmp.eq.s32.totalorder %s9, 0
    %p90 = por %p88, %p89
    %p91 = scmp.ne.s32.totalorder %s83, %s85
    %p92 = scmp.eq.s32.totalorder %s14, 3
    %p93 = por %p91, %p92
    %p94 = scmp.ne.s32.totalorder %s85, %s86
    %p95 = scmp.eq.s32.totalorder %s14, 0
    %p96 = por %p94, %p95
    %p97 = scmp.ne.s32.totalorder %s85, %s86
    %p98 = scmp.eq.s32.totalorder %s15, 3
    %p99 = por %p97, %p98
    %p101 = scmp.ne.s32.totalorder %s86, %s100
    %p102 = scmp.eq.s32.totalorder %s15, 0
    %p103 = por %p101, %p102
    %s104 = ssub.s32 %s16, %s28
    %s105 = ssub.s32 %s17, %s24
    %s106 = sor.u32 %s104, %s105
    %p107 = scmp.eq.s32.totalorder %s106, 0
    %s109 = sadd.s32 %s108, 1
    %s110 = scalar_select %p107, %s108, %s109
    %p113 = pneg %p107
    %p114 = scmp.eq.s32.totalorder %s9, 3
    %p115 = por %p113, %p114
    %p116 = scmp.ne.s32.totalorder %s108, %s111
    %p117 = scmp.eq.s32.totalorder %s9, 0
    %p118 = por %p116, %p117
    %p119 = scmp.ne.s32.totalorder %s108, %s111
    %p120 = scmp.eq.s32.totalorder %s14, 3
    %p121 = por %p119, %p120
    %p122 = scmp.ne.s32.totalorder %s111, %s112
    %p123 = scmp.eq.s32.totalorder %s14, 0
    %p124 = por %p122, %p123
    %p125 = scmp.ne.s32.totalorder %s111, %s112
    %p126 = scmp.eq.s32.totalorder %s15, 3
    %p127 = por %p125, %p126
    %p129 = scmp.ne.s32.totalorder %s112, %s128
    %p130 = scmp.eq.s32.totalorder %s15, 0
    %p131 = por %p129, %p130
    %p132 = scmp.le.s32.totalorder 1, %s9
    %p133 = scmp.lt.s32.totalorder %s9, 5
    %p134 = pnand %p132, %p133
    %p135 = pneg %p134
    // Predicated region
    $region9: #{_lambda_.16} parent=5 // pred_check
      _
    $region10: #{_lambda_.16} parent=5 // pred_check_branch
      %137 = sbr.rel (%p134) target = $region12
    $region11: #{_lambda_.16} parent=5 // pred_region
      %s138 = ssub.s32 %s9, 1
      // Predicated region
      $region13: #{_lambda_.16} parent=11 // pred_check
        %p139 = pneg %p96
      $region14: #{_lambda_.16} parent=11 // pred_check_branch
        %141 = sbr.rel (%p139) target = $region16
      $region15: #{_lambda_.16} parent=11 // pred_region
        _
      $region16: #{_lambda_.16} parent=11 // pred_fallthru
        _
    $region12: #{_lambda_.16} parent=5 // pred_fallthru
      _
    %p142 = scmp.lt.s32.totalorder %s9, 4
    // Predicated region
    $region17: #{_lambda_.16} parent=5 // pred_check
      %p143 = pneg %p142
    $region18: #{_lambda_.16} parent=5 // pred_check_branch
      %145 = sbr.rel (%p143) target = $region20
    $region19: #{_lambda_.16} parent=5 // pred_region
      // Predicated region
      $region21: #{_lambda_.16} parent=19 // pred_check
        %p146 = pneg %p43
      $region22: #{_lambda_.16} parent=19 // pred_check_branch
        %148 = sbr.rel (%p146) target = $region24
      $region23: #{_lambda_.16} parent=19 // pred_region
        %s149 = smul.u32 31, %s17
        %p150 = scmp.lt.s32.totalorder %s16, 3
        %s151 = scalar_select %p150, %s16, 3
        %p152 = scmp.lt.s32.totalorder %s149, 30
        %s153 = scalar_select %p152, %s149, 30
        %s154 = smul.addr %s153, 2
        %s155 = smul.addr %s151, 62
        %s156 = sadd.s32 %s154, %s155
        %s157 = smul.addr %s156, 8
        %s158 = scalar_lea.vmem %s0, %s157
        %s159 = smul.u32 31, %s17
      $region24: #{_lambda_.16} parent=19 // pred_fallthru
        _
      // Predicated region
      $region25: #{_lambda_.16} parent=19 // pred_check
        %p160 = pneg %p69
      $region26: #{_lambda_.16} parent=19 // pred_check_branch
        %162 = sbr.rel (%p160) target = $region28
      $region27: #{_lambda_.16} parent=19 // pred_region
        %p163 = scmp.lt.s32.totalorder %s16, 3
        %s164 = scalar_select %p163, %s16, 3
        %s165 = smul.addr %s164, 18
        %s166 = smul.addr %s165, 4
        %s167 = scalar_lea.vmem %s1, %s166
      $region28: #{_lambda_.16} parent=19 // pred_fallthru
        _
    $region20: #{_lambda_.16} parent=5 // pred_fallthru
      _
    %p168 = scmp.le.s32.totalorder 1, %s9
    %p169 = scmp.lt.s32.totalorder %s9, 5
    %p170 = pnand %p168, %p169
    %p171 = pneg %p170
    // Predicated region
    $region29: #{_lambda_.16} parent=5 // pred_check
      _
    $region30: #{_lambda_.16} parent=5 // pred_check_branch
      %173 = sbr.rel (%p170) target = $region32
    $region31: #{_lambda_.16} parent=5 // pred_region
      %s174 = ssub.s32 %s9, 1
      %s175 = smul.u32 31, %s19
      %p176 = scmp.lt.s32.totalorder %s18, 3
      %s177 = scalar_select %p176, %s18, 3
      %p178 = scmp.lt.s32.totalorder %s175, 30
      %s179 = scalar_select %p178, %s175, 30
      %s180 = smul.addr %s179, 2
      %s181 = smul.addr %s177, 62
      %s182 = sadd.s32 %s180, %s181
      %s183 = smul.addr %s182, 8
      %s184 = scalar_lea.vmem %s0, %s183
      %p185 = pneg %p49
      %p186 = pneg %p46
      %p187 = scmp.lt.s32.totalorder %s18, 3
      %s188 = scalar_select %p187, %s18, 3
      %s189 = smul.addr %s188, 18
      %s190 = smul.addr %s189, 4
      %s191 = scalar_lea.vmem %s1, %s190
      %p192 = pneg %p75
      %p193 = pneg %p72
      %p194 = pneg %p96
      %p195 = pneg %p93
      %p196 = pneg %p124
      %p197 = pneg %p121
      %s198 = smul.u32 31, %s19
      %p199 = scmp.lt.s32.totalorder %s18, 3
      %s200 = scalar_select %p199, %s18, 3
      %p201 = scmp.lt.s32.totalorder %s198, 30
      %s202 = scalar_select %p201, %s198, 30
      %s203 = smul.addr %s200, 31
      %s204 = sadd.s32 %s202, %s203
      %s205 = smul.addr %s204, 8
      %s206 = scalar_lea.vmem %s3, %s205
      %s207 = smul.u32 31, %s19
      %p208 = scmp.lt.s32.totalorder %s18, 3
      %s209 = scalar_select %p208, %s18, 3
      %p210 = scmp.lt.s32.totalorder %s207, 30
      %s211 = scalar_select %p210, %s207, 30
      %s212 = smul.addr %s211, 2
      %s213 = smul.addr %s209, 62
      %s214 = sadd.s32 %s212, %s213
      %s215 = smul.addr %s214, 8
      %s216 = scalar_lea.vmem %s0, %s215
      %s217 = smul.u32 31, %s19
      %p218 = scmp.lt.s32.totalorder %s18, 3
      %s219 = scalar_select %p218, %s18, 3
      %s220 = smul.addr %s219, 18
      %s221 = smul.addr %s220, 4
      %s222 = scalar_lea.vmem %s1, %s221
      %s223 = smul.u32 31, %s19
      %p224 = scmp.lt.s32.totalorder %s18, 3
      %s225 = scalar_select %p224, %s18, 3
      %p226 = scmp.lt.s32.totalorder %s223, 30
      %s227 = scalar_select %p226, %s223, 30
      %s228 = smul.addr %s225, 31
      %s229 = sadd.s32 %s227, %s228
      %s230 = smul.addr %s229, 8
      %s231 = scalar_lea.vmem %s3, %s230
      %s232 = smul.u32 31, %s19
      %v234 = vld [vmem:[%s216] sm:$0xff]
      %v235 = vld [vmem:[%s216 + $0x8] sm:$0xff]
      %v236 = vld [vmem:[%s216 + $0x10] sm:$0xff]
      %v237 = vld [vmem:[%s216 + $0x18] sm:$0xff]
      %v238 = vld [vmem:[%s216 + $0x20] sm:$0xff]
      %v239 = vld [vmem:[%s216 + $0x28] sm:$0xff]
      %v240 = vld [vmem:[%s216 + $0x30] sm:$0xff]
      %v241 = vld [vmem:[%s216 + $0x38] sm:$0xff]
      %v242 = vld [vmem:[%s216 + $0x40] sm:$0xff]
      %v243 = vld [vmem:[%s216 + $0x48] sm:$0xff]
      %v244 = vld [vmem:[%s216 + $0x50] sm:$0xff]
      %v245 = vld [vmem:[%s216 + $0x58] sm:$0xff]
      %v246 = vld [vmem:[%s216 + $0x60] sm:$0xff]
      %v247 = vld [vmem:[%s216 + $0x68] sm:$0xff]
      %v248 = vld [vmem:[%s216 + $0x70] sm:$0xff]
      %v249 = vld [vmem:[%s216 + $0x78] sm:$0xff]
      %v250 = vld [vmem:[%s216 + $0x80] sm:$0xff]
      %v251 = vld [vmem:[%s216 + $0x88] sm:$0xff]
      %v252 = vld [vmem:[%s216 + $0x90] sm:$0xff]
      %v253 = vld [vmem:[%s216 + $0x98] sm:$0xff]
      %v254 = vld [vmem:[%s216 + $0xa0] sm:$0xff]
      %v255 = vld [vmem:[%s216 + $0xa8] sm:$0xff]
      %v256 = vld [vmem:[%s216 + $0xb0] sm:$0xff]
      %v257 = vld [vmem:[%s216 + $0xb8] sm:$0xff]
      %v258 = vld [vmem:[%s216 + $0xc0] sm:$0xff]
      %v259 = vld [vmem:[%s216 + $0xc8] sm:$0xff]
      %v260 = vld [vmem:[%s216 + $0xd0] sm:$0xff]
      %v261 = vld [vmem:[%s216 + $0xd8] sm:$0xff]
      %v262 = vld [vmem:[%s216 + $0xe0] sm:$0xff]
      %v263 = vld [vmem:[%s216 + $0xe8] sm:$0xff]
      %v264 = vld [vmem:[%s216 + $0xf0] sm:$0xff]
      %v265 = vld [vmem:[%s216 + $0xf8] sm:$0xff]
      %v266 = vld [vmem:[%s216 + $0x100] sm:$0xff]
      %v267 = vld [vmem:[%s216 + $0x108] sm:$0xff]
      %v268 = vld [vmem:[%s216 + $0x110] sm:$0xff]
      %v269 = vld [vmem:[%s216 + $0x118] sm:$0xff]
      %v270 = vld [vmem:[%s216 + $0x120] sm:$0xff]
      %v271 = vld [vmem:[%s216 + $0x128] sm:$0xff]
      %v272 = vld [vmem:[%s216 + $0x130] sm:$0xff]
      %v273 = vld [vmem:[%s216 + $0x138] sm:$0xff]
      %v274 = vld [vmem:[%s216 + $0x140] sm:$0xff]
      %v275 = vld [vmem:[%s216 + $0x148] sm:$0xff]
      %v276 = vld [vmem:[%s216 + $0x150] sm:$0xff]
      %v277 = vld [vmem:[%s216 + $0x158] sm:$0xff]
      %v278 = vld [vmem:[%s216 + $0x160] sm:$0xff]
      %v279 = vld [vmem:[%s216 + $0x168] sm:$0xff]
      %v280 = vld [vmem:[%s216 + $0x170] sm:$0xff]
      %v281 = vld [vmem:[%s216 + $0x178] sm:$0xff]
      %v282 = vld [vmem:[%s216 + $0x180] sm:$0xff]
      %v283 = vld [vmem:[%s216 + $0x188] sm:$0xff]
      %v284 = vld [vmem:[%s216 + $0x190] sm:$0xff]
      %v285 = vld [vmem:[%s216 + $0x198] sm:$0xff]
      %v286 = vld [vmem:[%s216 + $0x1a0] sm:$0xff]
      %v287 = vld [vmem:[%s216 + $0x1a8] sm:$0xff]
      %v288 = vld [vmem:[%s216 + $0x1b0] sm:$0xff]
      %v289 = vld [vmem:[%s216 + $0x1b8] sm:$0xff]
      %v290 = vld [vmem:[%s216 + $0x1c0] sm:$0xff]
      %v291 = vld [vmem:[%s216 + $0x1c8] sm:$0xff]
      %v292 = vld [vmem:[%s216 + $0x1d0] sm:$0xff]
      %v293 = vld [vmem:[%s216 + $0x1d8] sm:$0xff]
      %v294 = vld [vmem:[%s216 + $0x1e0] sm:$0x3]
      %v295 = vld [vmem:[%s216 + $0x1e8] sm:$0x3]
      %v296 = vpack.c.bf16 %v236, %v234
      %v297 = vpack.c.bf16 %v237, %v235
      %v298 = vpack.c.bf16 %v240, %v238
      %v299 = vpack.c.bf16 %v241, %v239
      %v300 = vpack.c.bf16 %v244, %v242
      %v301 = vpack.c.bf16 %v245, %v243
      %v302 = vpack.c.bf16 %v248, %v246
      %v303 = vpack.c.bf16 %v249, %v247
      %v304 = vpack.c.bf16 %v252, %v250
      %v305 = vpack.c.bf16 %v253, %v251
      %v306 = vpack.c.bf16 %v256, %v254
      %v307 = vpack.c.bf16 %v257, %v255
      %v308 = vpack.c.bf16 %v260, %v258
      %v309 = vpack.c.bf16 %v261, %v259
      %v310 = vpack.c.bf16 %v264, %v262
      %v311 = vpack.c.bf16 %v265, %v263
      %v312 = vpack.c.bf16 %v268, %v266
      %v313 = vpack.c.bf16 %v269, %v267
      %v314 = vpack.c.bf16 %v272, %v270
      %v315 = vpack.c.bf16 %v273, %v271
      %v316 = vpack.c.bf16 %v276, %v274
      %v317 = vpack.c.bf16 %v277, %v275
      %v318 = vpack.c.bf16 %v280, %v278
      %v319 = vpack.c.bf16 %v281, %v279
      %v320 = vpack.c.bf16 %v284, %v282
      %v321 = vpack.c.bf16 %v285, %v283
      %v322 = vpack.c.bf16 %v288, %v286
      %v323 = vpack.c.bf16 %v289, %v287
      %v324 = vpack.c.bf16 %v292, %v290
      %v325 = vpack.c.bf16 %v293, %v291
      %v326 = vpack.c.bf16 %v294, %v294
      %v327 = vpack.c.bf16 %v295, %v295
      %v328 = vld [vmem:[%s222] sm:$0xf]
      %v329 = vld [vmem:[%s222 + $0x4] sm:$0xf]
      %v330 = vld [vmem:[%s222 + $0x8] sm:$0xf]
      %v331 = vld [vmem:[%s222 + $0xc] sm:$0xf]
      %v332 = vld [vmem:[%s222 + $0x10] sm:$0xf]
      %v333 = vld [vmem:[%s222 + $0x14] sm:$0xf]
      %v334 = vld [vmem:[%s222 + $0x18] sm:$0xf]
      %v335 = vld [vmem:[%s222 + $0x1c] sm:$0xf]
      %v336 = vld [vmem:[%s222 + $0x20] sm:$0xf]
      %v337 = vld [vmem:[%s222 + $0x24] sm:$0xf]
      %v338 = vld [vmem:[%s222 + $0x28] sm:$0xf]
      %v339 = vld [vmem:[%s222 + $0x2c] sm:$0xf]
      %v340 = vld [vmem:[%s222 + $0x30] sm:$0xf]
      %v341 = vld [vmem:[%s222 + $0x34] sm:$0xf]
      %v342 = vld [vmem:[%s222 + $0x38] sm:$0xf]
      %v343 = vld [vmem:[%s222 + $0x3c] sm:$0xf]
      %v344 = vld [vmem:[%s222 + $0x40] sm:$0xf]
      %v345 = vld [vmem:[%s222 + $0x44] sm:$0xf]
      %v346 = vld [vmem:[%s2] sm:$0x1]
      %v348 = vperm.slane %v346, 0
      %v368 = vunpack.c.l.b16 %v328
      %v369 = vunpack.c.l.b16 %v329
      %v370 = vunpack.c.l.b16 %v330
      %v371 = vunpack.c.l.b16 %v331
      %v372 = vunpack.c.l.b16 %v332
      %v373 = vunpack.c.l.b16 %v333
      %v374 = vunpack.c.l.b16 %v334
      %v375 = vunpack.c.l.b16 %v335
      %v376 = vunpack.c.l.b16 %v336
      %v377 = vunpack.c.l.b16 %v337
      %v378 = vunpack.c.l.b16 %v338
      %v379 = vunpack.c.l.b16 %v339
      %v380 = vunpack.c.l.b16 %v340
      %v381 = vunpack.c.l.b16 %v341
      %v382 = vunpack.c.l.b16 %v342
      %v383 = vunpack.c.l.b16 %v343
      %v384 = vunpack.c.l.b16 %v344
      %v385 = vunpack.c.l.b16 %v345
      %v386 = vpack.c.b16 %v369, %v368
      %v387 = vpack.c.b16 %v371, %v370
      %v388 = vpack.c.b16 %v373, %v372
      %v389 = vpack.c.b16 %v375, %v374
      %v390 = vpack.c.b16 %v377, %v376
      %v391 = vpack.c.b16 %v379, %v378
      %v392 = vpack.c.b16 %v381, %v380
      %v393 = vpack.c.b16 %v383, %v382
      %v394 = vpack.c.b16 %v385, %v384
      %vm404 = vcmask 130048
      %v406 = vsel %vm404, %v297, 0
      %v409 = vsel %vm404, %v299, 0
      %v412 = vsel %vm404, %v301, 0
      %v415 = vsel %vm404, %v303, 0
      %v418 = vsel %vm404, %v305, 0
      %v421 = vsel %vm404, %v307, 0
      %v424 = vsel %vm404, %v309, 0
      %v427 = vsel %vm404, %v311, 0
      %v430 = vsel %vm404, %v313, 0
      %v433 = vsel %vm404, %v315, 0
      %v436 = vsel %vm404, %v317, 0
      %v439 = vsel %vm404, %v319, 0
      %v442 = vsel %vm404, %v321, 0
      %v445 = vsel %vm404, %v323, 0
      %v448 = vsel %vm404, %v325, 0
      %v451 = vsel %vm404, %v327, 0
      %453 = vmatpush.bf16.msra.mxu0 %v393
      %454 = vmatpush.bf16.msra.mxu0 %v392
      %455 = vmatpush.bf16.msra.mxu0 %v391
      %456 = vmatpush.bf16.msra.mxu0 %v390
      %457 = vmatpush.bf16.msra.mxu0 %v389
      %458 = vmatpush.bf16.msra.mxu0 %v388
      %459 = vmatpush.bf16.msra.mxu0 %v387
      %460 = vmatpush.bf16.msra.mxu0 %v386
      %461 = vmatmul.bf16.gmra.mxu0 %v296
      %v462 = vpop.f32.mrf.mxu0
      %v463 = vadd.f32 %v348, %v462
      %v464 = vpop.f32.mrf.mxu0
      %v465 = vadd.f32 %v348, %v464
      %466 = vmatmul.bf16.gmra.mxu0 %v298
      %v467 = vpop.f32.mrf.mxu0
      %v468 = vadd.f32 %v348, %v467
      %v469 = vpop.f32.mrf.mxu0
      %v470 = vadd.f32 %v348, %v469
      %471 = vmatmul.bf16.gmra.mxu0 %v300
      %v472 = vpop.f32.mrf.mxu0
      %v473 = vadd.f32 %v348, %v472
      %v474 = vpop.f32.mrf.mxu0
      %v475 = vadd.f32 %v348, %v474
      %476 = vmatmul.bf16.gmra.mxu0 %v302
      %v477 = vpop.f32.mrf.mxu0
      %v478 = vadd.f32 %v348, %v477
      %v479 = vpop.f32.mrf.mxu0
      %v480 = vadd.f32 %v348, %v479
      %481 = vmatmul.bf16.gmra.mxu0 %v304
      %v482 = vpop.f32.mrf.mxu0
      %v483 = vadd.f32 %v348, %v482
      %v484 = vpop.f32.mrf.mxu0
      %v485 = vadd.f32 %v348, %v484
      %486 = vmatmul.bf16.gmra.mxu0 %v306
      %v487 = vpop.f32.mrf.mxu0
      %v488 = vadd.f32 %v348, %v487
      %v489 = vpop.f32.mrf.mxu0
      %v490 = vadd.f32 %v348, %v489
      %491 = vmatmul.bf16.gmra.mxu0 %v308
      %v492 = vpop.f32.mrf.mxu0
      %v493 = vadd.f32 %v348, %v492
      %v494 = vpop.f32.mrf.mxu0
      %v495 = vadd.f32 %v348, %v494
      %496 = vmatmul.bf16.gmra.mxu0 %v310
      %v497 = vpop.f32.mrf.mxu0
      %v498 = vadd.f32 %v348, %v497
      %v499 = vpop.f32.mrf.mxu0
      %v500 = vadd.f32 %v348, %v499
      %501 = vmatmul.bf16.gmra.mxu0 %v312
      %v502 = vpop.f32.mrf.mxu0
      %v503 = vadd.f32 %v348, %v502
      %v504 = vpop.f32.mrf.mxu0
      %v505 = vadd.f32 %v348, %v504
      %506 = vmatmul.bf16.gmra.mxu0 %v314
      %v507 = vpop.f32.mrf.mxu0
      %v508 = vadd.f32 %v348, %v507
      %v509 = vpop.f32.mrf.mxu0
      %v510 = vadd.f32 %v348, %v509
      %511 = vmatmul.bf16.gmra.mxu0 %v316
      %v512 = vpop.f32.mrf.mxu0
      %v513 = vadd.f32 %v348, %v512
      %v514 = vpop.f32.mrf.mxu0
      %v515 = vadd.f32 %v348, %v514
      %516 = vmatmul.bf16.gmra.mxu0 %v318
      %v517 = vpop.f32.mrf.mxu0
      %v518 = vadd.f32 %v348, %v517
      %v519 = vpop.f32.mrf.mxu0
      %v520 = vadd.f32 %v348, %v519
      %521 = vmatmul.bf16.gmra.mxu0 %v320
      %v522 = vpop.f32.mrf.mxu0
      %v523 = vadd.f32 %v348, %v522
      %v524 = vpop.f32.mrf.mxu0
      %v525 = vadd.f32 %v348, %v524
      %526 = vmatmul.bf16.gmra.mxu0 %v322
      %v527 = vpop.f32.mrf.mxu0
      %v528 = vadd.f32 %v348, %v527
      %v529 = vpop.f32.mrf.mxu0
      %v530 = vadd.f32 %v348, %v529
      %531 = vmatmul.bf16.gmra.mxu0 %v324
      %v532 = vpop.f32.mrf.mxu0
      %v533 = vadd.f32 %v348, %v532
      %v534 = vpop.f32.mrf.mxu0
      %v535 = vadd.f32 %v348, %v534
      %536 = vmatmul.bf16.gmra.mxu0 %v326
      %v537 = vpop.f32.mrf.mxu0
      %v538 = vadd.f32 %v348, %v537
      %v539 = vpop.f32.mrf.mxu0
      %540 = vdwg.mxu0
      %541 = vmatpush.bf16.msra.mxu0 0
      %542 = vmatpush.bf16.msra.mxu0 0
      %543 = vmatpush.bf16.msra.mxu0 0
      %544 = vmatpush.bf16.msra.mxu0 0
      %545 = vmatpush.bf16.msra.mxu0 0
      %546 = vmatpush.bf16.msra.mxu0 0
      %547 = vmatpush.bf16.msra.mxu0 0
      %548 = vmatpush.bf16.msra.mxu0 %v394
      %549 = vmatmul.bf16.gmra.mxu0 %v406
      %v550 = vpop.f32.mrf.mxu0
      %v551 = vadd.f32 %v463, %v550
      %v552 = vpop.f32.mrf.mxu0
      %v553 = vadd.f32 %v465, %v552
      %554 = vmatmul.bf16.gmra.mxu0 %v409
      %v555 = vpop.f32.mrf.mxu0
      %v556 = vadd.f32 %v468, %v555
      %v557 = vpop.f32.mrf.mxu0
      %v558 = vadd.f32 %v470, %v557
      %559 = vmatmul.bf16.gmra.mxu0 %v412
      %v560 = vpop.f32.mrf.mxu0
      %v561 = vadd.f32 %v473, %v560
      %v562 = vpop.f32.mrf.mxu0
      %v563 = vadd.f32 %v475, %v562
      %564 = vmatmul.bf16.gmra.mxu0 %v415
      %v565 = vpop.f32.mrf.mxu0
      %v566 = vadd.f32 %v478, %v565
      %v567 = vpop.f32.mrf.mxu0
      %v568 = vadd.f32 %v480, %v567
      %569 = vmatmul.bf16.gmra.mxu0 %v418
      %v570 = vpop.f32.mrf.mxu0
      %v571 = vadd.f32 %v483, %v570
      %v572 = vpop.f32.mrf.mxu0
      %v573 = vadd.f32 %v485, %v572
      %574 = vmatmul.bf16.gmra.mxu0 %v421
      %v575 = vpop.f32.mrf.mxu0
      %v576 = vadd.f32 %v488, %v575
      %v577 = vpop.f32.mrf.mxu0
      %v578 = vadd.f32 %v490, %v577
      %579 = vmatmul.bf16.gmra.mxu0 %v424
      %v580 = vpop.f32.mrf.mxu0
      %v581 = vadd.f32 %v493, %v580
      %v582 = vpop.f32.mrf.mxu0
      %v583 = vadd.f32 %v495, %v582
      %584 = vmatmul.bf16.gmra.mxu0 %v427
      %v585 = vpop.f32.mrf.mxu0
      %v586 = vadd.f32 %v498, %v585
      %v587 = vpop.f32.mrf.mxu0
      %v588 = vadd.f32 %v500, %v587
      %589 = vmatmul.bf16.gmra.mxu0 %v430
      %v590 = vpop.f32.mrf.mxu0
      %v591 = vadd.f32 %v503, %v590
      %v592 = vpop.f32.mrf.mxu0
      %v593 = vadd.f32 %v505, %v592
      %594 = vmatmul.bf16.gmra.mxu0 %v433
      %v595 = vpop.f32.mrf.mxu0
      %v596 = vadd.f32 %v508, %v595
      %v597 = vpop.f32.mrf.mxu0
      %v598 = vadd.f32 %v510, %v597
      %599 = vmatmul.bf16.gmra.mxu0 %v436
      %v600 = vpop.f32.mrf.mxu0
      %v601 = vadd.f32 %v513, %v600
      %v602 = vpop.f32.mrf.mxu0
      %v603 = vadd.f32 %v515, %v602
      %604 = vmatmul.bf16.gmra.mxu0 %v439
      %v605 = vpop.f32.mrf.mxu0
      %v606 = vadd.f32 %v518, %v605
      %v607 = vpop.f32.mrf.mxu0
      %v608 = vadd.f32 %v520, %v607
      %609 = vmatmul.bf16.gmra.mxu0 %v442
      %v610 = vpop.f32.mrf.mxu0
      %v611 = vadd.f32 %v523, %v610
      %v612 = vpop.f32.mrf.mxu0
      %v613 = vadd.f32 %v525, %v612
      %614 = vmatmul.bf16.gmra.mxu0 %v445
      %v615 = vpop.f32.mrf.mxu0
      %v616 = vadd.f32 %v528, %v615
      %v617 = vpop.f32.mrf.mxu0
      %v618 = vadd.f32 %v530, %v617
      %619 = vmatmul.bf16.gmra.mxu0 %v448
      %v620 = vpop.f32.mrf.mxu0
      %v621 = vadd.f32 %v533, %v620
      %v622 = vpop.f32.mrf.mxu0
      %v623 = vadd.f32 %v535, %v622
      %624 = vmatmul.bf16.gmra.mxu0 %v451
      %v625 = vpop.f32.mrf.mxu0
      %v626 = vadd.f32 %v538, %v625
      %v627 = vpop.f32.mrf.mxu0
      %628 = vdwg.mxu0
      %v629 = vmax.f32 %v551, 0.0
      %v630 = vmax.f32 %v553, 0.0
      %v631 = vmax.f32 %v556, 0.0
      %v632 = vmax.f32 %v558, 0.0
      %v633 = vmax.f32 %v561, 0.0
      %v634 = vmax.f32 %v563, 0.0
      %v635 = vmax.f32 %v566, 0.0
      %v636 = vmax.f32 %v568, 0.0
      %v637 = vmax.f32 %v571, 0.0
      %v638 = vmax.f32 %v573, 0.0
      %v639 = vmax.f32 %v576, 0.0
      %v640 = vmax.f32 %v578, 0.0
      %v641 = vmax.f32 %v581, 0.0
      %v642 = vmax.f32 %v583, 0.0
      %v643 = vmax.f32 %v586, 0.0
      %v644 = vmax.f32 %v588, 0.0
      %v645 = vmax.f32 %v591, 0.0
      %v646 = vmax.f32 %v593, 0.0
      %v647 = vmax.f32 %v596, 0.0
      %v648 = vmax.f32 %v598, 0.0
      %v649 = vmax.f32 %v601, 0.0
      %v650 = vmax.f32 %v603, 0.0
      %v651 = vmax.f32 %v606, 0.0
      %v652 = vmax.f32 %v608, 0.0
      %v653 = vmax.f32 %v611, 0.0
      %v654 = vmax.f32 %v613, 0.0
      %v655 = vmax.f32 %v616, 0.0
      %v656 = vmax.f32 %v618, 0.0
      %v657 = vmax.f32 %v621, 0.0
      %v658 = vmax.f32 %v623, 0.0
      %v659 = vmax.f32 %v626, 0.0
      %660 = vst [vmem:[%s231] sm:$0xff] %v629
      %661 = vst [vmem:[%s231 + $0x8] sm:$0xff] %v630
      %662 = vst [vmem:[%s231 + $0x10] sm:$0xff] %v631
      %663 = vst [vmem:[%s231 + $0x18] sm:$0xff] %v632
      %664 = vst [vmem:[%s231 + $0x20] sm:$0xff] %v633
      %665 = vst [vmem:[%s231 + $0x28] sm:$0xff] %v634
      %666 = vst [vmem:[%s231 + $0x30] sm:$0xff] %v635
      %667 = vst [vmem:[%s231 + $0x38] sm:$0xff] %v636
      %668 = vst [vmem:[%s231 + $0x40] sm:$0xff] %v637
      %669 = vst [vmem:[%s231 + $0x48] sm:$0xff] %v638
      %670 = vst [vmem:[%s231 + $0x50] sm:$0xff] %v639
      %671 = vst [vmem:[%s231 + $0x58] sm:$0xff] %v640
      %672 = vst [vmem:[%s231 + $0x60] sm:$0xff] %v641
      %673 = vst [vmem:[%s231 + $0x68] sm:$0xff] %v642
      %674 = vst [vmem:[%s231 + $0x70] sm:$0xff] %v643
      %675 = vst [vmem:[%s231 + $0x78] sm:$0xff] %v644
      %676 = vst [vmem:[%s231 + $0x80] sm:$0xff] %v645
      %677 = vst [vmem:[%s231 + $0x88] sm:$0xff] %v646
      %678 = vst [vmem:[%s231 + $0x90] sm:$0xff] %v647
      %679 = vst [vmem:[%s231 + $0x98] sm:$0xff] %v648
      %680 = vst [vmem:[%s231 + $0xa0] sm:$0xff] %v649
      %681 = vst [vmem:[%s231 + $0xa8] sm:$0xff] %v650
      %682 = vst [vmem:[%s231 + $0xb0] sm:$0xff] %v651
      %683 = vst [vmem:[%s231 + $0xb8] sm:$0xff] %v652
      %684 = vst [vmem:[%s231 + $0xc0] sm:$0xff] %v653
      %685 = vst [vmem:[%s231 + $0xc8] sm:$0xff] %v654
      %686 = vst [vmem:[%s231 + $0xd0] sm:$0xff] %v655
      %687 = vst [vmem:[%s231 + $0xd8] sm:$0xff] %v656
      %688 = vst [vmem:[%s231 + $0xe0] sm:$0xff] %v657
      %689 = vst [vmem:[%s231 + $0xe8] sm:$0xff] %v658
      %690 = vst [vmem:[%s231 + $0xf0] sm:$0x3] %v659
      %s691 = smul.u32 31, %s19
      %p692 = scmp.lt.s32.totalorder %s18, 3
      %s693 = scalar_select %p692, %s18, 3
      %p694 = scmp.lt.s32.totalorder %s691, 30
      %s695 = scalar_select %p694, %s691, 30
      %s696 = smul.addr %s693, 31
      %s697 = sadd.s32 %s695, %s696
      %s698 = smul.addr %s697, 8
      %s699 = scalar_lea.vmem %s3, %s698
      // Predicated region
      $region33: #{_lambda_.16} parent=31 // pred_check
        %p700 = pneg %p121
      $region34: #{_lambda_.16} parent=31 // pred_check_branch
        %702 = sbr.rel (%p700) target = $region36
      $region35: #{_lambda_.16} parent=31 // pred_region
        %s703 = smul.u32 31, %s19
      $region36: #{_lambda_.16} parent=31 // pred_fallthru
        _
    $region32: #{_lambda_.16} parent=5 // pred_fallthru
      _
    %p704 = scmp.le.s32.totalorder 2, %s9
    // Predicated region
    $region37: #{_lambda_.16} parent=5 // pred_check
      %p705 = pneg %p704
    $region38: #{_lambda_.16} parent=5 // pred_check_branch
      %707 = sbr.rel (%p705) target = $region40
    $region39: #{_lambda_.16} parent=5 // pred_region
      %s708 = ssub.s32 %s9, 2
      // Predicated region
      $region41: #{_lambda_.16} parent=39 // pred_check
        %p709 = pneg %p127
      $region42: #{_lambda_.16} parent=39 // pred_check_branch
        %711 = sbr.rel (%p709) target = $region44
      $region43: #{_lambda_.16} parent=39 // pred_region
        %s712 = smul.u32 31, %s21
        %p713 = scmp.lt.s32.totalorder %s20, 3
        %s714 = scalar_select %p713, %s20, 3
        %p715 = scmp.lt.s32.totalorder %s712, 30
        %s716 = scalar_select %p715, %s712, 30
        %s717 = smul.addr %s714, 31
        %s718 = sadd.s32 %s716, %s717
        %s719 = smul.addr %s718, 8
        %s720 = scalar_lea.vmem %s3, %s719
      $region44: #{_lambda_.16} parent=39 // pred_fallthru
        _
    $region40: #{_lambda_.16} parent=5 // pred_fallthru
      _
  $region6: #{_lambda_.16} parent=0 // loop_footer
    %s13 = sadd.s32 1, %s9
  $region7: #{_lambda_.16} parent=0 // loop_footer_branch
    %8 = sbr.rel target = $region3
  $region8: #{_lambda_.16} parent=0 // loop_exit
    _

// kernel: _lambda_.17
$region0: #{_lambda_.17}
  #allocation0 [shape = 'u32[]', space=smem, size = 0x4, offset = 0x4, fixed_abs, tag = 'smem constant byte address 0x4 - core index']
  #allocation1 [shape = 'u32[72,128]{1,0:T(1,128)}', space=vmem, size = 0x9000, scoped, tag = 'internal scratch']
  %s0 = inlined_call_operand.vmem [shape: f32[4,1200,128], index: 0, kind: input, shape index: {}]
  %s1 = inlined_call_operand.vmem [shape: bf16[4,128,128], index: 1, kind: input, shape index: {}]
  %s2 = inlined_call_operand.vmem [shape: f32[1,128], index: 2, kind: input, shape index: {}]
  %s3 = inlined_call_operand.vmem [shape: f32[4,1200,128], index: 3, kind: output, shape index: {}]
  %s4 = sld [smem:[#allocation0]]
  $region45: #{_lambda_.17} parent=0
    _
  %s6 = ssub.s32 1, %s4
  %s7 = scalar_select 0, %s6, %s4
  loop: start=0, step=1, limit=10
  $region2: #{_lambda_.17} parent=0 // loop_pre_header
    _
  $region3: #{_lambda_.17} parent=0 // loop_header
    %s9 = sphi 0, %s13
    %p10 = scmp.ge.s32.totalorder %s9, 10
    %s16 = sphi 0, %s28
    %s17 = sphi 0, %s24
    %s18 = sphi 0, %s16
    %s19 = sphi 0, %s17
    %s20 = sphi 0, %s18
    %s21 = sphi 0, %s19
    %s33 = sphi 0, %s35
    %s36 = sphi 0, %s33
    %s37 = sphi 0, %s36
    %s53 = sphi 0, %s37
    %s59 = sphi 0, %s61
    %s62 = sphi 0, %s59
    %s63 = sphi 0, %s62
    %s79 = sphi 0, %s63
    %s83 = sphi 0, %s83
    %s85 = sphi 0, %s83
    %s86 = sphi 0, %s85
    %s100 = sphi 0, %s86
    %s108 = sphi 0, %s110
    %s111 = sphi 0, %s108
    %s112 = sphi 0, %s111
    %s128 = sphi 0, %s112
  $region4: #{_lambda_.17} parent=0 // loop_header_branch
    %12 = sbr.rel (%p10) target = $region8
  $region5: #{_lambda_.17} parent=0 // loop_body
    %s14 = ssub.s32 %s9, 1
    %s15 = ssub.s32 %s9, 2
    %s22 = sadd.s32 1, %s17
    %p23 = scmp.ge.s32.totalorder %s22, 2
    %s24 = scalar_select %p23, 0, %s22
    %s25 = sadd.s32 1, %s16
    %s26 = scalar_select %p23, %s25, %s16
    %p27 = scmp.ge.s32.totalorder %s26, 4
    %s28 = scalar_select %p27, 0, %s26
    %s29 = ssub.s32 %s16, %s28
    %s30 = ssub.s32 %s17, %s24
    %s31 = sor.u32 %s29, %s30
    %p32 = scmp.eq.s32.totalorder %s31, 0
    %s34 = sadd.s32 %s33, 1
    %s35 = scalar_select %p32, %s33, %s34
    %p38 = pneg %p32
    %p39 = scmp.eq.s32.totalorder %s9, 7
    %p40 = por %p38, %p39
    %p41 = scmp.ne.s32.totalorder %s33, %s36
    %p42 = scmp.eq.s32.totalorder %s9, 0
    %p43 = por %p41, %p42
    %p44 = scmp.ne.s32.totalorder %s33, %s36
    %p45 = scmp.eq.s32.totalorder %s14, 7
    %p46 = por %p44, %p45
    %p47 = scmp.ne.s32.totalorder %s36, %s37
    %p48 = scmp.eq.s32.totalorder %s14, 0
    %p49 = por %p47, %p48
    %p50 = scmp.ne.s32.totalorder %s36, %s37
    %p51 = scmp.eq.s32.totalorder %s15, 7
    %p52 = por %p50, %p51
    %p54 = scmp.ne.s32.totalorder %s37, %s53
    %p55 = scmp.eq.s32.totalorder %s15, 0
    %p56 = por %p54, %p55
    %s57 = ssub.s32 %s16, %s28
    %p58 = scmp.eq.s32.totalorder %s57, 0
    %s60 = sadd.s32 %s59, 1
    %s61 = scalar_select %p58, %s59, %s60
    %p64 = pneg %p58
    %p65 = scmp.eq.s32.totalorder %s9, 7
    %p66 = por %p64, %p65
    %p67 = scmp.ne.s32.totalorder %s59, %s62
    %p68 = scmp.eq.s32.totalorder %s9, 0
    %p69 = por %p67, %p68
    %p70 = scmp.ne.s32.totalorder %s59, %s62
    %p71 = scmp.eq.s32.totalorder %s14, 7
    %p72 = por %p70, %p71
    %p73 = scmp.ne.s32.totalorder %s62, %s63
    %p74 = scmp.eq.s32.totalorder %s14, 0
    %p75 = por %p73, %p74
    %p76 = scmp.ne.s32.totalorder %s62, %s63
    %p77 = scmp.eq.s32.totalorder %s15, 7
    %p78 = por %p76, %p77
    %p80 = scmp.ne.s32.totalorder %s63, %s79
    %p81 = scmp.eq.s32.totalorder %s15, 0
    %p82 = por %p80, %p81
    %s84 = sadd.s32 %s83, 1
    %p87 = scmp.eq.s32.totalorder %s9, 7
    %p88 = scmp.ne.s32.totalorder %s83, %s85
    %p89 = scmp.eq.s32.totalorder %s9, 0
    %p90 = por %p88, %p89
    %p91 = scmp.ne.s32.totalorder %s83, %s85
    %p92 = scmp.eq.s32.totalorder %s14, 7
    %p93 = por %p91, %p92
    %p94 = scmp.ne.s32.totalorder %s85, %s86
    %p95 = scmp.eq.s32.totalorder %s14, 0
    %p96 = por %p94, %p95
    %p97 = scmp.ne.s32.totalorder %s85, %s86
    %p98 = scmp.eq.s32.totalorder %s15, 7
    %p99 = por %p97, %p98
    %p101 = scmp.ne.s32.totalorder %s86, %s100
    %p102 = scmp.eq.s32.totalorder %s15, 0
    %p103 = por %p101, %p102
    %s104 = ssub.s32 %s16, %s28
    %s105 = ssub.s32 %s17, %s24
    %s106 = sor.u32 %s104, %s105
    %p107 = scmp.eq.s32.totalorder %s106, 0
    %s109 = sadd.s32 %s108, 1
    %s110 = scalar_select %p107, %s108, %s109
    %p113 = pneg %p107
    %p114 = scmp.eq.s32.totalorder %s9, 7
    %p115 = por %p113, %p114
    %p116 = scmp.ne.s32.totalorder %s108, %s111
    %p117 = scmp.eq.s32.totalorder %s9, 0
    %p118 = por %p116, %p117
    %p119 = scmp.ne.s32.totalorder %s108, %s111
    %p120 = scmp.eq.s32.totalorder %s14, 7
    %p121 = por %p119, %p120
    %p122 = scmp.ne.s32.totalorder %s111, %s112
    %p123 = scmp.eq.s32.totalorder %s14, 0
    %p124 = por %p122, %p123
    %p125 = scmp.ne.s32.totalorder %s111, %s112
    %p126 = scmp.eq.s32.totalorder %s15, 7
    %p127 = por %p125, %p126
    %p129 = scmp.ne.s32.totalorder %s112, %s128
    %p130 = scmp.eq.s32.totalorder %s15, 0
    %p131 = por %p129, %p130
    %p132 = scmp.le.s32.totalorder 1, %s9
    %p133 = scmp.lt.s32.totalorder %s9, 9
    %p134 = pnand %p132, %p133
    %p135 = pneg %p134
    // Predicated region
    $region9: #{_lambda_.17} parent=5 // pred_check
      _
    $region10: #{_lambda_.17} parent=5 // pred_check_branch
      %137 = sbr.rel (%p134) target = $region12
    $region11: #{_lambda_.17} parent=5 // pred_region
      %s138 = ssub.s32 %s9, 1
      // Predicated region
      $region13: #{_lambda_.17} parent=11 // pred_check
        %p139 = pneg %p96
      $region14: #{_lambda_.17} parent=11 // pred_check_branch
        %141 = sbr.rel (%p139) target = $region16
      $region15: #{_lambda_.17} parent=11 // pred_region
        _
      $region16: #{_lambda_.17} parent=11 // pred_fallthru
        _
    $region12: #{_lambda_.17} parent=5 // pred_fallthru
      _
    %p142 = scmp.lt.s32.totalorder %s9, 8
    // Predicated region
    $region17: #{_lambda_.17} parent=5 // pred_check
      %p143 = pneg %p142
    $region18: #{_lambda_.17} parent=5 // pred_check_branch
      %145 = sbr.rel (%p143) target = $region20
    $region19: #{_lambda_.17} parent=5 // pred_region
      // Predicated region
      $region21: #{_lambda_.17} parent=19 // pred_check
        %p146 = pneg %p43
      $region22: #{_lambda_.17} parent=19 // pred_check_branch
        %148 = sbr.rel (%p146) target = $region24
      $region23: #{_lambda_.17} parent=19 // pred_region
        %s149 = smul.u32 75, %s17
        %p150 = scmp.lt.s32.totalorder %s16, 3
        %s151 = scalar_select %p150, %s16, 3
        %p152 = scmp.lt.s32.totalorder %s149, 149
        %s153 = scalar_select %p152, %s149, 149
        %s154 = smul.addr %s151, 150
        %s155 = sadd.s32 %s153, %s154
        %s156 = smul.addr %s155, 8
        %s157 = scalar_lea.vmem %s0, %s156
        %s158 = smul.u32 75, %s17
      $region24: #{_lambda_.17} parent=19 // pred_fallthru
        _
      // Predicated region
      $region25: #{_lambda_.17} parent=19 // pred_check
        %p159 = pneg %p69
      $region26: #{_lambda_.17} parent=19 // pred_check_branch
        %161 = sbr.rel (%p159) target = $region28
      $region27: #{_lambda_.17} parent=19 // pred_region
        %p162 = scmp.lt.s32.totalorder %s16, 3
        %s163 = scalar_select %p162, %s16, 3
        %s164 = smul.addr %s163, 16
        %s165 = smul.addr %s164, 4
        %s166 = scalar_lea.vmem %s1, %s165
      $region28: #{_lambda_.17} parent=19 // pred_fallthru
        _
    $region20: #{_lambda_.17} parent=5 // pred_fallthru
      _
    %p167 = scmp.le.s32.totalorder 1, %s9
    %p168 = scmp.lt.s32.totalorder %s9, 9
    %p169 = pnand %p167, %p168
    %p170 = pneg %p169
    // Predicated region
    $region29: #{_lambda_.17} parent=5 // pred_check
      _
    $region30: #{_lambda_.17} parent=5 // pred_check_branch
      %172 = sbr.rel (%p169) target = $region32
    $region31: #{_lambda_.17} parent=5 // pred_region
      %s173 = ssub.s32 %s9, 1
      %s174 = smul.u32 75, %s19
      %p175 = scmp.lt.s32.totalorder %s18, 3
      %s176 = scalar_select %p175, %s18, 3
      %p177 = scmp.lt.s32.totalorder %s174, 149
      %s178 = scalar_select %p177, %s174, 149
      %s179 = smul.addr %s176, 150
      %s180 = sadd.s32 %s178, %s179
      %s181 = smul.addr %s180, 8
      %s182 = scalar_lea.vmem %s0, %s181
      %p183 = pneg %p49
      %p184 = pneg %p46
      %p185 = scmp.lt.s32.totalorder %s18, 3
      %s186 = scalar_select %p185, %s18, 3
      %s187 = smul.addr %s186, 16
      %s188 = smul.addr %s187, 4
      %s189 = scalar_lea.vmem %s1, %s188
      %p190 = pneg %p75
      %p191 = pneg %p72
      %p192 = pneg %p96
      %p193 = pneg %p93
      %p194 = pneg %p124
      %p195 = pneg %p121
      %s196 = smul.u32 75, %s19
      %p197 = scmp.lt.s32.totalorder %s18, 3
      %s198 = scalar_select %p197, %s18, 3
      %p199 = scmp.lt.s32.totalorder %s196, 149
      %s200 = scalar_select %p199, %s196, 149
      %s201 = smul.addr %s198, 150
      %s202 = sadd.s32 %s200, %s201
      %s203 = smul.addr %s202, 8
      %s204 = scalar_lea.vmem %s3, %s203
      %s205 = smul.u32 75, %s19
      %p206 = scmp.lt.s32.totalorder %s18, 3
      %s207 = scalar_select %p206, %s18, 3
      %p208 = scmp.lt.s32.totalorder %s205, 149
      %s209 = scalar_select %p208, %s205, 149
      %s210 = smul.addr %s207, 150
      %s211 = sadd.s32 %s209, %s210
      %s212 = smul.addr %s211, 8
      %s213 = scalar_lea.vmem %s0, %s212
      %s214 = smul.u32 75, %s19
      %p215 = scmp.lt.s32.totalorder %s18, 3
      %s216 = scalar_select %p215, %s18, 3
      %s217 = smul.addr %s216, 16
      %s218 = smul.addr %s217, 4
      %s219 = scalar_lea.vmem %s1, %s218
      %s220 = smul.u32 75, %s19
      %p221 = scmp.lt.s32.totalorder %s18, 3
      %s222 = scalar_select %p221, %s18, 3
      %p223 = scmp.lt.s32.totalorder %s220, 149
      %s224 = scalar_select %p223, %s220, 149
      %s225 = smul.addr %s222, 150
      %s226 = sadd.s32 %s224, %s225
      %s227 = smul.addr %s226, 8
      %s228 = scalar_lea.vmem %s3, %s227
      %s229 = smul.u32 75, %s19
      %v230 = vld [vmem:[%s213] sm:$0xff]
      %v231 = vld [vmem:[%s213 + $0x8] sm:$0xff]
      %v232 = vld [vmem:[%s213 + $0x10] sm:$0xff]
      %v233 = vld [vmem:[%s213 + $0x18] sm:$0xff]
      %v234 = vld [vmem:[%s213 + $0x20] sm:$0xff]
      %v235 = vld [vmem:[%s213 + $0x28] sm:$0xff]
      %v236 = vld [vmem:[%s213 + $0x30] sm:$0xff]
      %v237 = vld [vmem:[%s213 + $0x38] sm:$0xff]
      %v238 = vld [vmem:[%s213 + $0x40] sm:$0xff]
      %v239 = vld [vmem:[%s213 + $0x48] sm:$0xff]
      %v240 = vld [vmem:[%s213 + $0x50] sm:$0xff]
      %v241 = vld [vmem:[%s213 + $0x58] sm:$0xff]
      %v242 = vld [vmem:[%s213 + $0x60] sm:$0xff]
      %v243 = vld [vmem:[%s213 + $0x68] sm:$0xff]
      %v244 = vld [vmem:[%s213 + $0x70] sm:$0xff]
      %v245 = vld [vmem:[%s213 + $0x78] sm:$0xff]
      %v246 = vld [vmem:[%s213 + $0x80] sm:$0xff]
      %v247 = vld [vmem:[%s213 + $0x88] sm:$0xff]
      %v248 = vld [vmem:[%s213 + $0x90] sm:$0xff]
      %v249 = vld [vmem:[%s213 + $0x98] sm:$0xff]
      %v250 = vld [vmem:[%s213 + $0xa0] sm:$0xff]
      %v251 = vld [vmem:[%s213 + $0xa8] sm:$0xff]
      %v252 = vld [vmem:[%s213 + $0xb0] sm:$0xff]
      %v253 = vld [vmem:[%s213 + $0xb8] sm:$0xff]
      %v254 = vld [vmem:[%s213 + $0xc0] sm:$0xff]
      %v255 = vld [vmem:[%s213 + $0xc8] sm:$0xff]
      %v256 = vld [vmem:[%s213 + $0xd0] sm:$0xff]
      %v257 = vld [vmem:[%s213 + $0xd8] sm:$0xff]
      %v258 = vld [vmem:[%s213 + $0xe0] sm:$0xff]
      %v259 = vld [vmem:[%s213 + $0xe8] sm:$0xff]
      %v260 = vld [vmem:[%s213 + $0xf0] sm:$0xff]
      %v261 = vld [vmem:[%s213 + $0xf8] sm:$0xff]
      %v262 = vld [vmem:[%s213 + $0x100] sm:$0xff]
      %v263 = vld [vmem:[%s213 + $0x108] sm:$0xff]
      %v264 = vld [vmem:[%s213 + $0x110] sm:$0xff]
      %v265 = vld [vmem:[%s213 + $0x118] sm:$0xff]
      %v266 = vld [vmem:[%s213 + $0x120] sm:$0xff]
      %v267 = vld [vmem:[%s213 + $0x128] sm:$0xff]
      %v268 = vld [vmem:[%s213 + $0x130] sm:$0xff]
      %v269 = vld [vmem:[%s213 + $0x138] sm:$0xff]
      %v270 = vld [vmem:[%s213 + $0x140] sm:$0xff]
      %v271 = vld [vmem:[%s213 + $0x148] sm:$0xff]
      %v272 = vld [vmem:[%s213 + $0x150] sm:$0xff]
      %v273 = vld [vmem:[%s213 + $0x158] sm:$0xff]
      %v274 = vld [vmem:[%s213 + $0x160] sm:$0xff]
      %v275 = vld [vmem:[%s213 + $0x168] sm:$0xff]
      %v276 = vld [vmem:[%s213 + $0x170] sm:$0xff]
      %v277 = vld [vmem:[%s213 + $0x178] sm:$0xff]
      %v278 = vld [vmem:[%s213 + $0x180] sm:$0xff]
      %v279 = vld [vmem:[%s213 + $0x188] sm:$0xff]
      %v280 = vld [vmem:[%s213 + $0x190] sm:$0xff]
      %v281 = vld [vmem:[%s213 + $0x198] sm:$0xff]
      %v282 = vld [vmem:[%s213 + $0x1a0] sm:$0xff]
      %v283 = vld [vmem:[%s213 + $0x1a8] sm:$0xff]
      %v284 = vld [vmem:[%s213 + $0x1b0] sm:$0xff]
      %v285 = vld [vmem:[%s213 + $0x1b8] sm:$0xff]
      %v286 = vld [vmem:[%s213 + $0x1c0] sm:$0xff]
      %v287 = vld [vmem:[%s213 + $0x1c8] sm:$0xff]
      %v288 = vld [vmem:[%s213 + $0x1d0] sm:$0xff]
      %v289 = vld [vmem:[%s213 + $0x1d8] sm:$0xff]
      %v290 = vld [vmem:[%s213 + $0x1e0] sm:$0xff]
      %v291 = vld [vmem:[%s213 + $0x1e8] sm:$0xff]
      %v292 = vld [vmem:[%s213 + $0x1f0] sm:$0xff]
      %v293 = vld [vmem:[%s213 + $0x1f8] sm:$0xff]
      %v294 = vld [vmem:[%s213 + $0x200] sm:$0xff]
      %v295 = vld [vmem:[%s213 + $0x208] sm:$0xff]
      %v296 = vld [vmem:[%s213 + $0x210] sm:$0xff]
      %v297 = vld [vmem:[%s213 + $0x218] sm:$0xff]
      %v298 = vld [vmem:[%s213 + $0x220] sm:$0xff]
      %v299 = vld [vmem:[%s213 + $0x228] sm:$0xff]
      %v300 = vld [vmem:[%s213 + $0x230] sm:$0xff]
      %v301 = vld [vmem:[%s213 + $0x238] sm:$0xff]
      %v302 = vld [vmem:[%s213 + $0x240] sm:$0xff]
      %v303 = vld [vmem:[%s213 + $0x248] sm:$0xff]
      %v304 = vld [vmem:[%s213 + $0x250] sm:$0xff]
      %v305 = vpack.c.bf16 %v231, %v230
      %v306 = vpack.c.bf16 %v233, %v232
      %v307 = vpack.c.bf16 %v235, %v234
      %v308 = vpack.c.bf16 %v237, %v236
      %v309 = vpack.c.bf16 %v239, %v238
      %v310 = vpack.c.bf16 %v241, %v240
      %v311 = vpack.c.bf16 %v243, %v242
      %v312 = vpack.c.bf16 %v245, %v244
      %v313 = vpack.c.bf16 %v247, %v246
      %v314 = vpack.c.bf16 %v249, %v248
      %v315 = vpack.c.bf16 %v251, %v250
      %v316 = vpack.c.bf16 %v253, %v252
      %v317 = vpack.c.bf16 %v255, %v254
      %v318 = vpack.c.bf16 %v257, %v256
      %v319 = vpack.c.bf16 %v259, %v258
      %v320 = vpack.c.bf16 %v261, %v260
      %v321 = vpack.c.bf16 %v263, %v262
      %v322 = vpack.c.bf16 %v265, %v264
      %v323 = vpack.c.bf16 %v267, %v266
      %v324 = vpack.c.bf16 %v269, %v268
      %v325 = vpack.c.bf16 %v271, %v270
      %v326 = vpack.c.bf16 %v273, %v272
      %v327 = vpack.c.bf16 %v275, %v274
      %v328 = vpack.c.bf16 %v277, %v276
      %v329 = vpack.c.bf16 %v279, %v278
      %v330 = vpack.c.bf16 %v281, %v280
      %v331 = vpack.c.bf16 %v283, %v282
      %v332 = vpack.c.bf16 %v285, %v284
      %v333 = vpack.c.bf16 %v287, %v286
      %v334 = vpack.c.bf16 %v289, %v288
      %v335 = vpack.c.bf16 %v291, %v290
      %v336 = vpack.c.bf16 %v293, %v292
      %v337 = vpack.c.bf16 %v295, %v294
      %v338 = vpack.c.bf16 %v297, %v296
      %v339 = vpack.c.bf16 %v299, %v298
      %v340 = vpack.c.bf16 %v301, %v300
      %v341 = vpack.c.bf16 %v303, %v302
      %v342 = vpack.c.bf16 %v304, %v304
      %v343 = vld [vmem:[%s219] sm:$0xf]
      %v344 = vld [vmem:[%s219 + $0x4] sm:$0xf]
      %v345 = vld [vmem:[%s219 + $0x8] sm:$0xf]
      %v346 = vld [vmem:[%s219 + $0xc] sm:$0xf]
      %v347 = vld [vmem:[%s219 + $0x10] sm:$0xf]
      %v348 = vld [vmem:[%s219 + $0x14] sm:$0xf]
      %v349 = vld [vmem:[%s219 + $0x18] sm:$0xf]
      %v350 = vld [vmem:[%s219 + $0x1c] sm:$0xf]
      %v351 = vld [vmem:[%s219 + $0x20] sm:$0xf]
      %v352 = vld [vmem:[%s219 + $0x24] sm:$0xf]
      %v353 = vld [vmem:[%s219 + $0x28] sm:$0xf]
      %v354 = vld [vmem:[%s219 + $0x2c] sm:$0xf]
      %v355 = vld [vmem:[%s219 + $0x30] sm:$0xf]
      %v356 = vld [vmem:[%s219 + $0x34] sm:$0xf]
      %v357 = vld [vmem:[%s219 + $0x38] sm:$0xf]
      %v358 = vld [vmem:[%s219 + $0x3c] sm:$0xf]
      %v359 = vld [vmem:[%s2] sm:$0x1]
      %v361 = vperm.slane %v359, 0
      %v379 = vunpack.c.l.b16 %v343
      %v380 = vunpack.c.l.b16 %v344
      %v381 = vunpack.c.l.b16 %v345
      %v382 = vunpack.c.l.b16 %v346
      %v383 = vunpack.c.l.b16 %v347
      %v384 = vunpack.c.l.b16 %v348
      %v385 = vunpack.c.l.b16 %v349
      %v386 = vunpack.c.l.b16 %v350
      %v387 = vunpack.c.l.b16 %v351
      %v388 = vunpack.c.l.b16 %v352
      %v389 = vunpack.c.l.b16 %v353
      %v390 = vunpack.c.l.b16 %v354
      %v391 = vunpack.c.l.b16 %v355
      %v392 = vunpack.c.l.b16 %v356
      %v393 = vunpack.c.l.b16 %v357
      %v394 = vunpack.c.l.b16 %v358
      %v395 = vpack.c.b16 %v380, %v379
      %v396 = vpack.c.b16 %v382, %v381
      %v397 = vpack.c.b16 %v384, %v383
      %v398 = vpack.c.b16 %v386, %v385
      %v399 = vpack.c.b16 %v388, %v387
      %v400 = vpack.c.b16 %v390, %v389
      %v401 = vpack.c.b16 %v392, %v391
      %v402 = vpack.c.b16 %v394, %v393
      %411 = vmatpush.bf16.msra.mxu0 %v402
      %412 = vmatpush.bf16.msra.mxu0 %v401
      %413 = vmatpush.bf16.msra.mxu0 %v400
      %414 = vmatpush.bf16.msra.mxu0 %v399
      %415 = vmatpush.bf16.msra.mxu0 %v398
      %416 = vmatpush.bf16.msra.mxu0 %v397
      %417 = vmatpush.bf16.msra.mxu0 %v396
      %418 = vmatpush.bf16.msra.mxu0 %v395
      %419 = vmatmul.bf16.gmra.mxu0 %v305
      %v420 = vpop.f32.mrf.mxu0
      %v421 = vadd.f32 %v361, %v420
      %v422 = vpop.f32.mrf.mxu0
      %v423 = vadd.f32 %v361, %v422
      %424 = vmatmul.bf16.gmra.mxu0 %v306
      %v425 = vpop.f32.mrf.mxu0
      %v426 = vadd.f32 %v361, %v425
      %v427 = vpop.f32.mrf.mxu0
      %v428 = vadd.f32 %v361, %v427
      %429 = vmatmul.bf16.gmra.mxu0 %v307
      %v430 = vpop.f32.mrf.mxu0
      %v431 = vadd.f32 %v361, %v430
      %v432 = vpop.f32.mrf.mxu0
      %v433 = vadd.f32 %v361, %v432
      %434 = vmatmul.bf16.gmra.mxu0 %v308
      %v435 = vpop.f32.mrf.mxu0
      %v436 = vadd.f32 %v361, %v435
      %v437 = vpop.f32.mrf.mxu0
      %v438 = vadd.f32 %v361, %v437
      %439 = vmatmul.bf16.gmra.mxu0 %v309
      %v440 = vpop.f32.mrf.mxu0
      %v441 = vadd.f32 %v361, %v440
      %v442 = vpop.f32.mrf.mxu0
      %v443 = vadd.f32 %v361, %v442
      %444 = vmatmul.bf16.gmra.mxu0 %v310
      %v445 = vpop.f32.mrf.mxu0
      %v446 = vadd.f32 %v361, %v445
      %v447 = vpop.f32.mrf.mxu0
      %v448 = vadd.f32 %v361, %v447
      %449 = vmatmul.bf16.gmra.mxu0 %v311
      %v450 = vpop.f32.mrf.mxu0
      %v451 = vadd.f32 %v361, %v450
      %v452 = vpop.f32.mrf.mxu0
      %v453 = vadd.f32 %v361, %v452
      %454 = vmatmul.bf16.gmra.mxu0 %v312
      %v455 = vpop.f32.mrf.mxu0
      %v456 = vadd.f32 %v361, %v455
      %v457 = vpop.f32.mrf.mxu0
      %v458 = vadd.f32 %v361, %v457
      %459 = vmatmul.bf16.gmra.mxu0 %v313
      %v460 = vpop.f32.mrf.mxu0
      %v461 = vadd.f32 %v361, %v460
      %v462 = vpop.f32.mrf.mxu0
      %v463 = vadd.f32 %v361, %v462
      %464 = vmatmul.bf16.gmra.mxu0 %v314
      %v465 = vpop.f32.mrf.mxu0
      %v466 = vadd.f32 %v361, %v465
      %v467 = vpop.f32.mrf.mxu0
      %v468 = vadd.f32 %v361, %v467
      %469 = vmatmul.bf16.gmra.mxu0 %v315
      %v470 = vpop.f32.mrf.mxu0
      %v471 = vadd.f32 %v361, %v470
      %v472 = vpop.f32.mrf.mxu0
      %v473 = vadd.f32 %v361, %v472
      %474 = vmatmul.bf16.gmra.mxu0 %v316
      %v475 = vpop.f32.mrf.mxu0
      %v476 = vadd.f32 %v361, %v475
      %v477 = vpop.f32.mrf.mxu0
      %v478 = vadd.f32 %v361, %v477
      %479 = vmatmul.bf16.gmra.mxu0 %v317
      %v480 = vpop.f32.mrf.mxu0
      %v481 = vadd.f32 %v361, %v480
      %v482 = vpop.f32.mrf.mxu0
      %v483 = vadd.f32 %v361, %v482
      %484 = vmatmul.bf16.gmra.mxu0 %v318
      %v485 = vpop.f32.mrf.mxu0
      %v486 = vadd.f32 %v361, %v485
      %v487 = vpop.f32.mrf.mxu0
      %v488 = vadd.f32 %v361, %v487
      %489 = vmatmul.bf16.gmra.mxu0 %v319
      %v490 = vpop.f32.mrf.mxu0
      %v491 = vadd.f32 %v361, %v490
      %v492 = vpop.f32.mrf.mxu0
      %v493 = vadd.f32 %v361, %v492
      %494 = vmatmul.bf16.gmra.mxu0 %v320
      %v495 = vpop.f32.mrf.mxu0
      %v496 = vadd.f32 %v361, %v495
      %v497 = vpop.f32.mrf.mxu0
      %v498 = vadd.f32 %v361, %v497
      %499 = vmatmul.bf16.gmra.mxu0 %v321
      %v500 = vpop.f32.mrf.mxu0
      %v501 = vadd.f32 %v361, %v500
      %v502 = vpop.f32.mrf.mxu0
      %v503 = vadd.f32 %v361, %v502
      %504 = vmatmul.bf16.gmra.mxu0 %v322
      %v505 = vpop.f32.mrf.mxu0
      %v506 = vadd.f32 %v361, %v505
      %v507 = vpop.f32.mrf.mxu0
      %v508 = vadd.f32 %v361, %v507
      %509 = vmatmul.bf16.gmra.mxu0 %v323
      %v510 = vpop.f32.mrf.mxu0
      %v511 = vadd.f32 %v361, %v510
      %v512 = vpop.f32.mrf.mxu0
      %v513 = vadd.f32 %v361, %v512
      %514 = vmatmul.bf16.gmra.mxu0 %v324
      %v515 = vpop.f32.mrf.mxu0
      %v516 = vadd.f32 %v361, %v515
      %v517 = vpop.f32.mrf.mxu0
      %v518 = vadd.f32 %v361, %v517
      %519 = vmatmul.bf16.gmra.mxu0 %v325
      %v520 = vpop.f32.mrf.mxu0
      %v521 = vadd.f32 %v361, %v520
      %v522 = vpop.f32.mrf.mxu0
      %v523 = vadd.f32 %v361, %v522
      %524 = vmatmul.bf16.gmra.mxu0 %v326
      %v525 = vpop.f32.mrf.mxu0
      %v526 = vadd.f32 %v361, %v525
      %v527 = vpop.f32.mrf.mxu0
      %v528 = vadd.f32 %v361, %v527
      %529 = vmatmul.bf16.gmra.mxu0 %v327
      %v530 = vpop.f32.mrf.mxu0
      %v531 = vadd.f32 %v361, %v530
      %v532 = vpop.f32.mrf.mxu0
      %v533 = vadd.f32 %v361, %v532
      %534 = vmatmul.bf16.gmra.mxu0 %v328
      %v535 = vpop.f32.mrf.mxu0
      %v536 = vadd.f32 %v361, %v535
      %v537 = vpop.f32.mrf.mxu0
      %v538 = vadd.f32 %v361, %v537
      %539 = vmatmul.bf16.gmra.mxu0 %v329
      %v540 = vpop.f32.mrf.mxu0
      %v541 = vadd.f32 %v361, %v540
      %v542 = vpop.f32.mrf.mxu0
      %v543 = vadd.f32 %v361, %v542
      %544 = vmatmul.bf16.gmra.mxu0 %v330
      %v545 = vpop.f32.mrf.mxu0
      %v546 = vadd.f32 %v361, %v545
      %v547 = vpop.f32.mrf.mxu0
      %v548 = vadd.f32 %v361, %v547
      %549 = vmatmul.bf16.gmra.mxu0 %v331
      %v550 = vpop.f32.mrf.mxu0
      %v551 = vadd.f32 %v361, %v550
      %v552 = vpop.f32.mrf.mxu0
      %v553 = vadd.f32 %v361, %v552
      %554 = vmatmul.bf16.gmra.mxu0 %v332
      %v555 = vpop.f32.mrf.mxu0
      %v556 = vadd.f32 %v361, %v555
      %v557 = vpop.f32.mrf.mxu0
      %v558 = vadd.f32 %v361, %v557
      %559 = vmatmul.bf16.gmra.mxu0 %v333
      %v560 = vpop.f32.mrf.mxu0
      %v561 = vadd.f32 %v361, %v560
      %v562 = vpop.f32.mrf.mxu0
      %v563 = vadd.f32 %v361, %v562
      %564 = vmatmul.bf16.gmra.mxu0 %v334
      %v565 = vpop.f32.mrf.mxu0
      %v566 = vadd.f32 %v361, %v565
      %v567 = vpop.f32.mrf.mxu0
      %v568 = vadd.f32 %v361, %v567
      %569 = vmatmul.bf16.gmra.mxu0 %v335
      %v570 = vpop.f32.mrf.mxu0
      %v571 = vadd.f32 %v361, %v570
      %v572 = vpop.f32.mrf.mxu0
      %v573 = vadd.f32 %v361, %v572
      %574 = vmatmul.bf16.gmra.mxu0 %v336
      %v575 = vpop.f32.mrf.mxu0
      %v576 = vadd.f32 %v361, %v575
      %v577 = vpop.f32.mrf.mxu0
      %v578 = vadd.f32 %v361, %v577
      %579 = vmatmul.bf16.gmra.mxu0 %v337
      %v580 = vpop.f32.mrf.mxu0
      %v581 = vadd.f32 %v361, %v580
      %v582 = vpop.f32.mrf.mxu0
      %v583 = vadd.f32 %v361, %v582
      %584 = vmatmul.bf16.gmra.mxu0 %v338
      %v585 = vpop.f32.mrf.mxu0
      %v586 = vadd.f32 %v361, %v585
      %v587 = vpop.f32.mrf.mxu0
      %v588 = vadd.f32 %v361, %v587
      %589 = vmatmul.bf16.gmra.mxu0 %v339
      %v590 = vpop.f32.mrf.mxu0
      %v591 = vadd.f32 %v361, %v590
      %v592 = vpop.f32.mrf.mxu0
      %v593 = vadd.f32 %v361, %v592
      %594 = vmatmul.bf16.gmra.mxu0 %v340
      %v595 = vpop.f32.mrf.mxu0
      %v596 = vadd.f32 %v361, %v595
      %v597 = vpop.f32.mrf.mxu0
      %v598 = vadd.f32 %v361, %v597
      %599 = vmatmul.bf16.gmra.mxu0 %v341
      %v600 = vpop.f32.mrf.mxu0
      %v601 = vadd.f32 %v361, %v600
      %v602 = vpop.f32.mrf.mxu0
      %v603 = vadd.f32 %v361, %v602
      %604 = vmatmul.bf16.gmra.mxu0 %v342
      %v605 = vpop.f32.mrf.mxu0
      %v606 = vadd.f32 %v361, %v605
      %v607 = vpop.f32.mrf.mxu0
      %608 = vdwg.mxu0
      %v609 = vmax.f32 %v421, 0.0
      %v610 = vmax.f32 %v423, 0.0
      %v611 = vmax.f32 %v426, 0.0
      %v612 = vmax.f32 %v428, 0.0
      %v613 = vmax.f32 %v431, 0.0
      %v614 = vmax.f32 %v433, 0.0
      %v615 = vmax.f32 %v436, 0.0
      %v616 = vmax.f32 %v438, 0.0
      %v617 = vmax.f32 %v441, 0.0
      %v618 = vmax.f32 %v443, 0.0
      %v619 = vmax.f32 %v446, 0.0
      %v620 = vmax.f32 %v448, 0.0
      %v621 = vmax.f32 %v451, 0.0
      %v622 = vmax.f32 %v453, 0.0
      %v623 = vmax.f32 %v456, 0.0
      %v624 = vmax.f32 %v458, 0.0
      %v625 = vmax.f32 %v461, 0.0
      %v626 = vmax.f32 %v463, 0.0
      %v627 = vmax.f32 %v466, 0.0
      %v628 = vmax.f32 %v468, 0.0
      %v629 = vmax.f32 %v471, 0.0
      %v630 = vmax.f32 %v473, 0.0
      %v631 = vmax.f32 %v476, 0.0
      %v632 = vmax.f32 %v478, 0.0
      %v633 = vmax.f32 %v481, 0.0
      %v634 = vmax.f32 %v483, 0.0
      %v635 = vmax.f32 %v486, 0.0
      %v636 = vmax.f32 %v488, 0.0
      %v637 = vmax.f32 %v491, 0.0
      %v638 = vmax.f32 %v493, 0.0
      %v639 = vmax.f32 %v496, 0.0
      %v640 = vmax.f32 %v498, 0.0
      %v641 = vmax.f32 %v501, 0.0
      %v642 = vmax.f32 %v503, 0.0
      %v643 = vmax.f32 %v506, 0.0
      %v644 = vmax.f32 %v508, 0.0
      %v645 = vmax.f32 %v511, 0.0
      %v646 = vmax.f32 %v513, 0.0
      %v647 = vmax.f32 %v516, 0.0
      %v648 = vmax.f32 %v518, 0.0
      %v649 = vmax.f32 %v521, 0.0
      %v650 = vmax.f32 %v523, 0.0
      %v651 = vmax.f32 %v526, 0.0
      %v652 = vmax.f32 %v528, 0.0
      %v653 = vmax.f32 %v531, 0.0
      %v654 = vmax.f32 %v533, 0.0
      %v655 = vmax.f32 %v536, 0.0
      %v656 = vmax.f32 %v538, 0.0
      %v657 = vmax.f32 %v541, 0.0
      %v658 = vmax.f32 %v543, 0.0
      %v659 = vmax.f32 %v546, 0.0
      %v660 = vmax.f32 %v548, 0.0
      %v661 = vmax.f32 %v551, 0.0
      %v662 = vmax.f32 %v553, 0.0
      %v663 = vmax.f32 %v556, 0.0
      %v664 = vmax.f32 %v558, 0.0
      %v665 = vmax.f32 %v561, 0.0
      %v666 = vmax.f32 %v563, 0.0
      %v667 = vmax.f32 %v566, 0.0
      %v668 = vmax.f32 %v568, 0.0
      %v669 = vmax.f32 %v571, 0.0
      %v670 = vmax.f32 %v573, 0.0
      %v671 = vmax.f32 %v576, 0.0
      %v672 = vmax.f32 %v578, 0.0
      %v673 = vmax.f32 %v581, 0.0
      %v674 = vmax.f32 %v583, 0.0
      %v675 = vmax.f32 %v586, 0.0
      %v676 = vmax.f32 %v588, 0.0
      %v677 = vmax.f32 %v591, 0.0
      %v678 = vmax.f32 %v593, 0.0
      %v679 = vmax.f32 %v596, 0.0
      %v680 = vmax.f32 %v598, 0.0
      %v681 = vmax.f32 %v601, 0.0
      %v682 = vmax.f32 %v603, 0.0
      %v683 = vmax.f32 %v606, 0.0
      %684 = vst [vmem:[%s228] sm:$0xff] %v609
      %685 = vst [vmem:[%s228 + $0x8] sm:$0xff] %v610
      %686 = vst [vmem:[%s228 + $0x10] sm:$0xff] %v611
      %687 = vst [vmem:[%s228 + $0x18] sm:$0xff] %v612
      %688 = vst [vmem:[%s228 + $0x20] sm:$0xff] %v613
      %689 = vst [vmem:[%s228 + $0x28] sm:$0xff] %v614
      %690 = vst [vmem:[%s228 + $0x30] sm:$0xff] %v615
      %691 = vst [vmem:[%s228 + $0x38] sm:$0xff] %v616
      %692 = vst [vmem:[%s228 + $0x40] sm:$0xff] %v617
      %693 = vst [vmem:[%s228 + $0x48] sm:$0xff] %v618
      %694 = vst [vmem:[%s228 + $0x50] sm:$0xff] %v619
      %695 = vst [vmem:[%s228 + $0x58] sm:$0xff] %v620
      %696 = vst [vmem:[%s228 + $0x60] sm:$0xff] %v621
      %697 = vst [vmem:[%s228 + $0x68] sm:$0xff] %v622
      %698 = vst [vmem:[%s228 + $0x70] sm:$0xff] %v623
      %699 = vst [vmem:[%s228 + $0x78] sm:$0xff] %v624
      %700 = vst [vmem:[%s228 + $0x80] sm:$0xff] %v625
      %701 = vst [vmem:[%s228 + $0x88] sm:$0xff] %v626
      %702 = vst [vmem:[%s228 + $0x90] sm:$0xff] %v627
      %703 = vst [vmem:[%s228 + $0x98] sm:$0xff] %v628
      %704 = vst [vmem:[%s228 + $0xa0] sm:$0xff] %v629
      %705 = vst [vmem:[%s228 + $0xa8] sm:$0xff] %v630
      %706 = vst [vmem:[%s228 + $0xb0] sm:$0xff] %v631
      %707 = vst [vmem:[%s228 + $0xb8] sm:$0xff] %v632
      %708 = vst [vmem:[%s228 + $0xc0] sm:$0xff] %v633
      %709 = vst [vmem:[%s228 + $0xc8] sm:$0xff] %v634
      %710 = vst [vmem:[%s228 + $0xd0] sm:$0xff] %v635
      %711 = vst [vmem:[%s228 + $0xd8] sm:$0xff] %v636
      %712 = vst [vmem:[%s228 + $0xe0] sm:$0xff] %v637
      %713 = vst [vmem:[%s228 + $0xe8] sm:$0xff] %v638
      %714 = vst [vmem:[%s228 + $0xf0] sm:$0xff] %v639
      %715 = vst [vmem:[%s228 + $0xf8] sm:$0xff] %v640
      %716 = vst [vmem:[%s228 + $0x100] sm:$0xff] %v641
      %717 = vst [vmem:[%s228 + $0x108] sm:$0xff] %v642
      %718 = vst [vmem:[%s228 + $0x110] sm:$0xff] %v643
      %719 = vst [vmem:[%s228 + $0x118] sm:$0xff] %v644
      %720 = vst [vmem:[%s228 + $0x120] sm:$0xff] %v645
      %721 = vst [vmem:[%s228 + $0x128] sm:$0xff] %v646
      %722 = vst [vmem:[%s228 + $0x130] sm:$0xff] %v647
      %723 = vst [vmem:[%s228 + $0x138] sm:$0xff] %v648
      %724 = vst [vmem:[%s228 + $0x140] sm:$0xff] %v649
      %725 = vst [vmem:[%s228 + $0x148] sm:$0xff] %v650
      %726 = vst [vmem:[%s228 + $0x150] sm:$0xff] %v651
      %727 = vst [vmem:[%s228 + $0x158] sm:$0xff] %v652
      %728 = vst [vmem:[%s228 + $0x160] sm:$0xff] %v653
      %729 = vst [vmem:[%s228 + $0x168] sm:$0xff] %v654
      %730 = vst [vmem:[%s228 + $0x170] sm:$0xff] %v655
      %731 = vst [vmem:[%s228 + $0x178] sm:$0xff] %v656
      %732 = vst [vmem:[%s228 + $0x180] sm:$0xff] %v657
      %733 = vst [vmem:[%s228 + $0x188] sm:$0xff] %v658
      %734 = vst [vmem:[%s228 + $0x190] sm:$0xff] %v659
      %735 = vst [vmem:[%s228 + $0x198] sm:$0xff] %v660
      %736 = vst [vmem:[%s228 + $0x1a0] sm:$0xff] %v661
      %737 = vst [vmem:[%s228 + $0x1a8] sm:$0xff] %v662
      %738 = vst [vmem:[%s228 + $0x1b0] sm:$0xff] %v663
      %739 = vst [vmem:[%s228 + $0x1b8] sm:$0xff] %v664
      %740 = vst [vmem:[%s228 + $0x1c0] sm:$0xff] %v665
      %741 = vst [vmem:[%s228 + $0x1c8] sm:$0xff] %v666
      %742 = vst [vmem:[%s228 + $0x1d0] sm:$0xff] %v667
      %743 = vst [vmem:[%s228 + $0x1d8] sm:$0xff] %v668
      %744 = vst [vmem:[%s228 + $0x1e0] sm:$0xff] %v669
      %745 = vst [vmem:[%s228 + $0x1e8] sm:$0xff] %v670
      %746 = vst [vmem:[%s228 + $0x1f0] sm:$0xff] %v671
      %747 = vst [vmem:[%s228 + $0x1f8] sm:$0xff] %v672
      %748 = vst [vmem:[%s228 + $0x200] sm:$0xff] %v673
      %749 = vst [vmem:[%s228 + $0x208] sm:$0xff] %v674
      %750 = vst [vmem:[%s228 + $0x210] sm:$0xff] %v675
      %751 = vst [vmem:[%s228 + $0x218] sm:$0xff] %v676
      %752 = vst [vmem:[%s228 + $0x220] sm:$0xff] %v677
      %753 = vst [vmem:[%s228 + $0x228] sm:$0xff] %v678
      %754 = vst [vmem:[%s228 + $0x230] sm:$0xff] %v679
      %755 = vst [vmem:[%s228 + $0x238] sm:$0xff] %v680
      %756 = vst [vmem:[%s228 + $0x240] sm:$0xff] %v681
      %757 = vst [vmem:[%s228 + $0x248] sm:$0xff] %v682
      %758 = vst [vmem:[%s228 + $0x250] sm:$0xff] %v683
      %s759 = smul.u32 75, %s19
      %p760 = scmp.lt.s32.totalorder %s18, 3
      %s761 = scalar_select %p760, %s18, 3
      %p762 = scmp.lt.s32.totalorder %s759, 149
      %s763 = scalar_select %p762, %s759, 149
      %s764 = smul.addr %s761, 150
      %s765 = sadd.s32 %s763, %s764
      %s766 = smul.addr %s765, 8
      %s767 = scalar_lea.vmem %s3, %s766
      // Predicated region
      $region33: #{_lambda_.17} parent=31 // pred_check
        %p768 = pneg %p121
      $region34: #{_lambda_.17} parent=31 // pred_check_branch
        %770 = sbr.rel (%p768) target = $region36
      $region35: #{_lambda_.17} parent=31 // pred_region
        %s771 = smul.u32 75, %s19
      $region36: #{_lambda_.17} parent=31 // pred_fallthru
        _
    $region32: #{_lambda_.17} parent=5 // pred_fallthru
      _
    %p772 = scmp.le.s32.totalorder 2, %s9
    // Predicated region
    $region37: #{_lambda_.17} parent=5 // pred_check
      %p773 = pneg %p772
    $region38: #{_lambda_.17} parent=5 // pred_check_branch
      %775 = sbr.rel (%p773) target = $region40
    $region39: #{_lambda_.17} parent=5 // pred_region
      %s776 = ssub.s32 %s9, 2
      // Predicated region
      $region41: #{_lambda_.17} parent=39 // pred_check
        %p777 = pneg %p127
      $region42: #{_lambda_.17} parent=39 // pred_check_branch
        %779 = sbr.rel (%p777) target = $region44
      $region43: #{_lambda_.17} parent=39 // pred_region
        %s780 = smul.u32 75, %s21
        %p781 = scmp.lt.s32.totalorder %s20, 3
        %s782 = scalar_select %p781, %s20, 3
        %p783 = scmp.lt.s32.totalorder %s780, 149
        %s784 = scalar_select %p783, %s780, 149
        %s785 = smul.addr %s782, 150
        %s786 = sadd.s32 %s784, %s785
        %s787 = smul.addr %s786, 8
        %s788 = scalar_lea.vmem %s3, %s787
      $region44: #{_lambda_.17} parent=39 // pred_fallthru
        _
    $region40: #{_lambda_.17} parent=5 // pred_fallthru
      _
  $region6: #{_lambda_.17} parent=0 // loop_footer
    %s13 = sadd.s32 1, %s9
  $region7: #{_lambda_.17} parent=0 // loop_footer_branch
    %8 = sbr.rel target = $region3
  $region8: #{_lambda_.17} parent=0 // loop_exit
    _

</llo_original>
